<compile_context>
chip_gen: v7x
topology: tpu7x:2x2x1
jax: 0.10.0
libtpu: 0.0.40
codegen_flags: <defaults>
</compile_context>

<pallas_src>
import functools

import jax
import jax.numpy as jnp
from jax.experimental import pallas as pl
from jax.experimental.pallas import tpu as pltpu

_VMEM = pl.BlockSpec(memory_space=pltpu.MemorySpace.VMEM)


# --------------------------- in-kernel helpers -----------------------------

def _layernorm(x, g, b):
    mu = jnp.mean(x, axis=-1, keepdims=True)
    xc = x - mu
    var = jnp.mean(xc * xc, axis=-1, keepdims=True)
    return xc * jax.lax.rsqrt(var + 1e-5) * g + b


def _mha_blockmask(q, k, v, nhead):
    """Multi-head attention on unsplit (seq, D) operands using per-head
    block-diagonal lane masks. Mathematically identical to splitting D into
    nhead heads of dh = D // nhead, but with no reshape/slice/concat and a
    D-wide MXU contraction."""
    d = q.shape[-1]
    dh = d // nhead
    scale = 1.0 / float(dh) ** 0.5
    col = jax.lax.broadcasted_iota(jnp.int32, (1, d), 1)
    out = jnp.zeros((q.shape[0], d), jnp.float32)
    for h in range(nhead):  # tiny, unrolled at trace time; all values stay in vregs
        m = jnp.where((col >= h * dh) & (col < (h + 1) * dh), 1.0, 0.0)
        s = jax.lax.dot_general(q * m, k * m, (((1,), (1,)), ((), ())),
                                preferred_element_type=jnp.float32) * scale
        s = s - jnp.max(s, axis=-1, keepdims=True)
        e = jnp.exp(s)
        p = e * pl.reciprocal(jnp.sum(e, axis=-1, keepdims=True), approx=True)
        # v * m zeroes the other heads' lanes, so accumulating over heads is the
        # concatenation of per-head outputs in their original lane positions.
        out = out + jnp.dot(p, v * m, preferred_element_type=jnp.float32)
    return out


def _class_prob_merge(y, nclass):
    """Fused process_feature: softmax the trailing `nclass` channels in place
    (lane mask instead of slice+concat). Exact divide so probs sum to 1."""
    col = jax.lax.broadcasted_iota(jnp.int32, y.shape, 1)
    is_cls = col >= (y.shape[-1] - nclass)
    m = jnp.max(jnp.where(is_cls, y, -1e30), axis=-1, keepdims=True)
    e = jnp.where(is_cls, jnp.exp(y - m), 0.0)
    prob = e / jnp.sum(e, axis=-1, keepdims=True)
    return jnp.where(is_cls, prob, y)


# ------------------------------ Pallas kernels ------------------------------

def _mstcn_kernel(x_ref, in_w_ref, in_b_ref, conv_w_ref, conv_b_ref,
                  pw_w_ref, pw_b_ref, out_w_ref, out_b_ref,
                  cls_w_ref, cls_b_ref,
                  ff_ref, clogit_ref, *, f_layers, nclass):
    """Whole MSTCN frame branch + out linear + process_feature, one kernel."""
    x = x_ref[...]
    t = x.shape[0]
    h = jnp.dot(x, in_w_ref[...], preferred_element_type=jnp.float32) + in_b_ref[...]

    ri = jax.lax.broadcasted_iota(jnp.int32, (t, t), 0)
    ci = jax.lax.broadcasted_iota(jnp.int32, (t, t), 1)

    for l in range(f_layers):           # unrolled; weights stay VMEM-resident
        d = 2 ** l
        # Temporal shift via tiny (t,t) selection matrices on the MXU:
        #   (down @ h)[i] == h[i-d] (zero halo for i < d)
        #   (up   @ h)[i] == h[i+d] (zero halo for i >= t-d)
        down = jnp.where(ci == ri - d, 1.0, 0.0)
        up = jnp.where(ci == ri + d, 1.0, 0.0)
        hm = jnp.dot(down, h, preferred_element_type=jnp.float32)
        hp = jnp.dot(up, h, preferred_element_type=jnp.float32)
        w3 = conv_w_ref[l]              # (3, hid, hid)
        z = jnp.dot(hm, w3[0], preferred_element_type=jnp.float32)
        z = z + jnp.dot(h, w3[1], preferred_element_type=jnp.float32)
        z = z + jnp.dot(hp, w3[2], preferred_element_type=jnp.float32)
        z = jnp.maximum(z + conv_b_ref[l], 0.0)                  # dilated conv + ReLU
        z = jnp.dot(z, pw_w_ref[l], preferred_element_type=jnp.float32) + pw_b_ref[l]
        h = h + z                                                # residual

    y = jnp.dot(h, out_w_ref[...], preferred_element_type=jnp.float32) + out_b_ref[...]
    ff_ref[...] = _class_prob_merge(y, nclass)
    # class logits via the class-head columns of out_w (sliced in the wrapper
    # so the kernel avoids unaligned lane slicing of values).
    clogit_ref[...] = (jnp.dot(h, cls_w_ref[...], preferred_element_type=jnp.float32)
                       + cls_b_ref[...])


def _sa_layer_kernel(tgt_ref, mem_ref, pos_ref, qpos_ref,
                     sa_wq_ref, sa_bq_ref, sa_wk_ref, sa_bk_ref,
                     sa_wv_ref, sa_bv_ref, sa_wo_ref, sa_bo_ref,
                     ca_wq_ref, ca_bq_ref, ca_wk_ref, ca_bk_ref,
                     ca_wv_ref, ca_bv_ref, ca_wo_ref, ca_bo_ref,
                     ln1_g_ref, ln1_b_ref, ln2_g_ref, ln2_b_ref,
                     ln3_g_ref, ln3_b_ref,
                     w1_ref, b1_ref, w2_ref, b2_ref,
                     o_ref, *, nhead):
    """One whole SADecoder layer: self-attn + cross-attn + FFN + 3 LayerNorms."""
    tgt = tgt_ref[...]
    mem = mem_ref[...]
    pos = pos_ref[...]
    qpos = qpos_ref[...]

    def proj(x, w_ref, b_ref):
        return jnp.dot(x, w_ref[...], preferred_element_type=jnp.float32) + b_ref[...]

    # --- self-attention: Q = K = tgt + query_pos, V = tgt --------------------
    qk_in = tgt + qpos
    sa = _mha_blockmask(proj(qk_in, sa_wq_ref, sa_bq_ref),
                        proj(qk_in, sa_wk_ref, sa_bk_ref),
                        proj(tgt, sa_wv_ref, sa_bv_ref), nhead)
    sa = proj(sa, sa_wo_ref, sa_bo_ref)
    tgt = _layernorm(tgt + sa, ln1_g_ref[...], ln1_b_ref[...])

    # --- cross-attention: Q = tgt + query_pos, K = memory + pos, V = memory --
    ca = _mha_blockmask(proj(tgt + qpos, ca_wq_ref, ca_bq_ref),
                        proj(mem + pos, ca_wk_ref, ca_bk_ref),
                        proj(mem, ca_wv_ref, ca_bv_ref), nhead)
    ca = proj(ca, ca_wo_ref, ca_bo_ref)
    tgt = _layernorm(tgt + ca, ln2_g_ref[...], ln2_b_ref[...])

    # --- feed-forward ---------------------------------------------------------
    ffn = jnp.maximum(proj(tgt, w1_ref, b1_ref), 0.0)
    ffn = proj(ffn, w2_ref, b2_ref)
    o_ref[...] = _layernorm(tgt + ffn, ln3_g_ref[...], ln3_b_ref[...])


def _action_head_kernel(x_ref, w_ref, b_ref, cls_w_ref, cls_b_ref,
                        af_ref, clogit_ref, *, nclass):
    """Decoder out linear + process_feature (softmax of trailing classes)."""
    x = x_ref[...]
    y = jnp.dot(x, w_ref[...], preferred_element_type=jnp.float32) + b_ref[...]
    af_ref[...] = _class_prob_merge(y, nclass)
    clogit_ref[...] = (jnp.dot(x, cls_w_ref[...], preferred_element_type=jnp.float32)
                       + cls_b_ref[...])


# ------------------------------ host wrappers -------------------------------

def mstcn_frame_branch(x, p, *, f_layers, nclass):
    """x: (T, in_dim) -> (ff (T, f_dim) with class probs folded in, clogit (T, nclass))."""
    t, in_dim = x.shape
    hid = p['in_w'].shape[1]
    f_dim = p['out_w'].shape[1]
    cls_w = p['out_w'][:, f_dim - nclass:]
    cls_b = p['out_b'][:, f_dim - nclass:]
    flops = 2 * t * (in_dim * hid + f_layers * (2 * t * hid + 4 * hid * hid)
                     + hid * (f_dim + nclass))
    cost = pl.CostEstimate(flops=int(flops), transcendentals=int(t * nclass),
                           bytes_accessed=int(4 * (x.size + t * (f_dim + nclass)
                                                   + p['conv_w'].size + p['pw_w'].size)))
    return pl.pallas_call(
        functools.partial(_mstcn_kernel, f_layers=f_layers, nclass=nclass),
        out_shape=(jax.ShapeDtypeStruct((t, f_dim), jnp.float32),
                   jax.ShapeDtypeStruct((t, nclass), jnp.float32)),
        in_specs=[_VMEM] * 11,
        out_specs=(_VMEM, _VMEM),
        cost_estimate=cost,
    )(x, p['in_w'], p['in_b'], p['conv_w'], p['conv_b'],
      p['pw_w'], p['pw_b'], p['out_w'], p['out_b'], cls_w, cls_b)


_SA_KEYS = ('sa_wq', 'sa_bq', 'sa_wk', 'sa_bk', 'sa_wv', 'sa_bv', 'sa_wo', 'sa_bo',
            'ca_wq', 'ca_bq', 'ca_wk', 'ca_bk', 'ca_wv', 'ca_bv', 'ca_wo', 'ca_bo',
            'ln1_g', 'ln1_b', 'ln2_g', 'ln2_b', 'ln3_g', 'ln3_b',
            'w1', 'b1', 'w2', 'b2')


def sa_decoder_layer(tgt, mem, pos, qpos, p, *, nhead):
    m, d = tgt.shape
    t = mem.shape[0]
    ffd = p['w1'].shape[1]
    weights = tuple(p[k] for k in _SA_KEYS)
    flops = 2 * (8 * m * d * d + 2 * t * d * d + 4 * m * t * d + 2 * m * d * ffd)
    cost = pl.CostEstimate(flops=int(flops), transcendentals=int(2 * m * t),
                           bytes_accessed=int(4 * (2 * m * d + 2 * t * d
                                                   + sum(w.size for w in weights))))
    return pl.pallas_call(
        functools.partial(_sa_layer_kernel, nhead=nhead),
        out_shape=jax.ShapeDtypeStruct((m, d), jnp.float32),
        in_specs=[_VMEM] * (4 + len(weights)),
        out_specs=_VMEM,
        cost_estimate=cost,
    )(tgt, mem, pos, qpos, *weights)


def action_head(x, out_w, out_b, *, nclass):
    m, d = x.shape
    cls_w = out_w[:, d - nclass:]
    cls_b = out_b[:, d - nclass:]
    cost = pl.CostEstimate(flops=int(2 * m * d * (d + nclass)),
                           transcendentals=int(m * nclass),
                           bytes_accessed=int(4 * (2 * m * d + m * nclass + out_w.size)))
    return pl.pallas_call(
        functools.partial(_action_head_kernel, nclass=nclass),
        out_shape=(jax.ShapeDtypeStruct((m, d), jnp.float32),
                   jax.ShapeDtypeStruct((m, nclass), jnp.float32)),
        in_specs=[_VMEM] * 5,
        out_specs=(_VMEM, _VMEM),
        cost_estimate=cost,
    )(x, out_w, out_b, cls_w, cls_b)


def input_block_forward(params, frame_feature, action_feature, frame_pos, action_pos,
                        *, nclass, nhead, f_layers, a_layers):
    # B == 1: run the fused 2-D kernels on squeezed (seq, channel) matrices.
    ff2d, frame_clogit = mstcn_frame_branch(
        frame_feature[:, 0, :], params['frame_branch'],
        f_layers=f_layers, nclass=nclass)

    tgt = action_feature[:, 0, :]
    mem, pos, qpos = ff2d, frame_pos[:, 0, :], action_pos[:, 0, :]
    ab = params['action_branch']
    for l in range(a_layers):  # one fused kernel per decoder layer
        tgt = sa_decoder_layer(tgt, mem, pos, qpos, ab['layers'][l], nhead=nhead)

    af2d, action_clogit = action_head(tgt, ab['out_w'], ab['out_b'], nclass=nclass + 1)

    return (ff2d[:, None, :], af2d[:, None, :],
            frame_clogit[:, None, :], action_clogit[:, None, :])


# ------------------------------ parameter init ------------------------------

def init_params(key, in_dim, hid, f_dim, a_dim, ffdim, f_layers, a_layers):
    keys = iter(jax.random.split(key, 512))

    def w(shape, fan_in):
        return jax.random.normal(next(keys), shape, jnp.float32) / jnp.sqrt(fan_in)

    def zeros(shape):
        return jnp.zeros(shape, jnp.float32)

    def ones(shape):
        return jnp.ones(shape, jnp.float32)

    frame_branch = {
        'in_w': w((in_dim, hid), in_dim), 'in_b': zeros((1, hid)),
        # per-layer weights stacked on a leading axis -> whole branch is one kernel
        'conv_w': w((f_layers, 3, hid, hid), 3 * hid),
        'conv_b': zeros((f_layers, 1, hid)),
        'pw_w': w((f_layers, hid, hid), hid),
        'pw_b': zeros((f_layers, 1, hid)),
        'out_w': w((hid, f_dim), hid), 'out_b': zeros((1, f_dim)),
    }

    def decoder_layer(d, ffd):
        p = {}
        for prefix in ('sa', 'ca'):
            for nm in ('q', 'k', 'v', 'o'):
                p[f'{prefix}_w{nm}'] = w((d, d), d)
                p[f'{prefix}_b{nm}'] = zeros((1, d))
        for i in (1, 2, 3):
            p[f'ln{i}_g'] = ones((1, d))
            p[f'ln{i}_b'] = zeros((1, d))
        p['w1'] = w((d, ffd), d)
        p['b1'] = zeros((1, ffd))
        p['w2'] = w((ffd, d), ffd)
        p['b2'] = zeros((1, d))
        return p

    action_branch = {
        'layers': [decoder_layer(a_dim, ffdim) for _ in range(a_layers)],
        'out_w': w((a_dim, a_dim), a_dim), 'out_b': zeros((1, a_dim)),
    }
    return {'frame_branch': frame_branch, 'action_branch': action_branch}


# ----------------------------------- main -----------------------------------

if __name__ == "__main__":
    # small shapes consistent with the module
    T, M, B = 16, 8, 1
    in_dim, hid, f_dim, a_dim, ffdim = 16, 32, 32, 32, 64
    nclass, nhead, f_layers, a_layers = 8, 4, 2, 1

    key = jax.random.PRNGKey(0)
    k1, k2, k3, k4, kp = jax.random.split(key, 5)
    frame_feature = jax.random.normal(k1, (T, B, in_dim), jnp.float32)
    action_feature = jax.random.normal(k2, (M, B, a_dim), jnp.float32)
    frame_pos = jax.random.normal(k3, (T, B, f_dim), jnp.float32)
    action_pos = jax.random.normal(k4, (M, B, a_dim), jnp.float32)

    params = init_params(kp, in_dim, hid, f_dim, a_dim, ffdim, f_layers, a_layers)

    fwd = jax.jit(functools.partial(input_block_forward, nclass=nclass, nhead=nhead,
                                    f_layers=f_layers, a_layers=a_layers))

    ff, af, frame_clogit, action_clogit = fwd(
        params, frame_feature, action_feature, frame_pos, action_pos)
    jax.block_until_ready((ff, af, frame_clogit, action_clogit))

    assert ff.shape == (T, B, f_dim)
    assert af.shape == (M, B, a_dim)
    assert frame_clogit.shape == (T, B, nclass)
    assert action_clogit.shape == (M, B, nclass + 1)
    assert bool(jnp.all(jnp.isfinite(ff))) and bool(jnp.all(jnp.isfinite(af)))
    assert bool(jnp.all(jnp.isfinite(frame_clogit)))
    assert bool(jnp.all(jnp.isfinite(action_clogit)))
    # softmax'd class-prob slice of each feature must sum to 1
    assert bool(jnp.allclose(jnp.sum(ff[:, :, -nclass:], axis=-1), 1.0, atol=1e-5))
    assert bool(jnp.allclose(jnp.sum(af[:, :, -(nclass + 1):], axis=-1), 1.0, atol=1e-5))

    print("KERNEL_OK")
</pallas_src>

<mosaic_0001>
module attributes {stable_mosaic.version = 11 : i64} {
  func.func @_mstcn_kernel(%arg0: memref<16x16xf32, #tpu.memory_space<vmem>>, %arg1: memref<16x32xf32, #tpu.memory_space<vmem>>, %arg2: memref<1x32xf32, #tpu.memory_space<vmem>>, %arg3: memref<2x3x32x32xf32, #tpu.memory_space<vmem>>, %arg4: memref<2x1x32xf32, #tpu.memory_space<vmem>>, %arg5: memref<2x32x32xf32, #tpu.memory_space<vmem>>, %arg6: memref<2x1x32xf32, #tpu.memory_space<vmem>>, %arg7: memref<32x32xf32, #tpu.memory_space<vmem>>, %arg8: memref<1x32xf32, #tpu.memory_space<vmem>>, %arg9: memref<32x8xf32, #tpu.memory_space<vmem>>, %arg10: memref<1x8xf32, #tpu.memory_space<vmem>>, %arg11: memref<16x32xf32, #tpu.memory_space<vmem>>, %arg12: memref<16x8xf32, #tpu.memory_space<vmem>>) attributes {dimension_semantics = [], scalar_prefetch = 0 : i64, scratch_operands = 0 : i64, tpu.core_type = #tpu.core_type<tc>} {
    %c0 = arith.constant 0 : index
    %c0_0 = arith.constant 0 : index
    %0 = vector.load %arg0[%c0, %c0_0] : memref<16x16xf32, #tpu.memory_space<vmem>>, vector<16x16xf32>
    %c0_1 = arith.constant 0 : index
    %c0_2 = arith.constant 0 : index
    %1 = vector.load %arg1[%c0_1, %c0_2] : memref<16x32xf32, #tpu.memory_space<vmem>>, vector<16x32xf32>
    %cst = arith.constant dense<0.000000e+00> : vector<16x32xf32>
    %2 = tpu.matmul %0, %1, %cst {dimension_numbers = #tpu.dot_dimension_numbers<[1], [0], [0], [1], [0, 0, 1, 1], [], []>} : vector<16x16xf32>, vector<16x32xf32>, vector<16x32xf32> -> vector<16x32xf32>
    %c0_3 = arith.constant 0 : index
    %c0_4 = arith.constant 0 : index
    %3 = vector.load %arg2[%c0_3, %c0_4] : memref<1x32xf32, #tpu.memory_space<vmem>>, vector<1x32xf32>
    %4 = vector.broadcast %3 : vector<1x32xf32> to vector<16x32xf32>
    %5 = arith.addf %2, %4 : vector<16x32xf32>
    %6 = tpu.iota {dimensions = array<i32: 0>} : vector<16x16xi32>
    %7 = tpu.iota {dimensions = array<i32: 1>} : vector<16x16xi32>
    %c1_i32 = arith.constant 1 : i32
    %8 = vector.broadcast %c1_i32 : i32 to vector<16x16xi32>
    %9 = arith.subi %6, %8 : vector<16x16xi32>
    %10 = arith.cmpi eq, %7, %9 : vector<16x16xi32>
    %cst_5 = arith.constant 1.000000e+00 : f32
    %cst_6 = arith.constant 0.000000e+00 : f32
    %11 = vector.broadcast %cst_5 : f32 to vector<16x16xf32>
    %12 = vector.broadcast %cst_6 : f32 to vector<16x16xf32>
    %13 = arith.select %10, %11, %12 : vector<16x16xi1>, vector<16x16xf32>
    %c1_i32_7 = arith.constant 1 : i32
    %14 = vector.broadcast %c1_i32_7 : i32 to vector<16x16xi32>
    %15 = arith.addi %6, %14 : vector<16x16xi32>
    %16 = arith.cmpi eq, %7, %15 : vector<16x16xi32>
    %cst_8 = arith.constant 1.000000e+00 : f32
    %cst_9 = arith.constant 0.000000e+00 : f32
    %17 = vector.broadcast %cst_8 : f32 to vector<16x16xf32>
    %18 = vector.broadcast %cst_9 : f32 to vector<16x16xf32>
    %19 = arith.select %16, %17, %18 : vector<16x16xi1>, vector<16x16xf32>
    %cst_10 = arith.constant dense<0.000000e+00> : vector<16x32xf32>
    %20 = tpu.matmul %13, %5, %cst_10 {dimension_numbers = #tpu.dot_dimension_numbers<[1], [0], [0], [1], [0, 0, 1, 1], [], []>} : vector<16x16xf32>, vector<16x32xf32>, vector<16x32xf32> -> vector<16x32xf32>
    %cst_11 = arith.constant dense<0.000000e+00> : vector<16x32xf32>
    %21 = tpu.matmul %19, %5, %cst_11 {dimension_numbers = #tpu.dot_dimension_numbers<[1], [0], [0], [1], [0, 0, 1, 1], [], []>} : vector<16x16xf32>, vector<16x32xf32>, vector<16x32xf32> -> vector<16x32xf32>
    %c0_12 = arith.constant 0 : index
    %c0_13 = arith.constant 0 : index
    %c0_14 = arith.constant 0 : index
    %c0_15 = arith.constant 0 : index
    %22 = vector.load %arg3[%c0_12, %c0_13, %c0_14, %c0_15] : memref<2x3x32x32xf32, #tpu.memory_space<vmem>>, vector<1x3x32x32xf32>
    %23 = vector.shape_cast %22 : vector<1x3x32x32xf32> to vector<3x32x32xf32>
    %24 = vector.extract_strided_slice %23 {offsets = [0, 0, 0], sizes = [1, 32, 32], strides = [1, 1, 1]} : vector<3x32x32xf32> to vector<1x32x32xf32>
    %25 = vector.shape_cast %24 : vector<1x32x32xf32> to vector<32x32xf32>
    %cst_16 = arith.constant dense<0.000000e+00> : vector<16x32xf32>
    %26 = tpu.matmul %20, %25, %cst_16 {dimension_numbers = #tpu.dot_dimension_numbers<[1], [0], [0], [1], [0, 0, 1, 1], [], []>} : vector<16x32xf32>, vector<32x32xf32>, vector<16x32xf32> -> vector<16x32xf32>
    %27 = vector.extract_strided_slice %23 {offsets = [1, 0, 0], sizes = [1, 32, 32], strides = [1, 1, 1]} : vector<3x32x32xf32> to vector<1x32x32xf32>
    %28 = vector.shape_cast %27 : vector<1x32x32xf32> to vector<32x32xf32>
    %cst_17 = arith.constant dense<0.000000e+00> : vector<16x32xf32>
    %29 = tpu.matmul %5, %28, %cst_17 {dimension_numbers = #tpu.dot_dimension_numbers<[1], [0], [0], [1], [0, 0, 1, 1], [], []>} : vector<16x32xf32>, vector<32x32xf32>, vector<16x32xf32> -> vector<16x32xf32>
    %30 = arith.addf %26, %29 : vector<16x32xf32>
    %31 = vector.extract_strided_slice %23 {offsets = [2, 0, 0], sizes = [1, 32, 32], strides = [1, 1, 1]} : vector<3x32x32xf32> to vector<1x32x32xf32>
    %32 = vector.shape_cast %31 : vector<1x32x32xf32> to vector<32x32xf32>
    %cst_18 = arith.constant dense<0.000000e+00> : vector<16x32xf32>
    %33 = tpu.matmul %21, %32, %cst_18 {dimension_numbers = #tpu.dot_dimension_numbers<[1], [0], [0], [1], [0, 0, 1, 1], [], []>} : vector<16x32xf32>, vector<32x32xf32>, vector<16x32xf32> -> vector<16x32xf32>
    %34 = arith.addf %30, %33 : vector<16x32xf32>
    %c0_19 = arith.constant 0 : index
    %c0_20 = arith.constant 0 : index
    %c0_21 = arith.constant 0 : index
    %35 = vector.load %arg4[%c0_19, %c0_20, %c0_21] : memref<2x1x32xf32, #tpu.memory_space<vmem>>, vector<1x1x32xf32>
    %36 = vector.shape_cast %35 : vector<1x1x32xf32> to vector<1x32xf32>
    %37 = vector.broadcast %36 : vector<1x32xf32> to vector<16x32xf32>
    %38 = arith.addf %34, %37 : vector<16x32xf32>
    %cst_22 = arith.constant 0.000000e+00 : f32
    %39 = vector.broadcast %cst_22 : f32 to vector<16x32xf32>
    %40 = arith.maximumf %38, %39 : vector<16x32xf32>
    %c0_23 = arith.constant 0 : index
    %c0_24 = arith.constant 0 : index
    %c0_25 = arith.constant 0 : index
    %41 = vector.load %arg5[%c0_23, %c0_24, %c0_25] : memref<2x32x32xf32, #tpu.memory_space<vmem>>, vector<1x32x32xf32>
    %42 = vector.shape_cast %41 : vector<1x32x32xf32> to vector<32x32xf32>
    %cst_26 = arith.constant dense<0.000000e+00> : vector<16x32xf32>
    %43 = tpu.matmul %40, %42, %cst_26 {dimension_numbers = #tpu.dot_dimension_numbers<[1], [0], [0], [1], [0, 0, 1, 1], [], []>} : vector<16x32xf32>, vector<32x32xf32>, vector<16x32xf32> -> vector<16x32xf32>
    %c0_27 = arith.constant 0 : index
    %c0_28 = arith.constant 0 : index
    %c0_29 = arith.constant 0 : index
    %44 = vector.load %arg6[%c0_27, %c0_28, %c0_29] : memref<2x1x32xf32, #tpu.memory_space<vmem>>, vector<1x1x32xf32>
    %45 = vector.shape_cast %44 : vector<1x1x32xf32> to vector<1x32xf32>
    %46 = vector.broadcast %45 : vector<1x32xf32> to vector<16x32xf32>
    %47 = arith.addf %43, %46 : vector<16x32xf32>
    %48 = arith.addf %5, %47 : vector<16x32xf32>
    %c2_i32 = arith.constant 2 : i32
    %49 = vector.broadcast %c2_i32 : i32 to vector<16x16xi32>
    %50 = arith.subi %6, %49 : vector<16x16xi32>
    %51 = arith.cmpi eq, %7, %50 : vector<16x16xi32>
    %cst_30 = arith.constant 1.000000e+00 : f32
    %cst_31 = arith.constant 0.000000e+00 : f32
    %52 = vector.broadcast %cst_30 : f32 to vector<16x16xf32>
    %53 = vector.broadcast %cst_31 : f32 to vector<16x16xf32>
    %54 = arith.select %51, %52, %53 : vector<16x16xi1>, vector<16x16xf32>
    %c2_i32_32 = arith.constant 2 : i32
    %55 = vector.broadcast %c2_i32_32 : i32 to vector<16x16xi32>
    %56 = arith.addi %6, %55 : vector<16x16xi32>
    %57 = arith.cmpi eq, %7, %56 : vector<16x16xi32>
    %cst_33 = arith.constant 1.000000e+00 : f32
    %cst_34 = arith.constant 0.000000e+00 : f32
    %58 = vector.broadcast %cst_33 : f32 to vector<16x16xf32>
    %59 = vector.broadcast %cst_34 : f32 to vector<16x16xf32>
    %60 = arith.select %57, %58, %59 : vector<16x16xi1>, vector<16x16xf32>
    %cst_35 = arith.constant dense<0.000000e+00> : vector<16x32xf32>
    %61 = tpu.matmul %54, %48, %cst_35 {dimension_numbers = #tpu.dot_dimension_numbers<[1], [0], [0], [1], [0, 0, 1, 1], [], []>} : vector<16x16xf32>, vector<16x32xf32>, vector<16x32xf32> -> vector<16x32xf32>
    %cst_36 = arith.constant dense<0.000000e+00> : vector<16x32xf32>
    %62 = tpu.matmul %60, %48, %cst_36 {dimension_numbers = #tpu.dot_dimension_numbers<[1], [0], [0], [1], [0, 0, 1, 1], [], []>} : vector<16x16xf32>, vector<16x32xf32>, vector<16x32xf32> -> vector<16x32xf32>
    %c1 = arith.constant 1 : index
    %c0_37 = arith.constant 0 : index
    %c0_38 = arith.constant 0 : index
    %c0_39 = arith.constant 0 : index
    %63 = vector.load %arg3[%c1, %c0_37, %c0_38, %c0_39] : memref<2x3x32x32xf32, #tpu.memory_space<vmem>>, vector<1x3x32x32xf32>
    %64 = vector.shape_cast %63 : vector<1x3x32x32xf32> to vector<3x32x32xf32>
    %65 = vector.extract_strided_slice %64 {offsets = [0, 0, 0], sizes = [1, 32, 32], strides = [1, 1, 1]} : vector<3x32x32xf32> to vector<1x32x32xf32>
    %66 = vector.shape_cast %65 : vector<1x32x32xf32> to vector<32x32xf32>
    %cst_40 = arith.constant dense<0.000000e+00> : vector<16x32xf32>
    %67 = tpu.matmul %61, %66, %cst_40 {dimension_numbers = #tpu.dot_dimension_numbers<[1], [0], [0], [1], [0, 0, 1, 1], [], []>} : vector<16x32xf32>, vector<32x32xf32>, vector<16x32xf32> -> vector<16x32xf32>
    %68 = vector.extract_strided_slice %64 {offsets = [1, 0, 0], sizes = [1, 32, 32], strides = [1, 1, 1]} : vector<3x32x32xf32> to vector<1x32x32xf32>
    %69 = vector.shape_cast %68 : vector<1x32x32xf32> to vector<32x32xf32>
    %cst_41 = arith.constant dense<0.000000e+00> : vector<16x32xf32>
    %70 = tpu.matmul %48, %69, %cst_41 {dimension_numbers = #tpu.dot_dimension_numbers<[1], [0], [0], [1], [0, 0, 1, 1], [], []>} : vector<16x32xf32>, vector<32x32xf32>, vector<16x32xf32> -> vector<16x32xf32>
    %71 = arith.addf %67, %70 : vector<16x32xf32>
    %72 = vector.extract_strided_slice %64 {offsets = [2, 0, 0], sizes = [1, 32, 32], strides = [1, 1, 1]} : vector<3x32x32xf32> to vector<1x32x32xf32>
    %73 = vector.shape_cast %72 : vector<1x32x32xf32> to vector<32x32xf32>
    %cst_42 = arith.constant dense<0.000000e+00> : vector<16x32xf32>
    %74 = tpu.matmul %62, %73, %cst_42 {dimension_numbers = #tpu.dot_dimension_numbers<[1], [0], [0], [1], [0, 0, 1, 1], [], []>} : vector<16x32xf32>, vector<32x32xf32>, vector<16x32xf32> -> vector<16x32xf32>
    %75 = arith.addf %71, %74 : vector<16x32xf32>
    %c1_43 = arith.constant 1 : index
    %c0_44 = arith.constant 0 : index
    %c0_45 = arith.constant 0 : index
    %76 = vector.load %arg4[%c1_43, %c0_44, %c0_45] : memref<2x1x32xf32, #tpu.memory_space<vmem>>, vector<1x1x32xf32>
    %77 = vector.shape_cast %76 : vector<1x1x32xf32> to vector<1x32xf32>
    %78 = vector.broadcast %77 : vector<1x32xf32> to vector<16x32xf32>
    %79 = arith.addf %75, %78 : vector<16x32xf32>
    %cst_46 = arith.constant 0.000000e+00 : f32
    %80 = vector.broadcast %cst_46 : f32 to vector<16x32xf32>
    %81 = arith.maximumf %79, %80 : vector<16x32xf32>
    %c1_47 = arith.constant 1 : index
    %c0_48 = arith.constant 0 : index
    %c0_49 = arith.constant 0 : index
    %82 = vector.load %arg5[%c1_47, %c0_48, %c0_49] : memref<2x32x32xf32, #tpu.memory_space<vmem>>, vector<1x32x32xf32>
    %83 = vector.shape_cast %82 : vector<1x32x32xf32> to vector<32x32xf32>
    %cst_50 = arith.constant dense<0.000000e+00> : vector<16x32xf32>
    %84 = tpu.matmul %81, %83, %cst_50 {dimension_numbers = #tpu.dot_dimension_numbers<[1], [0], [0], [1], [0, 0, 1, 1], [], []>} : vector<16x32xf32>, vector<32x32xf32>, vector<16x32xf32> -> vector<16x32xf32>
    %c1_51 = arith.constant 1 : index
    %c0_52 = arith.constant 0 : index
    %c0_53 = arith.constant 0 : index
    %85 = vector.load %arg6[%c1_51, %c0_52, %c0_53] : memref<2x1x32xf32, #tpu.memory_space<vmem>>, vector<1x1x32xf32>
    %86 = vector.shape_cast %85 : vector<1x1x32xf32> to vector<1x32xf32>
    %87 = vector.broadcast %86 : vector<1x32xf32> to vector<16x32xf32>
    %88 = arith.addf %84, %87 : vector<16x32xf32>
    %89 = arith.addf %48, %88 : vector<16x32xf32>
    %c0_54 = arith.constant 0 : index
    %c0_55 = arith.constant 0 : index
    %90 = vector.load %arg7[%c0_54, %c0_55] : memref<32x32xf32, #tpu.memory_space<vmem>>, vector<32x32xf32>
    %cst_56 = arith.constant dense<0.000000e+00> : vector<16x32xf32>
    %91 = tpu.matmul %89, %90, %cst_56 {dimension_numbers = #tpu.dot_dimension_numbers<[1], [0], [0], [1], [0, 0, 1, 1], [], []>} : vector<16x32xf32>, vector<32x32xf32>, vector<16x32xf32> -> vector<16x32xf32>
    %c0_57 = arith.constant 0 : index
    %c0_58 = arith.constant 0 : index
    %92 = vector.load %arg8[%c0_57, %c0_58] : memref<1x32xf32, #tpu.memory_space<vmem>>, vector<1x32xf32>
    %93 = vector.broadcast %92 : vector<1x32xf32> to vector<16x32xf32>
    %94 = arith.addf %91, %93 : vector<16x32xf32>
    %95 = tpu.iota {dimensions = array<i32: 1>} : vector<16x32xi32>
    %c24_i32 = arith.constant 24 : i32
    %96 = vector.broadcast %c24_i32 : i32 to vector<16x32xi32>
    %97 = arith.cmpi sge, %95, %96 : vector<16x32xi32>
    %cst_59 = arith.constant -1.000000e+30 : f32
    %98 = vector.broadcast %cst_59 : f32 to vector<16x32xf32>
    %99 = arith.select %97, %94, %98 : vector<16x32xi1>, vector<16x32xf32>
    %cst_60 = arith.constant dense<0xFF800000> : vector<16xf32>
    %100 = vector.multi_reduction <maximumf>, %99, %cst_60 [1] : vector<16x32xf32> to vector<16xf32>
    %101 = vector.shape_cast %100 : vector<16xf32> to vector<16x1xf32>
    %102 = vector.broadcast %101 : vector<16x1xf32> to vector<16x32xf32>
    %103 = arith.subf %94, %102 : vector<16x32xf32>
    %104 = math.exp %103 : vector<16x32xf32>
    %cst_61 = arith.constant 0.000000e+00 : f32
    %105 = vector.broadcast %cst_61 : f32 to vector<16x32xf32>
    %106 = arith.select %97, %104, %105 : vector<16x32xi1>, vector<16x32xf32>
    %cst_62 = arith.constant dense<0.000000e+00> : vector<16xf32>
    %107 = vector.multi_reduction <add>, %106, %cst_62 [1] : vector<16x32xf32> to vector<16xf32>
    %108 = vector.shape_cast %107 : vector<16xf32> to vector<16x1xf32>
    %109 = vector.broadcast %108 : vector<16x1xf32> to vector<16x32xf32>
    %110 = arith.divf %106, %109 : vector<16x32xf32>
    %111 = arith.select %97, %110, %94 : vector<16x32xi1>, vector<16x32xf32>
    %c0_63 = arith.constant 0 : index
    %c0_64 = arith.constant 0 : index
    %112 = vector.load %arg11[%c0_63, %c0_64] : memref<16x32xf32, #tpu.memory_space<vmem>>, vector<16x32xf32>
    tpu.vector_store %arg11[%c0_63, %c0_64], %111 {strides = array<i32>} : memref<16x32xf32, #tpu.memory_space<vmem>>, vector<16x32xf32>,
    %c0_65 = arith.constant 0 : index
    %c0_66 = arith.constant 0 : index
    %113 = vector.load %arg9[%c0_65, %c0_66] : memref<32x8xf32, #tpu.memory_space<vmem>>, vector<32x8xf32>
    %cst_67 = arith.constant dense<0.000000e+00> : vector<16x8xf32>
    %114 = tpu.matmul %89, %113, %cst_67 {dimension_numbers = #tpu.dot_dimension_numbers<[1], [0], [0], [1], [0, 0, 1, 1], [], []>} : vector<16x32xf32>, vector<32x8xf32>, vector<16x8xf32> -> vector<16x8xf32>
    %c0_68 = arith.constant 0 : index
    %c0_69 = arith.constant 0 : index
    %115 = vector.load %arg10[%c0_68, %c0_69] : memref<1x8xf32, #tpu.memory_space<vmem>>, vector<1x8xf32>
    %116 = vector.broadcast %115 : vector<1x8xf32> to vector<16x8xf32>
    %117 = arith.addf %114, %116 : vector<16x8xf32>
    %c0_70 = arith.constant 0 : index
    %c0_71 = arith.constant 0 : index
    %118 = vector.load %arg12[%c0_70, %c0_71] : memref<16x8xf32, #tpu.memory_space<vmem>>, vector<16x8xf32>
    tpu.vector_store %arg12[%c0_70, %c0_71], %117 {strides = array<i32>} : memref<16x8xf32, #tpu.memory_space<vmem>>, vector<16x8xf32>,
    return
  }
}

module attributes {stable_mosaic.version = 11 : i64} {
  func.func @_action_head_kernel(%arg0: memref<8x32xf32, #tpu.memory_space<vmem>>, %arg1: memref<32x32xf32, #tpu.memory_space<vmem>>, %arg2: memref<1x32xf32, #tpu.memory_space<vmem>>, %arg3: memref<32x9xf32, #tpu.memory_space<vmem>>, %arg4: memref<1x9xf32, #tpu.memory_space<vmem>>, %arg5: memref<8x32xf32, #tpu.memory_space<vmem>>, %arg6: memref<8x9xf32, #tpu.memory_space<vmem>>) attributes {dimension_semantics = [], scalar_prefetch = 0 : i64, scratch_operands = 0 : i64, tpu.core_type = #tpu.core_type<tc>} {
    %c0 = arith.constant 0 : index
    %c0_0 = arith.constant 0 : index
    %0 = vector.load %arg0[%c0, %c0_0] : memref<8x32xf32, #tpu.memory_space<vmem>>, vector<8x32xf32>
    %c0_1 = arith.constant 0 : index
    %c0_2 = arith.constant 0 : index
    %1 = vector.load %arg1[%c0_1, %c0_2] : memref<32x32xf32, #tpu.memory_space<vmem>>, vector<32x32xf32>
    %cst = arith.constant dense<0.000000e+00> : vector<8x32xf32>
    %2 = tpu.matmul %0, %1, %cst {dimension_numbers = #tpu.dot_dimension_numbers<[1], [0], [0], [1], [0, 0, 1, 1], [], []>} : vector<8x32xf32>, vector<32x32xf32>, vector<8x32xf32> -> vector<8x32xf32>
    %c0_3 = arith.constant 0 : index
    %c0_4 = arith.constant 0 : index
    %3 = vector.load %arg2[%c0_3, %c0_4] : memref<1x32xf32, #tpu.memory_space<vmem>>, vector<1x32xf32>
    %4 = vector.broadcast %3 : vector<1x32xf32> to vector<8x32xf32>
    %5 = arith.addf %2, %4 : vector<8x32xf32>
    %6 = tpu.iota {dimensions = array<i32: 1>} : vector<8x32xi32>
    %c23_i32 = arith.constant 23 : i32
    %7 = vector.broadcast %c23_i32 : i32 to vector<8x32xi32>
    %8 = arith.cmpi sge, %6, %7 : vector<8x32xi32>
    %cst_5 = arith.constant -1.000000e+30 : f32
    %9 = vector.broadcast %cst_5 : f32 to vector<8x32xf32>
    %10 = arith.select %8, %5, %9 : vector<8x32xi1>, vector<8x32xf32>
    %cst_6 = arith.constant dense<0xFF800000> : vector<8xf32>
    %11 = vector.multi_reduction <maximumf>, %10, %cst_6 [1] : vector<8x32xf32> to vector<8xf32>
    %12 = vector.shape_cast %11 : vector<8xf32> to vector<8x1xf32>
    %13 = vector.broadcast %12 : vector<8x1xf32> to vector<8x32xf32>
    %14 = arith.subf %5, %13 : vector<8x32xf32>
    %15 = math.exp %14 : vector<8x32xf32>
    %cst_7 = arith.constant 0.000000e+00 : f32
    %16 = vector.broadcast %cst_7 : f32 to vector<8x32xf32>
    %17 = arith.select %8, %15, %16 : vector<8x32xi1>, vector<8x32xf32>
    %cst_8 = arith.constant dense<0.000000e+00> : vector<8xf32>
    %18 = vector.multi_reduction <add>, %17, %cst_8 [1] : vector<8x32xf32> to vector<8xf32>
    %19 = vector.shape_cast %18 : vector<8xf32> to vector<8x1xf32>
    %20 = vector.broadcast %19 : vector<8x1xf32> to vector<8x32xf32>
    %21 = arith.divf %17, %20 : vector<8x32xf32>
    %22 = arith.select %8, %21, %5 : vector<8x32xi1>, vector<8x32xf32>
    %c0_9 = arith.constant 0 : index
    %c0_10 = arith.constant 0 : index
    %23 = vector.load %arg5[%c0_9, %c0_10] : memref<8x32xf32, #tpu.memory_space<vmem>>, vector<8x32xf32>
    tpu.vector_store %arg5[%c0_9, %c0_10], %22 {strides = array<i32>} : memref<8x32xf32, #tpu.memory_space<vmem>>, vector<8x32xf32>,
    %c0_11 = arith.constant 0 : index
    %c0_12 = arith.constant 0 : index
    %24 = vector.load %arg3[%c0_11, %c0_12] : memref<32x9xf32, #tpu.memory_space<vmem>>, vector<32x9xf32>
    %cst_13 = arith.constant dense<0.000000e+00> : vector<8x9xf32>
    %25 = tpu.matmul %0, %24, %cst_13 {dimension_numbers = #tpu.dot_dimension_numbers<[1], [0], [0], [1], [0, 0, 1, 1], [], []>} : vector<8x32xf32>, vector<32x9xf32>, vector<8x9xf32> -> vector<8x9xf32>
    %c0_14 = arith.constant 0 : index
    %c0_15 = arith.constant 0 : index
    %26 = vector.load %arg4[%c0_14, %c0_15] : memref<1x9xf32, #tpu.memory_space<vmem>>, vector<1x9xf32>
    %27 = vector.broadcast %26 : vector<1x9xf32> to vector<8x9xf32>
    %28 = arith.addf %25, %27 : vector<8x9xf32>
    %c0_16 = arith.constant 0 : index
    %c0_17 = arith.constant 0 : index
    %29 = vector.load %arg6[%c0_16, %c0_17] : memref<8x9xf32, #tpu.memory_space<vmem>>, vector<8x9xf32>
    tpu.vector_store %arg6[%c0_16, %c0_17], %28 {strides = array<i32>} : memref<8x9xf32, #tpu.memory_space<vmem>>, vector<8x9xf32>,
    return
  }
}

module attributes {stable_mosaic.version = 11 : i64} {
  func.func @_sa_layer_kernel(%arg0: memref<8x32xf32, #tpu.memory_space<vmem>>, %arg1: memref<16x32xf32, #tpu.memory_space<vmem>>, %arg2: memref<16x32xf32, #tpu.memory_space<vmem>>, %arg3: memref<8x32xf32, #tpu.memory_space<vmem>>, %arg4: memref<32x32xf32, #tpu.memory_space<vmem>>, %arg5: memref<1x32xf32, #tpu.memory_space<vmem>>, %arg6: memref<32x32xf32, #tpu.memory_space<vmem>>, %arg7: memref<1x32xf32, #tpu.memory_space<vmem>>, %arg8: memref<32x32xf32, #tpu.memory_space<vmem>>, %arg9: memref<1x32xf32, #tpu.memory_space<vmem>>, %arg10: memref<32x32xf32, #tpu.memory_space<vmem>>, %arg11: memref<1x32xf32, #tpu.memory_space<vmem>>, %arg12: memref<32x32xf32, #tpu.memory_space<vmem>>, %arg13: memref<1x32xf32, #tpu.memory_space<vmem>>, %arg14: memref<32x32xf32, #tpu.memory_space<vmem>>, %arg15: memref<1x32xf32, #tpu.memory_space<vmem>>, %arg16: memref<32x32xf32, #tpu.memory_space<vmem>>, %arg17: memref<1x32xf32, #tpu.memory_space<vmem>>, %arg18: memref<32x32xf32, #tpu.memory_space<vmem>>, %arg19: memref<1x32xf32, #tpu.memory_space<vmem>>, %arg20: memref<1x32xf32, #tpu.memory_space<vmem>>, %arg21: memref<1x32xf32, #tpu.memory_space<vmem>>, %arg22: memref<1x32xf32, #tpu.memory_space<vmem>>, %arg23: memref<1x32xf32, #tpu.memory_space<vmem>>, %arg24: memref<1x32xf32, #tpu.memory_space<vmem>>, %arg25: memref<1x32xf32, #tpu.memory_space<vmem>>, %arg26: memref<32x64xf32, #tpu.memory_space<vmem>>, %arg27: memref<1x64xf32, #tpu.memory_space<vmem>>, %arg28: memref<64x32xf32, #tpu.memory_space<vmem>>, %arg29: memref<1x32xf32, #tpu.memory_space<vmem>>, %arg30: memref<8x32xf32, #tpu.memory_space<vmem>>) attributes {dimension_semantics = [], scalar_prefetch = 0 : i64, scratch_operands = 0 : i64, tpu.core_type = #tpu.core_type<tc>} {
    %c0 = arith.constant 0 : index
    %c0_0 = arith.constant 0 : index
    %0 = vector.load %arg0[%c0, %c0_0] : memref<8x32xf32, #tpu.memory_space<vmem>>, vector<8x32xf32>
    %c0_1 = arith.constant 0 : index
    %c0_2 = arith.constant 0 : index
    %1 = vector.load %arg1[%c0_1, %c0_2] : memref<16x32xf32, #tpu.memory_space<vmem>>, vector<16x32xf32>
    %c0_3 = arith.constant 0 : index
    %c0_4 = arith.constant 0 : index
    %2 = vector.load %arg2[%c0_3, %c0_4] : memref<16x32xf32, #tpu.memory_space<vmem>>, vector<16x32xf32>
    %c0_5 = arith.constant 0 : index
    %c0_6 = arith.constant 0 : index
    %3 = vector.load %arg3[%c0_5, %c0_6] : memref<8x32xf32, #tpu.memory_space<vmem>>, vector<8x32xf32>
    %4 = arith.addf %0, %3 : vector<8x32xf32>
    %c0_7 = arith.constant 0 : index
    %c0_8 = arith.constant 0 : index
    %5 = vector.load %arg4[%c0_7, %c0_8] : memref<32x32xf32, #tpu.memory_space<vmem>>, vector<32x32xf32>
    %cst = arith.constant dense<0.000000e+00> : vector<8x32xf32>
    %6 = tpu.matmul %4, %5, %cst {dimension_numbers = #tpu.dot_dimension_numbers<[1], [0], [0], [1], [0, 0, 1, 1], [], []>} : vector<8x32xf32>, vector<32x32xf32>, vector<8x32xf32> -> vector<8x32xf32>
    %c0_9 = arith.constant 0 : index
    %c0_10 = arith.constant 0 : index
    %7 = vector.load %arg5[%c0_9, %c0_10] : memref<1x32xf32, #tpu.memory_space<vmem>>, vector<1x32xf32>
    %8 = vector.broadcast %7 : vector<1x32xf32> to vector<8x32xf32>
    %9 = arith.addf %6, %8 : vector<8x32xf32>
    %c0_11 = arith.constant 0 : index
    %c0_12 = arith.constant 0 : index
    %10 = vector.load %arg6[%c0_11, %c0_12] : memref<32x32xf32, #tpu.memory_space<vmem>>, vector<32x32xf32>
    %cst_13 = arith.constant dense<0.000000e+00> : vector<8x32xf32>
    %11 = tpu.matmul %4, %10, %cst_13 {dimension_numbers = #tpu.dot_dimension_numbers<[1], [0], [0], [1], [0, 0, 1, 1], [], []>} : vector<8x32xf32>, vector<32x32xf32>, vector<8x32xf32> -> vector<8x32xf32>
    %c0_14 = arith.constant 0 : index
    %c0_15 = arith.constant 0 : index
    %12 = vector.load %arg7[%c0_14, %c0_15] : memref<1x32xf32, #tpu.memory_space<vmem>>, vector<1x32xf32>
    %13 = vector.broadcast %12 : vector<1x32xf32> to vector<8x32xf32>
    %14 = arith.addf %11, %13 : vector<8x32xf32>
    %c0_16 = arith.constant 0 : index
    %c0_17 = arith.constant 0 : index
    %15 = vector.load %arg8[%c0_16, %c0_17] : memref<32x32xf32, #tpu.memory_space<vmem>>, vector<32x32xf32>
    %cst_18 = arith.constant dense<0.000000e+00> : vector<8x32xf32>
    %16 = tpu.matmul %0, %15, %cst_18 {dimension_numbers = #tpu.dot_dimension_numbers<[1], [0], [0], [1], [0, 0, 1, 1], [], []>} : vector<8x32xf32>, vector<32x32xf32>, vector<8x32xf32> -> vector<8x32xf32>
    %c0_19 = arith.constant 0 : index
    %c0_20 = arith.constant 0 : index
    %17 = vector.load %arg9[%c0_19, %c0_20] : memref<1x32xf32, #tpu.memory_space<vmem>>, vector<1x32xf32>
    %18 = vector.broadcast %17 : vector<1x32xf32> to vector<8x32xf32>
    %19 = arith.addf %16, %18 : vector<8x32xf32>
    %20 = tpu.iota {dimensions = array<i32: 1>} : vector<1x32xi32>
    %cst_21 = arith.constant 0.000000e+00 : f32
    %21 = vector.broadcast %cst_21 : f32 to vector<8x32xf32>
    %c0_i32 = arith.constant 0 : i32
    %22 = vector.broadcast %c0_i32 : i32 to vector<1x32xi32>
    %23 = arith.cmpi sge, %20, %22 : vector<1x32xi32>
    %c8_i32 = arith.constant 8 : i32
    %24 = vector.broadcast %c8_i32 : i32 to vector<1x32xi32>
    %25 = arith.cmpi slt, %20, %24 : vector<1x32xi32>
    %26 = arith.andi %23, %25 : vector<1x32xi1>
    %cst_22 = arith.constant 1.000000e+00 : f32
    %cst_23 = arith.constant 0.000000e+00 : f32
    %27 = vector.broadcast %cst_22 : f32 to vector<1x32xf32>
    %28 = vector.broadcast %cst_23 : f32 to vector<1x32xf32>
    %29 = arith.select %26, %27, %28 : vector<1x32xi1>, vector<1x32xf32>
    %30 = vector.broadcast %29 : vector<1x32xf32> to vector<8x32xf32>
    %31 = arith.mulf %9, %30 : vector<8x32xf32>
    %32 = vector.broadcast %29 : vector<1x32xf32> to vector<8x32xf32>
    %33 = arith.mulf %14, %32 : vector<8x32xf32>
    %cst_24 = arith.constant dense<0.000000e+00> : vector<8x8xf32>
    %34 = tpu.matmul %31, %33, %cst_24 {dimension_numbers = #tpu.dot_dimension_numbers<[1], [1], [0], [0], [0, 0, 1, 0], [], []>} : vector<8x32xf32>, vector<8x32xf32>, vector<8x8xf32> -> vector<8x8xf32>
    %cst_25 = arith.constant 0.353553385 : f32
    %35 = vector.broadcast %cst_25 : f32 to vector<8x8xf32>
    %36 = arith.mulf %34, %35 : vector<8x8xf32>
    %cst_26 = arith.constant dense<0xFF800000> : vector<8xf32>
    %37 = vector.multi_reduction <maximumf>, %36, %cst_26 [1] : vector<8x8xf32> to vector<8xf32>
    %38 = vector.shape_cast %37 : vector<8xf32> to vector<8x1xf32>
    %39 = vector.broadcast %38 : vector<8x1xf32> to vector<8x8xf32>
    %40 = arith.subf %36, %39 : vector<8x8xf32>
    %41 = math.exp %40 : vector<8x8xf32>
    %cst_27 = arith.constant dense<0.000000e+00> : vector<8xf32>
    %42 = vector.multi_reduction <add>, %41, %cst_27 [1] : vector<8x8xf32> to vector<8xf32>
    %43 = vector.shape_cast %42 : vector<8xf32> to vector<8x1xf32>
    %44 = tpu.reciprocal %43 {approx = true} : vector<8x1xf32> -> vector<8x1xf32>
    %45 = vector.broadcast %44 : vector<8x1xf32> to vector<8x8xf32>
    %46 = arith.mulf %41, %45 : vector<8x8xf32>
    %47 = vector.broadcast %29 : vector<1x32xf32> to vector<8x32xf32>
    %48 = arith.mulf %19, %47 : vector<8x32xf32>
    %cst_28 = arith.constant dense<0.000000e+00> : vector<8x32xf32>
    %49 = tpu.matmul %46, %48, %cst_28 {dimension_numbers = #tpu.dot_dimension_numbers<[1], [0], [0], [1], [0, 0, 1, 1], [], []>} : vector<8x8xf32>, vector<8x32xf32>, vector<8x32xf32> -> vector<8x32xf32>
    %50 = arith.addf %21, %49 : vector<8x32xf32>
    %c8_i32_29 = arith.constant 8 : i32
    %51 = vector.broadcast %c8_i32_29 : i32 to vector<1x32xi32>
    %52 = arith.cmpi sge, %20, %51 : vector<1x32xi32>
    %c16_i32 = arith.constant 16 : i32
    %53 = vector.broadcast %c16_i32 : i32 to vector<1x32xi32>
    %54 = arith.cmpi slt, %20, %53 : vector<1x32xi32>
    %55 = arith.andi %52, %54 : vector<1x32xi1>
    %cst_30 = arith.constant 1.000000e+00 : f32
    %cst_31 = arith.constant 0.000000e+00 : f32
    %56 = vector.broadcast %cst_30 : f32 to vector<1x32xf32>
    %57 = vector.broadcast %cst_31 : f32 to vector<1x32xf32>
    %58 = arith.select %55, %56, %57 : vector<1x32xi1>, vector<1x32xf32>
    %59 = vector.broadcast %58 : vector<1x32xf32> to vector<8x32xf32>
    %60 = arith.mulf %9, %59 : vector<8x32xf32>
    %61 = vector.broadcast %58 : vector<1x32xf32> to vector<8x32xf32>
    %62 = arith.mulf %14, %61 : vector<8x32xf32>
    %cst_32 = arith.constant dense<0.000000e+00> : vector<8x8xf32>
    %63 = tpu.matmul %60, %62, %cst_32 {dimension_numbers = #tpu.dot_dimension_numbers<[1], [1], [0], [0], [0, 0, 1, 0], [], []>} : vector<8x32xf32>, vector<8x32xf32>, vector<8x8xf32> -> vector<8x8xf32>
    %cst_33 = arith.constant 0.353553385 : f32
    %64 = vector.broadcast %cst_33 : f32 to vector<8x8xf32>
    %65 = arith.mulf %63, %64 : vector<8x8xf32>
    %cst_34 = arith.constant dense<0xFF800000> : vector<8xf32>
    %66 = vector.multi_reduction <maximumf>, %65, %cst_34 [1] : vector<8x8xf32> to vector<8xf32>
    %67 = vector.shape_cast %66 : vector<8xf32> to vector<8x1xf32>
    %68 = vector.broadcast %67 : vector<8x1xf32> to vector<8x8xf32>
    %69 = arith.subf %65, %68 : vector<8x8xf32>
    %70 = math.exp %69 : vector<8x8xf32>
    %cst_35 = arith.constant dense<0.000000e+00> : vector<8xf32>
    %71 = vector.multi_reduction <add>, %70, %cst_35 [1] : vector<8x8xf32> to vector<8xf32>
    %72 = vector.shape_cast %71 : vector<8xf32> to vector<8x1xf32>
    %73 = tpu.reciprocal %72 {approx = true} : vector<8x1xf32> -> vector<8x1xf32>
    %74 = vector.broadcast %73 : vector<8x1xf32> to vector<8x8xf32>
    %75 = arith.mulf %70, %74 : vector<8x8xf32>
    %76 = vector.broadcast %58 : vector<1x32xf32> to vector<8x32xf32>
    %77 = arith.mulf %19, %76 : vector<8x32xf32>
    %cst_36 = arith.constant dense<0.000000e+00> : vector<8x32xf32>
    %78 = tpu.matmul %75, %77, %cst_36 {dimension_numbers = #tpu.dot_dimension_numbers<[1], [0], [0], [1], [0, 0, 1, 1], [], []>} : vector<8x8xf32>, vector<8x32xf32>, vector<8x32xf32> -> vector<8x32xf32>
    %79 = arith.addf %50, %78 : vector<8x32xf32>
    %c16_i32_37 = arith.constant 16 : i32
    %80 = vector.broadcast %c16_i32_37 : i32 to vector<1x32xi32>
    %81 = arith.cmpi sge, %20, %80 : vector<1x32xi32>
    %c24_i32 = arith.constant 24 : i32
    %82 = vector.broadcast %c24_i32 : i32 to vector<1x32xi32>
    %83 = arith.cmpi slt, %20, %82 : vector<1x32xi32>
    %84 = arith.andi %81, %83 : vector<1x32xi1>
    %cst_38 = arith.constant 1.000000e+00 : f32
    %cst_39 = arith.constant 0.000000e+00 : f32
    %85 = vector.broadcast %cst_38 : f32 to vector<1x32xf32>
    %86 = vector.broadcast %cst_39 : f32 to vector<1x32xf32>
    %87 = arith.select %84, %85, %86 : vector<1x32xi1>, vector<1x32xf32>
    %88 = vector.broadcast %87 : vector<1x32xf32> to vector<8x32xf32>
    %89 = arith.mulf %9, %88 : vector<8x32xf32>
    %90 = vector.broadcast %87 : vector<1x32xf32> to vector<8x32xf32>
    %91 = arith.mulf %14, %90 : vector<8x32xf32>
    %cst_40 = arith.constant dense<0.000000e+00> : vector<8x8xf32>
    %92 = tpu.matmul %89, %91, %cst_40 {dimension_numbers = #tpu.dot_dimension_numbers<[1], [1], [0], [0], [0, 0, 1, 0], [], []>} : vector<8x32xf32>, vector<8x32xf32>, vector<8x8xf32> -> vector<8x8xf32>
    %cst_41 = arith.constant 0.353553385 : f32
    %93 = vector.broadcast %cst_41 : f32 to vector<8x8xf32>
    %94 = arith.mulf %92, %93 : vector<8x8xf32>
    %cst_42 = arith.constant dense<0xFF800000> : vector<8xf32>
    %95 = vector.multi_reduction <maximumf>, %94, %cst_42 [1] : vector<8x8xf32> to vector<8xf32>
    %96 = vector.shape_cast %95 : vector<8xf32> to vector<8x1xf32>
    %97 = vector.broadcast %96 : vector<8x1xf32> to vector<8x8xf32>
    %98 = arith.subf %94, %97 : vector<8x8xf32>
    %99 = math.exp %98 : vector<8x8xf32>
    %cst_43 = arith.constant dense<0.000000e+00> : vector<8xf32>
    %100 = vector.multi_reduction <add>, %99, %cst_43 [1] : vector<8x8xf32> to vector<8xf32>
    %101 = vector.shape_cast %100 : vector<8xf32> to vector<8x1xf32>
    %102 = tpu.reciprocal %101 {approx = true} : vector<8x1xf32> -> vector<8x1xf32>
    %103 = vector.broadcast %102 : vector<8x1xf32> to vector<8x8xf32>
    %104 = arith.mulf %99, %103 : vector<8x8xf32>
    %105 = vector.broadcast %87 : vector<1x32xf32> to vector<8x32xf32>
    %106 = arith.mulf %19, %105 : vector<8x32xf32>
    %cst_44 = arith.constant dense<0.000000e+00> : vector<8x32xf32>
    %107 = tpu.matmul %104, %106, %cst_44 {dimension_numbers = #tpu.dot_dimension_numbers<[1], [0], [0], [1], [0, 0, 1, 1], [], []>} : vector<8x8xf32>, vector<8x32xf32>, vector<8x32xf32> -> vector<8x32xf32>
    %108 = arith.addf %79, %107 : vector<8x32xf32>
    %c24_i32_45 = arith.constant 24 : i32
    %109 = vector.broadcast %c24_i32_45 : i32 to vector<1x32xi32>
    %110 = arith.cmpi sge, %20, %109 : vector<1x32xi32>
    %c32_i32 = arith.constant 32 : i32
    %111 = vector.broadcast %c32_i32 : i32 to vector<1x32xi32>
    %112 = arith.cmpi slt, %20, %111 : vector<1x32xi32>
    %113 = arith.andi %110, %112 : vector<1x32xi1>
    %cst_46 = arith.constant 1.000000e+00 : f32
    %cst_47 = arith.constant 0.000000e+00 : f32
    %114 = vector.broadcast %cst_46 : f32 to vector<1x32xf32>
    %115 = vector.broadcast %cst_47 : f32 to vector<1x32xf32>
    %116 = arith.select %113, %114, %115 : vector<1x32xi1>, vector<1x32xf32>
    %117 = vector.broadcast %116 : vector<1x32xf32> to vector<8x32xf32>
    %118 = arith.mulf %9, %117 : vector<8x32xf32>
    %119 = vector.broadcast %116 : vector<1x32xf32> to vector<8x32xf32>
    %120 = arith.mulf %14, %119 : vector<8x32xf32>
    %cst_48 = arith.constant dense<0.000000e+00> : vector<8x8xf32>
    %121 = tpu.matmul %118, %120, %cst_48 {dimension_numbers = #tpu.dot_dimension_numbers<[1], [1], [0], [0], [0, 0, 1, 0], [], []>} : vector<8x32xf32>, vector<8x32xf32>, vector<8x8xf32> -> vector<8x8xf32>
    %cst_49 = arith.constant 0.353553385 : f32
    %122 = vector.broadcast %cst_49 : f32 to vector<8x8xf32>
    %123 = arith.mulf %121, %122 : vector<8x8xf32>
    %cst_50 = arith.constant dense<0xFF800000> : vector<8xf32>
    %124 = vector.multi_reduction <maximumf>, %123, %cst_50 [1] : vector<8x8xf32> to vector<8xf32>
    %125 = vector.shape_cast %124 : vector<8xf32> to vector<8x1xf32>
    %126 = vector.broadcast %125 : vector<8x1xf32> to vector<8x8xf32>
    %127 = arith.subf %123, %126 : vector<8x8xf32>
    %128 = math.exp %127 : vector<8x8xf32>
    %cst_51 = arith.constant dense<0.000000e+00> : vector<8xf32>
    %129 = vector.multi_reduction <add>, %128, %cst_51 [1] : vector<8x8xf32> to vector<8xf32>
    %130 = vector.shape_cast %129 : vector<8xf32> to vector<8x1xf32>
    %131 = tpu.reciprocal %130 {approx = true} : vector<8x1xf32> -> vector<8x1xf32>
    %132 = vector.broadcast %131 : vector<8x1xf32> to vector<8x8xf32>
    %133 = arith.mulf %128, %132 : vector<8x8xf32>
    %134 = vector.broadcast %116 : vector<1x32xf32> to vector<8x32xf32>
    %135 = arith.mulf %19, %134 : vector<8x32xf32>
    %cst_52 = arith.constant dense<0.000000e+00> : vector<8x32xf32>
    %136 = tpu.matmul %133, %135, %cst_52 {dimension_numbers = #tpu.dot_dimension_numbers<[1], [0], [0], [1], [0, 0, 1, 1], [], []>} : vector<8x8xf32>, vector<8x32xf32>, vector<8x32xf32> -> vector<8x32xf32>
    %137 = arith.addf %108, %136 : vector<8x32xf32>
    %c0_53 = arith.constant 0 : index
    %c0_54 = arith.constant 0 : index
    %138 = vector.load %arg10[%c0_53, %c0_54] : memref<32x32xf32, #tpu.memory_space<vmem>>, vector<32x32xf32>
    %cst_55 = arith.constant dense<0.000000e+00> : vector<8x32xf32>
    %139 = tpu.matmul %137, %138, %cst_55 {dimension_numbers = #tpu.dot_dimension_numbers<[1], [0], [0], [1], [0, 0, 1, 1], [], []>} : vector<8x32xf32>, vector<32x32xf32>, vector<8x32xf32> -> vector<8x32xf32>
    %c0_56 = arith.constant 0 : index
    %c0_57 = arith.constant 0 : index
    %140 = vector.load %arg11[%c0_56, %c0_57] : memref<1x32xf32, #tpu.memory_space<vmem>>, vector<1x32xf32>
    %141 = vector.broadcast %140 : vector<1x32xf32> to vector<8x32xf32>
    %142 = arith.addf %139, %141 : vector<8x32xf32>
    %143 = arith.addf %0, %142 : vector<8x32xf32>
    %c0_58 = arith.constant 0 : index
    %c0_59 = arith.constant 0 : index
    %144 = vector.load %arg20[%c0_58, %c0_59] : memref<1x32xf32, #tpu.memory_space<vmem>>, vector<1x32xf32>
    %c0_60 = arith.constant 0 : index
    %c0_61 = arith.constant 0 : index
    %145 = vector.load %arg21[%c0_60, %c0_61] : memref<1x32xf32, #tpu.memory_space<vmem>>, vector<1x32xf32>
    %cst_62 = arith.constant dense<0.000000e+00> : vector<8xf32>
    %146 = vector.multi_reduction <add>, %143, %cst_62 [1] : vector<8x32xf32> to vector<8xf32>
    %147 = vector.shape_cast %146 : vector<8xf32> to vector<8x1xf32>
    %cst_63 = arith.constant 3.200000e+01 : f32
    %148 = vector.broadcast %cst_63 : f32 to vector<8x1xf32>
    %149 = arith.divf %147, %148 : vector<8x1xf32>
    %150 = vector.broadcast %149 : vector<8x1xf32> to vector<8x32xf32>
    %151 = arith.subf %143, %150 : vector<8x32xf32>
    %152 = arith.mulf %151, %151 : vector<8x32xf32>
    %cst_64 = arith.constant dense<0.000000e+00> : vector<8xf32>
    %153 = vector.multi_reduction <add>, %152, %cst_64 [1] : vector<8x32xf32> to vector<8xf32>
    %154 = vector.shape_cast %153 : vector<8xf32> to vector<8x1xf32>
    %cst_65 = arith.constant 3.200000e+01 : f32
    %155 = vector.broadcast %cst_65 : f32 to vector<8x1xf32>
    %156 = arith.divf %154, %155 : vector<8x1xf32>
    %cst_66 = arith.constant 9.99999974E-6 : f32
    %157 = vector.broadcast %cst_66 : f32 to vector<8x1xf32>
    %158 = arith.addf %156, %157 : vector<8x1xf32>
    %159 = math.rsqrt %158 : vector<8x1xf32>
    %160 = vector.broadcast %159 : vector<8x1xf32> to vector<8x32xf32>
    %161 = arith.mulf %151, %160 : vector<8x32xf32>
    %162 = vector.broadcast %144 : vector<1x32xf32> to vector<8x32xf32>
    %163 = arith.mulf %161, %162 : vector<8x32xf32>
    %164 = vector.broadcast %145 : vector<1x32xf32> to vector<8x32xf32>
    %165 = arith.addf %163, %164 : vector<8x32xf32>
    %166 = arith.addf %165, %3 : vector<8x32xf32>
    %c0_67 = arith.constant 0 : index
    %c0_68 = arith.constant 0 : index
    %167 = vector.load %arg12[%c0_67, %c0_68] : memref<32x32xf32, #tpu.memory_space<vmem>>, vector<32x32xf32>
    %cst_69 = arith.constant dense<0.000000e+00> : vector<8x32xf32>
    %168 = tpu.matmul %166, %167, %cst_69 {dimension_numbers = #tpu.dot_dimension_numbers<[1], [0], [0], [1], [0, 0, 1, 1], [], []>} : vector<8x32xf32>, vector<32x32xf32>, vector<8x32xf32> -> vector<8x32xf32>
    %c0_70 = arith.constant 0 : index
    %c0_71 = arith.constant 0 : index
    %169 = vector.load %arg13[%c0_70, %c0_71] : memref<1x32xf32, #tpu.memory_space<vmem>>, vector<1x32xf32>
    %170 = vector.broadcast %169 : vector<1x32xf32> to vector<8x32xf32>
    %171 = arith.addf %168, %170 : vector<8x32xf32>
    %172 = arith.addf %1, %2 : vector<16x32xf32>
    %c0_72 = arith.constant 0 : index
    %c0_73 = arith.constant 0 : index
    %173 = vector.load %arg14[%c0_72, %c0_73] : memref<32x32xf32, #tpu.memory_space<vmem>>, vector<32x32xf32>
    %cst_74 = arith.constant dense<0.000000e+00> : vector<16x32xf32>
    %174 = tpu.matmul %172, %173, %cst_74 {dimension_numbers = #tpu.dot_dimension_numbers<[1], [0], [0], [1], [0, 0, 1, 1], [], []>} : vector<16x32xf32>, vector<32x32xf32>, vector<16x32xf32> -> vector<16x32xf32>
    %c0_75 = arith.constant 0 : index
    %c0_76 = arith.constant 0 : index
    %175 = vector.load %arg15[%c0_75, %c0_76] : memref<1x32xf32, #tpu.memory_space<vmem>>, vector<1x32xf32>
    %176 = vector.broadcast %175 : vector<1x32xf32> to vector<16x32xf32>
    %177 = arith.addf %174, %176 : vector<16x32xf32>
    %c0_77 = arith.constant 0 : index
    %c0_78 = arith.constant 0 : index
    %178 = vector.load %arg16[%c0_77, %c0_78] : memref<32x32xf32, #tpu.memory_space<vmem>>, vector<32x32xf32>
    %cst_79 = arith.constant dense<0.000000e+00> : vector<16x32xf32>
    %179 = tpu.matmul %1, %178, %cst_79 {dimension_numbers = #tpu.dot_dimension_numbers<[1], [0], [0], [1], [0, 0, 1, 1], [], []>} : vector<16x32xf32>, vector<32x32xf32>, vector<16x32xf32> -> vector<16x32xf32>
    %c0_80 = arith.constant 0 : index
    %c0_81 = arith.constant 0 : index
    %180 = vector.load %arg17[%c0_80, %c0_81] : memref<1x32xf32, #tpu.memory_space<vmem>>, vector<1x32xf32>
    %181 = vector.broadcast %180 : vector<1x32xf32> to vector<16x32xf32>
    %182 = arith.addf %179, %181 : vector<16x32xf32>
    %183 = tpu.iota {dimensions = array<i32: 1>} : vector<1x32xi32>
    %cst_82 = arith.constant 0.000000e+00 : f32
    %184 = vector.broadcast %cst_82 : f32 to vector<8x32xf32>
    %c0_i32_83 = arith.constant 0 : i32
    %185 = vector.broadcast %c0_i32_83 : i32 to vector<1x32xi32>
    %186 = arith.cmpi sge, %183, %185 : vector<1x32xi32>
    %c8_i32_84 = arith.constant 8 : i32
    %187 = vector.broadcast %c8_i32_84 : i32 to vector<1x32xi32>
    %188 = arith.cmpi slt, %183, %187 : vector<1x32xi32>
    %189 = arith.andi %186, %188 : vector<1x32xi1>
    %cst_85 = arith.constant 1.000000e+00 : f32
    %cst_86 = arith.constant 0.000000e+00 : f32
    %190 = vector.broadcast %cst_85 : f32 to vector<1x32xf32>
    %191 = vector.broadcast %cst_86 : f32 to vector<1x32xf32>
    %192 = arith.select %189, %190, %191 : vector<1x32xi1>, vector<1x32xf32>
    %193 = vector.broadcast %192 : vector<1x32xf32> to vector<8x32xf32>
    %194 = arith.mulf %171, %193 : vector<8x32xf32>
    %195 = vector.broadcast %192 : vector<1x32xf32> to vector<16x32xf32>
    %196 = arith.mulf %177, %195 : vector<16x32xf32>
    %cst_87 = arith.constant dense<0.000000e+00> : vector<8x16xf32>
    %197 = tpu.matmul %194, %196, %cst_87 {dimension_numbers = #tpu.dot_dimension_numbers<[1], [1], [0], [0], [0, 0, 1, 0], [], []>} : vector<8x32xf32>, vector<16x32xf32>, vector<8x16xf32> -> vector<8x16xf32>
    %cst_88 = arith.constant 0.353553385 : f32
    %198 = vector.broadcast %cst_88 : f32 to vector<8x16xf32>
    %199 = arith.mulf %197, %198 : vector<8x16xf32>
    %cst_89 = arith.constant dense<0xFF800000> : vector<8xf32>
    %200 = vector.multi_reduction <maximumf>, %199, %cst_89 [1] : vector<8x16xf32> to vector<8xf32>
    %201 = vector.shape_cast %200 : vector<8xf32> to vector<8x1xf32>
    %202 = vector.broadcast %201 : vector<8x1xf32> to vector<8x16xf32>
    %203 = arith.subf %199, %202 : vector<8x16xf32>
    %204 = math.exp %203 : vector<8x16xf32>
    %cst_90 = arith.constant dense<0.000000e+00> : vector<8xf32>
    %205 = vector.multi_reduction <add>, %204, %cst_90 [1] : vector<8x16xf32> to vector<8xf32>
    %206 = vector.shape_cast %205 : vector<8xf32> to vector<8x1xf32>
    %207 = tpu.reciprocal %206 {approx = true} : vector<8x1xf32> -> vector<8x1xf32>
    %208 = vector.broadcast %207 : vector<8x1xf32> to vector<8x16xf32>
    %209 = arith.mulf %204, %208 : vector<8x16xf32>
    %210 = vector.broadcast %192 : vector<1x32xf32> to vector<16x32xf32>
    %211 = arith.mulf %182, %210 : vector<16x32xf32>
    %cst_91 = arith.constant dense<0.000000e+00> : vector<8x32xf32>
    %212 = tpu.matmul %209, %211, %cst_91 {dimension_numbers = #tpu.dot_dimension_numbers<[1], [0], [0], [1], [0, 0, 1, 1], [], []>} : vector<8x16xf32>, vector<16x32xf32>, vector<8x32xf32> -> vector<8x32xf32>
    %213 = arith.addf %184, %212 : vector<8x32xf32>
    %c8_i32_92 = arith.constant 8 : i32
    %214 = vector.broadcast %c8_i32_92 : i32 to vector<1x32xi32>
    %215 = arith.cmpi sge, %183, %214 : vector<1x32xi32>
    %c16_i32_93 = arith.constant 16 : i32
    %216 = vector.broadcast %c16_i32_93 : i32 to vector<1x32xi32>
    %217 = arith.cmpi slt, %183, %216 : vector<1x32xi32>
    %218 = arith.andi %215, %217 : vector<1x32xi1>
    %cst_94 = arith.constant 1.000000e+00 : f32
    %cst_95 = arith.constant 0.000000e+00 : f32
    %219 = vector.broadcast %cst_94 : f32 to vector<1x32xf32>
    %220 = vector.broadcast %cst_95 : f32 to vector<1x32xf32>
    %221 = arith.select %218, %219, %220 : vector<1x32xi1>, vector<1x32xf32>
    %222 = vector.broadcast %221 : vector<1x32xf32> to vector<8x32xf32>
    %223 = arith.mulf %171, %222 : vector<8x32xf32>
    %224 = vector.broadcast %221 : vector<1x32xf32> to vector<16x32xf32>
    %225 = arith.mulf %177, %224 : vector<16x32xf32>
    %cst_96 = arith.constant dense<0.000000e+00> : vector<8x16xf32>
    %226 = tpu.matmul %223, %225, %cst_96 {dimension_numbers = #tpu.dot_dimension_numbers<[1], [1], [0], [0], [0, 0, 1, 0], [], []>} : vector<8x32xf32>, vector<16x32xf32>, vector<8x16xf32> -> vector<8x16xf32>
    %cst_97 = arith.constant 0.353553385 : f32
    %227 = vector.broadcast %cst_97 : f32 to vector<8x16xf32>
    %228 = arith.mulf %226, %227 : vector<8x16xf32>
    %cst_98 = arith.constant dense<0xFF800000> : vector<8xf32>
    %229 = vector.multi_reduction <maximumf>, %228, %cst_98 [1] : vector<8x16xf32> to vector<8xf32>
    %230 = vector.shape_cast %229 : vector<8xf32> to vector<8x1xf32>
    %231 = vector.broadcast %230 : vector<8x1xf32> to vector<8x16xf32>
    %232 = arith.subf %228, %231 : vector<8x16xf32>
    %233 = math.exp %232 : vector<8x16xf32>
    %cst_99 = arith.constant dense<0.000000e+00> : vector<8xf32>
    %234 = vector.multi_reduction <add>, %233, %cst_99 [1] : vector<8x16xf32> to vector<8xf32>
    %235 = vector.shape_cast %234 : vector<8xf32> to vector<8x1xf32>
    %236 = tpu.reciprocal %235 {approx = true} : vector<8x1xf32> -> vector<8x1xf32>
    %237 = vector.broadcast %236 : vector<8x1xf32> to vector<8x16xf32>
    %238 = arith.mulf %233, %237 : vector<8x16xf32>
    %239 = vector.broadcast %221 : vector<1x32xf32> to vector<16x32xf32>
    %240 = arith.mulf %182, %239 : vector<16x32xf32>
    %cst_100 = arith.constant dense<0.000000e+00> : vector<8x32xf32>
    %241 = tpu.matmul %238, %240, %cst_100 {dimension_numbers = #tpu.dot_dimension_numbers<[1], [0], [0], [1], [0, 0, 1, 1], [], []>} : vector<8x16xf32>, vector<16x32xf32>, vector<8x32xf32> -> vector<8x32xf32>
    %242 = arith.addf %213, %241 : vector<8x32xf32>
    %c16_i32_101 = arith.constant 16 : i32
    %243 = vector.broadcast %c16_i32_101 : i32 to vector<1x32xi32>
    %244 = arith.cmpi sge, %183, %243 : vector<1x32xi32>
    %c24_i32_102 = arith.constant 24 : i32
    %245 = vector.broadcast %c24_i32_102 : i32 to vector<1x32xi32>
    %246 = arith.cmpi slt, %183, %245 : vector<1x32xi32>
    %247 = arith.andi %244, %246 : vector<1x32xi1>
    %cst_103 = arith.constant 1.000000e+00 : f32
    %cst_104 = arith.constant 0.000000e+00 : f32
    %248 = vector.broadcast %cst_103 : f32 to vector<1x32xf32>
    %249 = vector.broadcast %cst_104 : f32 to vector<1x32xf32>
    %250 = arith.select %247, %248, %249 : vector<1x32xi1>, vector<1x32xf32>
    %251 = vector.broadcast %250 : vector<1x32xf32> to vector<8x32xf32>
    %252 = arith.mulf %171, %251 : vector<8x32xf32>
    %253 = vector.broadcast %250 : vector<1x32xf32> to vector<16x32xf32>
    %254 = arith.mulf %177, %253 : vector<16x32xf32>
    %cst_105 = arith.constant dense<0.000000e+00> : vector<8x16xf32>
    %255 = tpu.matmul %252, %254, %cst_105 {dimension_numbers = #tpu.dot_dimension_numbers<[1], [1], [0], [0], [0, 0, 1, 0], [], []>} : vector<8x32xf32>, vector<16x32xf32>, vector<8x16xf32> -> vector<8x16xf32>
    %cst_106 = arith.constant 0.353553385 : f32
    %256 = vector.broadcast %cst_106 : f32 to vector<8x16xf32>
    %257 = arith.mulf %255, %256 : vector<8x16xf32>
    %cst_107 = arith.constant dense<0xFF800000> : vector<8xf32>
    %258 = vector.multi_reduction <maximumf>, %257, %cst_107 [1] : vector<8x16xf32> to vector<8xf32>
    %259 = vector.shape_cast %258 : vector<8xf32> to vector<8x1xf32>
    %260 = vector.broadcast %259 : vector<8x1xf32> to vector<8x16xf32>
    %261 = arith.subf %257, %260 : vector<8x16xf32>
    %262 = math.exp %261 : vector<8x16xf32>
    %cst_108 = arith.constant dense<0.000000e+00> : vector<8xf32>
    %263 = vector.multi_reduction <add>, %262, %cst_108 [1] : vector<8x16xf32> to vector<8xf32>
    %264 = vector.shape_cast %263 : vector<8xf32> to vector<8x1xf32>
    %265 = tpu.reciprocal %264 {approx = true} : vector<8x1xf32> -> vector<8x1xf32>
    %266 = vector.broadcast %265 : vector<8x1xf32> to vector<8x16xf32>
    %267 = arith.mulf %262, %266 : vector<8x16xf32>
    %268 = vector.broadcast %250 : vector<1x32xf32> to vector<16x32xf32>
    %269 = arith.mulf %182, %268 : vector<16x32xf32>
    %cst_109 = arith.constant dense<0.000000e+00> : vector<8x32xf32>
    %270 = tpu.matmul %267, %269, %cst_109 {dimension_numbers = #tpu.dot_dimension_numbers<[1], [0], [0], [1], [0, 0, 1, 1], [], []>} : vector<8x16xf32>, vector<16x32xf32>, vector<8x32xf32> -> vector<8x32xf32>
    %271 = arith.addf %242, %270 : vector<8x32xf32>
    %c24_i32_110 = arith.constant 24 : i32
    %272 = vector.broadcast %c24_i32_110 : i32 to vector<1x32xi32>
    %273 = arith.cmpi sge, %183, %272 : vector<1x32xi32>
    %c32_i32_111 = arith.constant 32 : i32
    %274 = vector.broadcast %c32_i32_111 : i32 to vector<1x32xi32>
    %275 = arith.cmpi slt, %183, %274 : vector<1x32xi32>
    %276 = arith.andi %273, %275 : vector<1x32xi1>
    %cst_112 = arith.constant 1.000000e+00 : f32
    %cst_113 = arith.constant 0.000000e+00 : f32
    %277 = vector.broadcast %cst_112 : f32 to vector<1x32xf32>
    %278 = vector.broadcast %cst_113 : f32 to vector<1x32xf32>
    %279 = arith.select %276, %277, %278 : vector<1x32xi1>, vector<1x32xf32>
    %280 = vector.broadcast %279 : vector<1x32xf32> to vector<8x32xf32>
    %281 = arith.mulf %171, %280 : vector<8x32xf32>
    %282 = vector.broadcast %279 : vector<1x32xf32> to vector<16x32xf32>
    %283 = arith.mulf %177, %282 : vector<16x32xf32>
    %cst_114 = arith.constant dense<0.000000e+00> : vector<8x16xf32>
    %284 = tpu.matmul %281, %283, %cst_114 {dimension_numbers = #tpu.dot_dimension_numbers<[1], [1], [0], [0], [0, 0, 1, 0], [], []>} : vector<8x32xf32>, vector<16x32xf32>, vector<8x16xf32> -> vector<8x16xf32>
    %cst_115 = arith.constant 0.353553385 : f32
    %285 = vector.broadcast %cst_115 : f32 to vector<8x16xf32>
    %286 = arith.mulf %284, %285 : vector<8x16xf32>
    %cst_116 = arith.constant dense<0xFF800000> : vector<8xf32>
    %287 = vector.multi_reduction <maximumf>, %286, %cst_116 [1] : vector<8x16xf32> to vector<8xf32>
    %288 = vector.shape_cast %287 : vector<8xf32> to vector<8x1xf32>
    %289 = vector.broadcast %288 : vector<8x1xf32> to vector<8x16xf32>
    %290 = arith.subf %286, %289 : vector<8x16xf32>
    %291 = math.exp %290 : vector<8x16xf32>
    %cst_117 = arith.constant dense<0.000000e+00> : vector<8xf32>
    %292 = vector.multi_reduction <add>, %291, %cst_117 [1] : vector<8x16xf32> to vector<8xf32>
    %293 = vector.shape_cast %292 : vector<8xf32> to vector<8x1xf32>
    %294 = tpu.reciprocal %293 {approx = true} : vector<8x1xf32> -> vector<8x1xf32>
    %295 = vector.broadcast %294 : vector<8x1xf32> to vector<8x16xf32>
    %296 = arith.mulf %291, %295 : vector<8x16xf32>
    %297 = vector.broadcast %279 : vector<1x32xf32> to vector<16x32xf32>
    %298 = arith.mulf %182, %297 : vector<16x32xf32>
    %cst_118 = arith.constant dense<0.000000e+00> : vector<8x32xf32>
    %299 = tpu.matmul %296, %298, %cst_118 {dimension_numbers = #tpu.dot_dimension_numbers<[1], [0], [0], [1], [0, 0, 1, 1], [], []>} : vector<8x16xf32>, vector<16x32xf32>, vector<8x32xf32> -> vector<8x32xf32>
    %300 = arith.addf %271, %299 : vector<8x32xf32>
    %c0_119 = arith.constant 0 : index
    %c0_120 = arith.constant 0 : index
    %301 = vector.load %arg18[%c0_119, %c0_120] : memref<32x32xf32, #tpu.memory_space<vmem>>, vector<32x32xf32>
    %cst_121 = arith.constant dense<0.000000e+00> : vector<8x32xf32>
    %302 = tpu.matmul %300, %301, %cst_121 {dimension_numbers = #tpu.dot_dimension_numbers<[1], [0], [0], [1], [0, 0, 1, 1], [], []>} : vector<8x32xf32>, vector<32x32xf32>, vector<8x32xf32> -> vector<8x32xf32>
    %c0_122 = arith.constant 0 : index
    %c0_123 = arith.constant 0 : index
    %303 = vector.load %arg19[%c0_122, %c0_123] : memref<1x32xf32, #tpu.memory_space<vmem>>, vector<1x32xf32>
    %304 = vector.broadcast %303 : vector<1x32xf32> to vector<8x32xf32>
    %305 = arith.addf %302, %304 : vector<8x32xf32>
    %306 = arith.addf %165, %305 : vector<8x32xf32>
    %c0_124 = arith.constant 0 : index
    %c0_125 = arith.constant 0 : index
    %307 = vector.load %arg22[%c0_124, %c0_125] : memref<1x32xf32, #tpu.memory_space<vmem>>, vector<1x32xf32>
    %c0_126 = arith.constant 0 : index
    %c0_127 = arith.constant 0 : index
    %308 = vector.load %arg23[%c0_126, %c0_127] : memref<1x32xf32, #tpu.memory_space<vmem>>, vector<1x32xf32>
    %cst_128 = arith.constant dense<0.000000e+00> : vector<8xf32>
    %309 = vector.multi_reduction <add>, %306, %cst_128 [1] : vector<8x32xf32> to vector<8xf32>
    %310 = vector.shape_cast %309 : vector<8xf32> to vector<8x1xf32>
    %cst_129 = arith.constant 3.200000e+01 : f32
    %311 = vector.broadcast %cst_129 : f32 to vector<8x1xf32>
    %312 = arith.divf %310, %311 : vector<8x1xf32>
    %313 = vector.broadcast %312 : vector<8x1xf32> to vector<8x32xf32>
    %314 = arith.subf %306, %313 : vector<8x32xf32>
    %315 = arith.mulf %314, %314 : vector<8x32xf32>
    %cst_130 = arith.constant dense<0.000000e+00> : vector<8xf32>
    %316 = vector.multi_reduction <add>, %315, %cst_130 [1] : vector<8x32xf32> to vector<8xf32>
    %317 = vector.shape_cast %316 : vector<8xf32> to vector<8x1xf32>
    %cst_131 = arith.constant 3.200000e+01 : f32
    %318 = vector.broadcast %cst_131 : f32 to vector<8x1xf32>
    %319 = arith.divf %317, %318 : vector<8x1xf32>
    %cst_132 = arith.constant 9.99999974E-6 : f32
    %320 = vector.broadcast %cst_132 : f32 to vector<8x1xf32>
    %321 = arith.addf %319, %320 : vector<8x1xf32>
    %322 = math.rsqrt %321 : vector<8x1xf32>
    %323 = vector.broadcast %322 : vector<8x1xf32> to vector<8x32xf32>
    %324 = arith.mulf %314, %323 : vector<8x32xf32>
    %325 = vector.broadcast %307 : vector<1x32xf32> to vector<8x32xf32>
    %326 = arith.mulf %324, %325 : vector<8x32xf32>
    %327 = vector.broadcast %308 : vector<1x32xf32> to vector<8x32xf32>
    %328 = arith.addf %326, %327 : vector<8x32xf32>
    %c0_133 = arith.constant 0 : index
    %c0_134 = arith.constant 0 : index
    %329 = vector.load %arg26[%c0_133, %c0_134] : memref<32x64xf32, #tpu.memory_space<vmem>>, vector<32x64xf32>
    %cst_135 = arith.constant dense<0.000000e+00> : vector<8x64xf32>
    %330 = tpu.matmul %328, %329, %cst_135 {dimension_numbers = #tpu.dot_dimension_numbers<[1], [0], [0], [1], [0, 0, 1, 1], [], []>} : vector<8x32xf32>, vector<32x64xf32>, vector<8x64xf32> -> vector<8x64xf32>
    %c0_136 = arith.constant 0 : index
    %c0_137 = arith.constant 0 : index
    %331 = vector.load %arg27[%c0_136, %c0_137] : memref<1x64xf32, #tpu.memory_space<vmem>>, vector<1x64xf32>
    %332 = vector.broadcast %331 : vector<1x64xf32> to vector<8x64xf32>
    %333 = arith.addf %330, %332 : vector<8x64xf32>
    %cst_138 = arith.constant 0.000000e+00 : f32
    %334 = vector.broadcast %cst_138 : f32 to vector<8x64xf32>
    %335 = arith.maximumf %333, %334 : vector<8x64xf32>
    %c0_139 = arith.constant 0 : index
    %c0_140 = arith.constant 0 : index
    %336 = vector.load %arg28[%c0_139, %c0_140] : memref<64x32xf32, #tpu.memory_space<vmem>>, vector<64x32xf32>
    %cst_141 = arith.constant dense<0.000000e+00> : vector<8x32xf32>
    %337 = tpu.matmul %335, %336, %cst_141 {dimension_numbers = #tpu.dot_dimension_numbers<[1], [0], [0], [1], [0, 0, 1, 1], [], []>} : vector<8x64xf32>, vector<64x32xf32>, vector<8x32xf32> -> vector<8x32xf32>
    %c0_142 = arith.constant 0 : index
    %c0_143 = arith.constant 0 : index
    %338 = vector.load %arg29[%c0_142, %c0_143] : memref<1x32xf32, #tpu.memory_space<vmem>>, vector<1x32xf32>
    %339 = vector.broadcast %338 : vector<1x32xf32> to vector<8x32xf32>
    %340 = arith.addf %337, %339 : vector<8x32xf32>
    %341 = arith.addf %328, %340 : vector<8x32xf32>
    %c0_144 = arith.constant 0 : index
    %c0_145 = arith.constant 0 : index
    %342 = vector.load %arg24[%c0_144, %c0_145] : memref<1x32xf32, #tpu.memory_space<vmem>>, vector<1x32xf32>
    %c0_146 = arith.constant 0 : index
    %c0_147 = arith.constant 0 : index
    %343 = vector.load %arg25[%c0_146, %c0_147] : memref<1x32xf32, #tpu.memory_space<vmem>>, vector<1x32xf32>
    %cst_148 = arith.constant dense<0.000000e+00> : vector<8xf32>
    %344 = vector.multi_reduction <add>, %341, %cst_148 [1] : vector<8x32xf32> to vector<8xf32>
    %345 = vector.shape_cast %344 : vector<8xf32> to vector<8x1xf32>
    %cst_149 = arith.constant 3.200000e+01 : f32
    %346 = vector.broadcast %cst_149 : f32 to vector<8x1xf32>
    %347 = arith.divf %345, %346 : vector<8x1xf32>
    %348 = vector.broadcast %347 : vector<8x1xf32> to vector<8x32xf32>
    %349 = arith.subf %341, %348 : vector<8x32xf32>
    %350 = arith.mulf %349, %349 : vector<8x32xf32>
    %cst_150 = arith.constant dense<0.000000e+00> : vector<8xf32>
    %351 = vector.multi_reduction <add>, %350, %cst_150 [1] : vector<8x32xf32> to vector<8xf32>
    %352 = vector.shape_cast %351 : vector<8xf32> to vector<8x1xf32>
    %cst_151 = arith.constant 3.200000e+01 : f32
    %353 = vector.broadcast %cst_151 : f32 to vector<8x1xf32>
    %354 = arith.divf %352, %353 : vector<8x1xf32>
    %cst_152 = arith.constant 9.99999974E-6 : f32
    %355 = vector.broadcast %cst_152 : f32 to vector<8x1xf32>
    %356 = arith.addf %354, %355 : vector<8x1xf32>
    %357 = math.rsqrt %356 : vector<8x1xf32>
    %358 = vector.broadcast %357 : vector<8x1xf32> to vector<8x32xf32>
    %359 = arith.mulf %349, %358 : vector<8x32xf32>
    %360 = vector.broadcast %342 : vector<1x32xf32> to vector<8x32xf32>
    %361 = arith.mulf %359, %360 : vector<8x32xf32>
    %362 = vector.broadcast %343 : vector<1x32xf32> to vector<8x32xf32>
    %363 = arith.addf %361, %362 : vector<8x32xf32>
    %c0_153 = arith.constant 0 : index
    %c0_154 = arith.constant 0 : index
    %364 = vector.load %arg30[%c0_153, %c0_154] : memref<8x32xf32, #tpu.memory_space<vmem>>, vector<8x32xf32>
    tpu.vector_store %arg30[%c0_153, %c0_154], %363 {strides = array<i32>} : memref<8x32xf32, #tpu.memory_space<vmem>>, vector<8x32xf32>,
    return
  }
}

</mosaic_0001>

<llo_original>
// kernel: input_block_forward.5
$region0: #{input_block_forward.5}
  #allocation0 [shape = 'u32[]', space=smem, size = 0x4, offset = 0x4, fixed_abs, tag = 'smem constant byte address 0x4 - core index']
  #allocation1 [shape = 'u32[144,128]{1,0:T(1,128)}', space=vmem, size = 0x12000, scoped, tag = 'internal scratch']
  %s0 = inlined_call_operand.vmem [shape: f32[8,32], index: 0, kind: input, shape index: {}]
  %s1 = inlined_call_operand.vmem [shape: f32[32,32], index: 1, kind: input, shape index: {}]
  %s2 = inlined_call_operand.vmem [shape: f32[1,32], index: 2, kind: input, shape index: {}]
  %s3 = inlined_call_operand.vmem [shape: f32[32,9], index: 3, kind: input, shape index: {}]
  %s4 = inlined_call_operand.vmem [shape: f32[1,9], index: 4, kind: input, shape index: {}]
  %s5 = inlined_call_operand.hbm [shape: f32[8,32], index: 5, kind: output, shape index: {0}]
  %s6 = inlined_call_operand.hbm [shape: f32[8,9], index: 6, kind: output, shape index: {1}]
  %7 = xla_tuple %s5, %s6
  %s8 = sld [smem:[#allocation0]]
  $region38: #{input_block_forward.5} parent=0
    _
  %s10 = ssub.s32 1, %s8
  %s11 = scalar_select 0, %s10, %s8
  $region1: #{input_block_forward.5} parent=0
    #allocation2 [shape = 'u8[4096]{0}', space=vmem, size = 0x1000, scoped, tag = 'output window, operand 0, single buffered']
    #allocation3 [shape = 's32[1]{0}', space=sflag, size = 0x4, scoped, tag = 'scoped memory for input_block_forward.5']
    #allocation4 [shape = 'u8[4096]{0}', space=vmem, size = 0x1000, scoped, tag = 'output window, operand 1, single buffered']
    #allocation5 [shape = 's32[1]{0}', space=sflag, size = 0x4, scoped, tag = 'scoped memory for input_block_forward.5']
    %12 = vsyncpa [#allocation3], 0
    %13 = vsyncpa [#allocation5], 0
    // Predicated region
    $region2: #{input_block_forward.5} parent=1 // pred_check
      _
    $region3: #{input_block_forward.5} parent=1 // pred_check_branch
      %15 = sbr.rel (0) target = $region5
    $region4: #{input_block_forward.5} parent=1 // pred_region
      _
    $region5: #{input_block_forward.5} parent=1 // pred_fallthru
      _
    // Predicated region
    $region6: #{input_block_forward.5} parent=1 // pred_check
      _
    $region7: #{input_block_forward.5} parent=1 // pred_check_branch
      %17 = sbr.rel (0) target = $region9
    $region8: #{input_block_forward.5} parent=1 // pred_region
      _
    $region9: #{input_block_forward.5} parent=1 // pred_fallthru
      _
    // Predicated region
    $region10: #{input_block_forward.5} parent=1 // pred_check
      _
    $region11: #{input_block_forward.5} parent=1 // pred_check_branch
      %19 = sbr.rel (0) target = $region13
    $region12: #{input_block_forward.5} parent=1 // pred_region
      _
    $region13: #{input_block_forward.5} parent=1 // pred_fallthru
      _
    // Predicated region
    $region14: #{input_block_forward.5} parent=1 // pred_check
      _
    $region15: #{input_block_forward.5} parent=1 // pred_check_branch
      %21 = sbr.rel (0) target = $region17
    $region16: #{input_block_forward.5} parent=1 // pred_region
      _
    $region17: #{input_block_forward.5} parent=1 // pred_fallthru
      _
    // Predicated region
    $region18: #{input_block_forward.5} parent=1 // pred_check
      _
    $region19: #{input_block_forward.5} parent=1 // pred_check_branch
      %23 = sbr.rel (0) target = $region21
    $region20: #{input_block_forward.5} parent=1 // pred_region
      _
    $region21: #{input_block_forward.5} parent=1 // pred_fallthru
      _
    %v24 = vld [vmem:[%s0] sm:$0xff]
    %v25 = vld [vmem:[%s1] sm:$0xff]
    %v26 = vld [vmem:[%s1 + $0x8] sm:$0xff]
    %v27 = vld [vmem:[%s1 + $0x10] sm:$0xff]
    %v28 = vld [vmem:[%s1 + $0x18] sm:$0xff]
    %v29 = vld [vmem:[%s2] sm:$0x1]
    %v31 = vlaneseq
    %v32 = vshrl.u32 %v31, 7
    %v33 = vsub.s32 0, %v32
    %v34 = vrot.slane %v29, %v33
    %vm36 = vcmask 261120
    %v38 = vsel %vm36, %v24, 0
    %40 = vmatprep.subr.mxu0 0.0
    %41 = vmatpush1.msra.mxu0 %v25
    %42 = vmatprep.subr.mxu0 0.0
    %43 = vmatpush1.msra.mxu0 %v26
    %44 = vmatprep.subr.mxu0 0.0
    %45 = vmatpush1.msra.mxu0 %v27
    %46 = vmatprep.subr.mxu0 0.0
    %47 = vmatpush1.msra.mxu0 %v28
    %48 = vmatprep.subr.mxu0 0.0
    %49 = vmatpush1.msra.mxu0 0.0
    %50 = vmatprep.subr.mxu0 0.0
    %51 = vmatpush1.msra.mxu0 0.0
    %52 = vmatprep.subr.mxu0 0.0
    %53 = vmatpush1.msra.mxu0 0.0
    %54 = vmatprep.subr.mxu0 0.0
    %55 = vmatpush1.msra.mxu0 0.0
    %56 = vmatprep.subr.mxu0 0.0
    %57 = vmatpush1.msra.mxu0 0.0
    %58 = vmatprep.subr.mxu0 0.0
    %59 = vmatpush1.msra.mxu0 0.0
    %60 = vmatprep.subr.mxu0 0.0
    %61 = vmatpush1.msra.mxu0 0.0
    %62 = vmatprep.subr.mxu0 0.0
    %63 = vmatpush1.msra.mxu0 0.0
    %64 = vmatprep.subr.mxu0 0.0
    %65 = vmatpush1.msra.mxu0 0.0
    %66 = vmatprep.subr.mxu0 0.0
    %67 = vmatpush1.msra.mxu0 0.0
    %68 = vmatprep.subr.mxu0 0.0
    %69 = vmatpush1.msra.mxu0 0.0
    %70 = vmatprep.subr.mxu0 0.0
    %71 = vmatpush1.msra.mxu0 0.0
    %72 = vmatprep.subr.mxu0 0.0
    %73 = vmatpush1.msra.mxu0 0.0
    %74 = vmatprep.subr.mxu0 0.0
    %75 = vmatpush1.msra.mxu0 0.0
    %76 = vmatprep.subr.mxu0 0.0
    %77 = vmatpush1.msra.mxu0 0.0
    %78 = vmatprep.subr.mxu0 0.0
    %79 = vmatpush1.msra.mxu0 0.0
    %80 = vmatprep.subr.mxu0 0.0
    %81 = vmatpush1.msra.mxu0 0.0
    %82 = vmatprep.subr.mxu0 0.0
    %83 = vmatpush1.msra.mxu0 0.0
    %84 = vmatprep.subr.mxu0 0.0
    %85 = vmatpush1.msra.mxu0 0.0
    %86 = vmatprep.subr.mxu0 0.0
    %87 = vmatpush1.msra.mxu0 0.0
    %88 = vmatprep.subr.mxu0 0.0
    %89 = vmatpush1.msra.mxu0 0.0
    %90 = vmatprep.subr.mxu0 0.0
    %91 = vmatpush1.msra.mxu0 0.0
    %92 = vmatprep.subr.mxu0 0.0
    %93 = vmatpush1.msra.mxu0 0.0
    %94 = vmatprep.subr.mxu0 0.0
    %95 = vmatpush1.msra.mxu0 0.0
    %96 = vmatprep.subr.mxu0 0.0
    %97 = vmatpush1.msra.mxu0 0.0
    %98 = vmatprep.subr.mxu0 0.0
    %99 = vmatpush1.msra.mxu0 0.0
    %100 = vmatprep.subr.mxu0 0.0
    %101 = vmatpush1.msra.mxu0 0.0
    %102 = vmatprep.subr.mxu0 0.0
    %103 = vmatpush1.msra.mxu0 0.0
    %104 = vmatprep.mubr.f32.mxu0 0.0
    %105 = vmatmul.mubr.f32.gmra.mrb[0].mxu0 %v38
    %v106 = vpop.f32.mrb[0].mxu0
    %v107 = vadd.f32 %v34, %v106
    %v108 = vpop.f32.mrb[0].mxu0
    %109 = vdwg.mxu0
    %v110 = vlaneseq
    %v111 = vand.u32 %v110, 127
    %vm112 = vcmp.ge.s32.totalorder %v111, 23
    %v113 = vsel %vm112, %v107, -1e+30
    %v114 = vsel %vm36, %v113, -inf
    %115 = vmax.xlane.f32.xlu0 %v114
    %v116 = vpop.xlane.xlu0 %115
    %v117 = vsub.f32 %v107, %v116
    %v118 = vmul.f32 %v117, 1.442695
    %v119 = vpow.pop %v118
    %v120 = vsel %vm112, %v119, 0.0
    %v121 = vsel %vm36, %v120, 0.0
    %122 = vadd.xlane.f32.xlu0 %v121
    %v123 = vpop.xlane.xlu0 %122
    %v124 = vrcp.pop %v123
    %v125 = vmul.f32 %v120, %v124
    %v126 = vsel %vm112, %v125, %v107
    %127 = vst.msk [vmem:[#allocation2] sm:$0xff] %vm36, %v126
    %v128 = vld [vmem:[%s3] sm:$0xff]
    %v129 = vld [vmem:[%s3 + $0x8] sm:$0xff]
    %v130 = vld [vmem:[%s3 + $0x10] sm:$0xff]
    %v131 = vld [vmem:[%s3 + $0x18] sm:$0xff]
    %v132 = vld [vmem:[%s4] sm:$0x1]
    %v134 = vlaneseq
    %v135 = vshrl.u32 %v134, 7
    %v136 = vsub.s32 0, %v135
    %v137 = vrot.slane %v132, %v136
    %139 = vmatprep.subr.mxu0 0.0
    %140 = vmatpush1.msra.mxu0 %v128
    %141 = vmatprep.subr.mxu0 0.0
    %142 = vmatpush1.msra.mxu0 %v129
    %143 = vmatprep.subr.mxu0 0.0
    %144 = vmatpush1.msra.mxu0 %v130
    %145 = vmatprep.subr.mxu0 0.0
    %146 = vmatpush1.msra.mxu0 %v131
    %147 = vmatprep.subr.mxu0 0.0
    %148 = vmatpush1.msra.mxu0 0.0
    %149 = vmatprep.subr.mxu0 0.0
    %150 = vmatpush1.msra.mxu0 0.0
    %151 = vmatprep.subr.mxu0 0.0
    %152 = vmatpush1.msra.mxu0 0.0
    %153 = vmatprep.subr.mxu0 0.0
    %154 = vmatpush1.msra.mxu0 0.0
    %155 = vmatprep.subr.mxu0 0.0
    %156 = vmatpush1.msra.mxu0 0.0
    %157 = vmatprep.subr.mxu0 0.0
    %158 = vmatpush1.msra.mxu0 0.0
    %159 = vmatprep.subr.mxu0 0.0
    %160 = vmatpush1.msra.mxu0 0.0
    %161 = vmatprep.subr.mxu0 0.0
    %162 = vmatpush1.msra.mxu0 0.0
    %163 = vmatprep.subr.mxu0 0.0
    %164 = vmatpush1.msra.mxu0 0.0
    %165 = vmatprep.subr.mxu0 0.0
    %166 = vmatpush1.msra.mxu0 0.0
    %167 = vmatprep.subr.mxu0 0.0
    %168 = vmatpush1.msra.mxu0 0.0
    %169 = vmatprep.subr.mxu0 0.0
    %170 = vmatpush1.msra.mxu0 0.0
    %171 = vmatprep.subr.mxu0 0.0
    %172 = vmatpush1.msra.mxu0 0.0
    %173 = vmatprep.subr.mxu0 0.0
    %174 = vmatpush1.msra.mxu0 0.0
    %175 = vmatprep.subr.mxu0 0.0
    %176 = vmatpush1.msra.mxu0 0.0
    %177 = vmatprep.subr.mxu0 0.0
    %178 = vmatpush1.msra.mxu0 0.0
    %179 = vmatprep.subr.mxu0 0.0
    %180 = vmatpush1.msra.mxu0 0.0
    %181 = vmatprep.subr.mxu0 0.0
    %182 = vmatpush1.msra.mxu0 0.0
    %183 = vmatprep.subr.mxu0 0.0
    %184 = vmatpush1.msra.mxu0 0.0
    %185 = vmatprep.subr.mxu0 0.0
    %186 = vmatpush1.msra.mxu0 0.0
    %187 = vmatprep.subr.mxu0 0.0
    %188 = vmatpush1.msra.mxu0 0.0
    %189 = vmatprep.subr.mxu0 0.0
    %190 = vmatpush1.msra.mxu0 0.0
    %191 = vmatprep.subr.mxu0 0.0
    %192 = vmatpush1.msra.mxu0 0.0
    %193 = vmatprep.subr.mxu0 0.0
    %194 = vmatpush1.msra.mxu0 0.0
    %195 = vmatprep.subr.mxu0 0.0
    %196 = vmatpush1.msra.mxu0 0.0
    %197 = vmatprep.subr.mxu0 0.0
    %198 = vmatpush1.msra.mxu0 0.0
    %199 = vmatprep.subr.mxu0 0.0
    %200 = vmatpush1.msra.mxu0 0.0
    %201 = vmatprep.subr.mxu0 0.0
    %202 = vmatpush1.msra.mxu0 0.0
    %203 = vmatprep.mubr.f32.mxu0 0.0
    %204 = vmatmul.mubr.f32.gmra.mrb[0].mxu0 %v38
    %v205 = vpop.f32.mrb[0].mxu0
    %v206 = vadd.f32 %v137, %v205
    %v207 = vpop.f32.mrb[0].mxu0
    %208 = vdwg.mxu0
    %vm209 = vcmask 72704
    %210 = vst.msk [vmem:[#allocation4] sm:$0xff] %vm209, %v206
    // Predicated region
    $region22: #{input_block_forward.5} parent=1 // pred_check
      _
    $region23: #{input_block_forward.5} parent=1 // pred_check_branch
      %212 = sbr.rel (0) target = $region25
    $region24: #{input_block_forward.5} parent=1 // pred_region
      %s214 = ssub.s32 128, 128
      %215 = vsyncadd [#allocation3], %s214
      %s217 = sshll.u32 [#allocation2], 4
      %s218 = int_to_ptr.vmem [resolvable:$true] %s217
      %220 = dma.vmem_to_hbm [thread:$0]  %s218, 128, %s5, [#allocation3]
    $region25: #{input_block_forward.5} parent=1 // pred_fallthru
      _
    // Predicated region
    $region26: #{input_block_forward.5} parent=1 // pred_check
      _
    $region27: #{input_block_forward.5} parent=1 // pred_check_branch
      %222 = sbr.rel (0) target = $region29
    $region28: #{input_block_forward.5} parent=1 // pred_region
      %s224 = ssub.s32 128, 128
      %225 = vsyncadd [#allocation5], %s224
      %s227 = sshll.u32 [#allocation4], 4
      %s228 = int_to_ptr.vmem [resolvable:$true] %s227
      %230 = dma.vmem_to_hbm [thread:$0]  %s228, 128, %s6, [#allocation5]
    $region29: #{input_block_forward.5} parent=1 // pred_fallthru
      _
    // Predicated region
    $region30: #{input_block_forward.5} parent=1 // pred_check
      _
    $region31: #{input_block_forward.5} parent=1 // pred_check_branch
      %232 = sbr.rel (0) target = $region33
    $region32: #{input_block_forward.5} parent=1 // pred_region
      %233 = dma.done [#allocation3], 128
    $region33: #{input_block_forward.5} parent=1 // pred_fallthru
      _
    // Predicated region
    $region34: #{input_block_forward.5} parent=1 // pred_check
      _
    $region35: #{input_block_forward.5} parent=1 // pred_check_branch
      %235 = sbr.rel (0) target = $region37
    $region36: #{input_block_forward.5} parent=1 // pred_region
      %236 = dma.done [#allocation5], 128
    $region37: #{input_block_forward.5} parent=1 // pred_fallthru
      _
    %237 = vsyncpa [#allocation3], 1
    %238 = vsyncpa [#allocation5], 1

// kernel: input_block_forward.3
$region0: #{input_block_forward.3}
  #allocation0 [shape = 'u32[]', space=smem, size = 0x4, offset = 0x4, fixed_abs, tag = 'smem constant byte address 0x4 - core index']
  #allocation1 [shape = 'u32[144,128]{1,0:T(1,128)}', space=vmem, size = 0x12000, scoped, tag = 'internal scratch']
  %s0 = inlined_call_operand.vmem [shape: f32[16,16], index: 0, kind: input, shape index: {}]
  %s1 = inlined_call_operand.hbm [shape: f32[16,32], index: 1, kind: input, shape index: {}]
  %s2 = inlined_call_operand.vmem [shape: f32[1,32], index: 2, kind: input, shape index: {}]
  %s3 = inlined_call_operand.vmem [shape: f32[2,3,32,32], index: 3, kind: input, shape index: {}]
  %s4 = inlined_call_operand.vmem [shape: f32[2,1,32], index: 4, kind: input, shape index: {}]
  %s5 = inlined_call_operand.hbm [shape: f32[2,32,32], index: 5, kind: input, shape index: {}]
  %s6 = inlined_call_operand.hbm [shape: f32[2,1,32], index: 6, kind: input, shape index: {}]
  %s7 = inlined_call_operand.hbm [shape: f32[32,32], index: 7, kind: input, shape index: {}]
  %s8 = inlined_call_operand.vmem [shape: f32[1,32], index: 8, kind: input, shape index: {}]
  %s9 = inlined_call_operand.vmem [shape: f32[32,8], index: 9, kind: input, shape index: {}]
  %s10 = inlined_call_operand.vmem [shape: f32[1,8], index: 10, kind: input, shape index: {}]
  %s11 = inlined_call_operand.vmem [shape: f32[16,32], index: 11, kind: output, shape index: {0}]
  %s12 = inlined_call_operand.vmem [shape: f32[16,8], index: 12, kind: output, shape index: {1}]
  %13 = xla_tuple %s11, %s12
  %s14 = sld [smem:[#allocation0]]
  $region78: #{input_block_forward.3} parent=0
    _
  %s16 = ssub.s32 1, %s14
  %s17 = scalar_select 0, %s16, %s14
  $region1: #{input_block_forward.3} parent=0
    #allocation2 [shape = 'u8[8192]{0}', space=vmem, size = 0x2000, scoped, tag = 'input window, operand 1, single buffered']
    #allocation3 [shape = 's32[1]{0}', space=sflag, size = 0x4, scoped, tag = 'scoped memory for input_block_forward.3']
    #allocation4 [shape = 'u8[32768]{0}', space=vmem, size = 0x8000, scoped, tag = 'input window, operand 5, single buffered']
    #allocation5 [shape = 's32[1]{0}', space=sflag, size = 0x4, scoped, tag = 'scoped memory for input_block_forward.3']
    #allocation6 [shape = 'u8[1024]{0}', space=vmem, size = 0x400, scoped, tag = 'input window, operand 6, single buffered']
    #allocation7 [shape = 'u8[16384]{0}', space=vmem, size = 0x4000, scoped, tag = 'input window, operand 7, single buffered']
    #allocation8 [shape = 's32[1]{0}', space=sflag, size = 0x4, scoped, tag = 'scoped memory for input_block_forward.3']
    %18 = vsyncpa [#allocation3], 0
    %19 = vsyncpa [#allocation5], 0
    %20 = vsyncpa [#allocation8], 0
    // Predicated region
    $region2: #{input_block_forward.3} parent=1 // pred_check
      _
    $region3: #{input_block_forward.3} parent=1 // pred_check_branch
      %22 = sbr.rel (0) target = $region5
    $region4: #{input_block_forward.3} parent=1 // pred_region
      _
    $region5: #{input_block_forward.3} parent=1 // pred_fallthru
      _
    // Predicated region
    $region6: #{input_block_forward.3} parent=1 // pred_check
      _
    $region7: #{input_block_forward.3} parent=1 // pred_check_branch
      %24 = sbr.rel (0) target = $region9
    $region8: #{input_block_forward.3} parent=1 // pred_region
      %s26 = ssub.s32 256, 256
      %27 = vsyncadd [#allocation3], %s26
      %s28 = sshll.u32 [#allocation2], 4
      %s29 = int_to_ptr.vmem [resolvable:$true] %s28
      %34 = dma.hbm_to_vmem [thread:$0]  %s1, 256, %s29, [#allocation3], 128, 128, 8
    $region9: #{input_block_forward.3} parent=1 // pred_fallthru
      _
    // Predicated region
    $region10: #{input_block_forward.3} parent=1 // pred_check
      _
    $region11: #{input_block_forward.3} parent=1 // pred_check_branch
      %36 = sbr.rel (0) target = $region13
    $region12: #{input_block_forward.3} parent=1 // pred_region
      _
    $region13: #{input_block_forward.3} parent=1 // pred_fallthru
      _
    // Predicated region
    $region14: #{input_block_forward.3} parent=1 // pred_check
      _
    $region15: #{input_block_forward.3} parent=1 // pred_check_branch
      %38 = sbr.rel (0) target = $region17
    $region16: #{input_block_forward.3} parent=1 // pred_region
      _
    $region17: #{input_block_forward.3} parent=1 // pred_fallthru
      _
    // Predicated region
    $region18: #{input_block_forward.3} parent=1 // pred_check
      _
    $region19: #{input_block_forward.3} parent=1 // pred_check_branch
      %40 = sbr.rel (0) target = $region21
    $region20: #{input_block_forward.3} parent=1 // pred_region
      _
    $region21: #{input_block_forward.3} parent=1 // pred_fallthru
      _
    // Predicated region
    $region22: #{input_block_forward.3} parent=1 // pred_check
      _
    $region23: #{input_block_forward.3} parent=1 // pred_check_branch
      %42 = sbr.rel (0) target = $region25
    $region24: #{input_block_forward.3} parent=1 // pred_region
      %s44 = ssub.s32 1024, 1024
      %45 = vsyncadd [#allocation5], %s44
      %s46 = sshll.u32 [#allocation4], 4
      %s47 = int_to_ptr.vmem [resolvable:$true] %s46
      %52 = dma.hbm_to_vmem [thread:$0]  %s5, 1024, %s47, [#allocation5], 128, 128, 8
    $region25: #{input_block_forward.3} parent=1 // pred_fallthru
      _
    // Predicated region
    $region26: #{input_block_forward.3} parent=1 // pred_check
      _
    $region27: #{input_block_forward.3} parent=1 // pred_check_branch
      %54 = sbr.rel (0) target = $region29
    $region28: #{input_block_forward.3} parent=1 // pred_region
      %s56 = ssub.s32 32, 32
      %57 = vsyncadd [#allocation5], %s56
      %s58 = sshll.u32 [#allocation6], 4
      %s59 = int_to_ptr.vmem [resolvable:$true] %s58
      %64 = dma.hbm_to_vmem [thread:$0]  %s6, 32, %s59, [#allocation5], 16, 16, 1
    $region29: #{input_block_forward.3} parent=1 // pred_fallthru
      _
    // Predicated region
    $region30: #{input_block_forward.3} parent=1 // pred_check
      _
    $region31: #{input_block_forward.3} parent=1 // pred_check_branch
      %66 = sbr.rel (0) target = $region33
    $region32: #{input_block_forward.3} parent=1 // pred_region
      %s68 = ssub.s32 512, 512
      %69 = vsyncadd [#allocation8], %s68
      %s70 = sshll.u32 [#allocation7], 4
      %s71 = int_to_ptr.vmem [resolvable:$true] %s70
      %76 = dma.hbm_to_vmem [thread:$0]  %s7, 512, %s71, [#allocation8], 128, 128, 8
    $region33: #{input_block_forward.3} parent=1 // pred_fallthru
      _
    // Predicated region
    $region34: #{input_block_forward.3} parent=1 // pred_check
      _
    $region35: #{input_block_forward.3} parent=1 // pred_check_branch
      %78 = sbr.rel (0) target = $region37
    $region36: #{input_block_forward.3} parent=1 // pred_region
      _
    $region37: #{input_block_forward.3} parent=1 // pred_fallthru
      _
    // Predicated region
    $region38: #{input_block_forward.3} parent=1 // pred_check
      _
    $region39: #{input_block_forward.3} parent=1 // pred_check_branch
      %80 = sbr.rel (0) target = $region41
    $region40: #{input_block_forward.3} parent=1 // pred_region
      _
    $region41: #{input_block_forward.3} parent=1 // pred_fallthru
      _
    // Predicated region
    $region42: #{input_block_forward.3} parent=1 // pred_check
      _
    $region43: #{input_block_forward.3} parent=1 // pred_check_branch
      %82 = sbr.rel (0) target = $region45
    $region44: #{input_block_forward.3} parent=1 // pred_region
      _
    $region45: #{input_block_forward.3} parent=1 // pred_fallthru
      _
    // Predicated region
    $region46: #{input_block_forward.3} parent=1 // pred_check
      _
    $region47: #{input_block_forward.3} parent=1 // pred_check_branch
      %84 = sbr.rel (0) target = $region49
    $region48: #{input_block_forward.3} parent=1 // pred_region
      %85 = dma.done [#allocation3], 256
    $region49: #{input_block_forward.3} parent=1 // pred_fallthru
      _
    // Predicated region
    $region50: #{input_block_forward.3} parent=1 // pred_check
      _
    $region51: #{input_block_forward.3} parent=1 // pred_check_branch
      %87 = sbr.rel (0) target = $region53
    $region52: #{input_block_forward.3} parent=1 // pred_region
      %88 = dma.done [#allocation5], 1024
    $region53: #{input_block_forward.3} parent=1 // pred_fallthru
      _
    // Predicated region
    $region54: #{input_block_forward.3} parent=1 // pred_check
      _
    $region55: #{input_block_forward.3} parent=1 // pred_check_branch
      %90 = sbr.rel (0) target = $region57
    $region56: #{input_block_forward.3} parent=1 // pred_region
      %91 = dma.done [#allocation5], 32
    $region57: #{input_block_forward.3} parent=1 // pred_fallthru
      _
    // Predicated region
    $region58: #{input_block_forward.3} parent=1 // pred_check
      _
    $region59: #{input_block_forward.3} parent=1 // pred_check_branch
      %93 = sbr.rel (0) target = $region61
    $region60: #{input_block_forward.3} parent=1 // pred_region
      %94 = dma.done [#allocation8], 512
    $region61: #{input_block_forward.3} parent=1 // pred_fallthru
      _
    %v95 = vld [vmem:[%s0] sm:$0xff]
    %v96 = vld [vmem:[%s0 + $0x8] sm:$0xff]
    %v97 = vld [vmem:[#allocation2] sm:$0xff]
    %v98 = vld [vmem:[#allocation2 + $0x8] sm:$0xff]
    %v99 = vld [vmem:[%s2] sm:$0x1]
    %v101 = vlaneseq
    %v102 = vshrl.u32 %v101, 7
    %v103 = vsub.s32 0, %v102
    %v104 = vrot.slane %v99, %v103
    %vm106 = vcmask 130048
    %v108 = vsel %vm106, %v95, 0
    %v111 = vsel %vm106, %v96, 0
    %113 = vmatprep.subr.mxu0 0.0
    %114 = vmatpush1.msra.mxu0 %v97
    %115 = vmatprep.subr.mxu0 0.0
    %116 = vmatpush1.msra.mxu0 %v98
    %117 = vmatprep.subr.mxu0 0.0
    %118 = vmatpush1.msra.mxu0 0.0
    %119 = vmatprep.subr.mxu0 0.0
    %120 = vmatpush1.msra.mxu0 0.0
    %121 = vmatprep.subr.mxu0 0.0
    %122 = vmatpush1.msra.mxu0 0.0
    %123 = vmatprep.subr.mxu0 0.0
    %124 = vmatpush1.msra.mxu0 0.0
    %125 = vmatprep.subr.mxu0 0.0
    %126 = vmatpush1.msra.mxu0 0.0
    %127 = vmatprep.subr.mxu0 0.0
    %128 = vmatpush1.msra.mxu0 0.0
    %129 = vmatprep.subr.mxu0 0.0
    %130 = vmatpush1.msra.mxu0 0.0
    %131 = vmatprep.subr.mxu0 0.0
    %132 = vmatpush1.msra.mxu0 0.0
    %133 = vmatprep.subr.mxu0 0.0
    %134 = vmatpush1.msra.mxu0 0.0
    %135 = vmatprep.subr.mxu0 0.0
    %136 = vmatpush1.msra.mxu0 0.0
    %137 = vmatprep.subr.mxu0 0.0
    %138 = vmatpush1.msra.mxu0 0.0
    %139 = vmatprep.subr.mxu0 0.0
    %140 = vmatpush1.msra.mxu0 0.0
    %141 = vmatprep.subr.mxu0 0.0
    %142 = vmatpush1.msra.mxu0 0.0
    %143 = vmatprep.subr.mxu0 0.0
    %144 = vmatpush1.msra.mxu0 0.0
    %145 = vmatprep.subr.mxu0 0.0
    %146 = vmatpush1.msra.mxu0 0.0
    %147 = vmatprep.subr.mxu0 0.0
    %148 = vmatpush1.msra.mxu0 0.0
    %149 = vmatprep.subr.mxu0 0.0
    %150 = vmatpush1.msra.mxu0 0.0
    %151 = vmatprep.subr.mxu0 0.0
    %152 = vmatpush1.msra.mxu0 0.0
    %153 = vmatprep.subr.mxu0 0.0
    %154 = vmatpush1.msra.mxu0 0.0
    %155 = vmatprep.subr.mxu0 0.0
    %156 = vmatpush1.msra.mxu0 0.0
    %157 = vmatprep.subr.mxu0 0.0
    %158 = vmatpush1.msra.mxu0 0.0
    %159 = vmatprep.subr.mxu0 0.0
    %160 = vmatpush1.msra.mxu0 0.0
    %161 = vmatprep.subr.mxu0 0.0
    %162 = vmatpush1.msra.mxu0 0.0
    %163 = vmatprep.subr.mxu0 0.0
    %164 = vmatpush1.msra.mxu0 0.0
    %165 = vmatprep.subr.mxu0 0.0
    %166 = vmatpush1.msra.mxu0 0.0
    %167 = vmatprep.subr.mxu0 0.0
    %168 = vmatpush1.msra.mxu0 0.0
    %169 = vmatprep.subr.mxu0 0.0
    %170 = vmatpush1.msra.mxu0 0.0
    %171 = vmatprep.subr.mxu0 0.0
    %172 = vmatpush1.msra.mxu0 0.0
    %173 = vmatprep.subr.mxu0 0.0
    %174 = vmatpush1.msra.mxu0 0.0
    %175 = vmatprep.subr.mxu0 0.0
    %176 = vmatpush1.msra.mxu0 0.0
    %177 = vmatprep.mubr.f32.mxu0 0.0
    %178 = vmatmul.mubr.f32.gmra.mrb[0].mxu0 %v108
    %v179 = vpop.f32.mrb[0].mxu0
    %v180 = vadd.f32 %v104, %v179
    %v181 = vpop.f32.mrb[0].mxu0
    %182 = vmatprep.mubr.f32.mxu0 0.0
    %183 = vmatmul.mubr.f32.gmra.mrb[0].mxu0 %v111
    %v184 = vpop.f32.mrb[0].mxu0
    %v185 = vadd.f32 %v104, %v184
    %v186 = vpop.f32.mrb[0].mxu0
    %187 = vdwg.mxu0
    %v188 = vlaneseq
    %v189 = vshrl.u32 %v188, 7
    %v190 = vadd.s32 %v189, 8
    %v191 = vlaneseq
    %v192 = vand.u32 %v191, 127
    %v193 = vsub.s32 %v189, 1
    %v194 = vsub.s32 %v190, 1
    %vm195 = vcmp.eq.s32.totalorder %v192, %v193
    %vm196 = vcmp.eq.s32.totalorder %v192, %v194
    %v197 = vsel %vm195, 1.0, 0.0
    %v198 = vsel %vm196, 1.0, 0.0
    %v199 = vadd.s32 %v189, 1
    %v200 = vadd.s32 %v190, 1
    %vm201 = vcmp.eq.s32.totalorder %v192, %v199
    %vm202 = vcmp.eq.s32.totalorder %v192, %v200
    %v203 = vsel %vm201, 1.0, 0.0
    %v204 = vsel %vm202, 1.0, 0.0
    %v206 = vsel %vm106, %v197, 0
    %v209 = vsel %vm106, %v198, 0
    %211 = vmatprep.subr.mxu0 0.0
    %212 = vmatpush1.msra.mxu0 %v180
    %213 = vmatprep.subr.mxu0 0.0
    %214 = vmatpush1.msra.mxu0 %v185
    %215 = vmatprep.subr.mxu0 0.0
    %216 = vmatpush1.msra.mxu0 0.0
    %217 = vmatprep.subr.mxu0 0.0
    %218 = vmatpush1.msra.mxu0 0.0
    %219 = vmatprep.subr.mxu0 0.0
    %220 = vmatpush1.msra.mxu0 0.0
    %221 = vmatprep.subr.mxu0 0.0
    %222 = vmatpush1.msra.mxu0 0.0
    %223 = vmatprep.subr.mxu0 0.0
    %224 = vmatpush1.msra.mxu0 0.0
    %225 = vmatprep.subr.mxu0 0.0
    %226 = vmatpush1.msra.mxu0 0.0
    %227 = vmatprep.subr.mxu0 0.0
    %228 = vmatpush1.msra.mxu0 0.0
    %229 = vmatprep.subr.mxu0 0.0
    %230 = vmatpush1.msra.mxu0 0.0
    %231 = vmatprep.subr.mxu0 0.0
    %232 = vmatpush1.msra.mxu0 0.0
    %233 = vmatprep.subr.mxu0 0.0
    %234 = vmatpush1.msra.mxu0 0.0
    %235 = vmatprep.subr.mxu0 0.0
    %236 = vmatpush1.msra.mxu0 0.0
    %237 = vmatprep.subr.mxu0 0.0
    %238 = vmatpush1.msra.mxu0 0.0
    %239 = vmatprep.subr.mxu0 0.0
    %240 = vmatpush1.msra.mxu0 0.0
    %241 = vmatprep.subr.mxu0 0.0
    %242 = vmatpush1.msra.mxu0 0.0
    %243 = vmatprep.subr.mxu0 0.0
    %244 = vmatpush1.msra.mxu0 0.0
    %245 = vmatprep.subr.mxu0 0.0
    %246 = vmatpush1.msra.mxu0 0.0
    %247 = vmatprep.subr.mxu0 0.0
    %248 = vmatpush1.msra.mxu0 0.0
    %249 = vmatprep.subr.mxu0 0.0
    %250 = vmatpush1.msra.mxu0 0.0
    %251 = vmatprep.subr.mxu0 0.0
    %252 = vmatpush1.msra.mxu0 0.0
    %253 = vmatprep.subr.mxu0 0.0
    %254 = vmatpush1.msra.mxu0 0.0
    %255 = vmatprep.subr.mxu0 0.0
    %256 = vmatpush1.msra.mxu0 0.0
    %257 = vmatprep.subr.mxu0 0.0
    %258 = vmatpush1.msra.mxu0 0.0
    %259 = vmatprep.subr.mxu0 0.0
    %260 = vmatpush1.msra.mxu0 0.0
    %261 = vmatprep.subr.mxu0 0.0
    %262 = vmatpush1.msra.mxu0 0.0
    %263 = vmatprep.subr.mxu0 0.0
    %264 = vmatpush1.msra.mxu0 0.0
    %265 = vmatprep.subr.mxu0 0.0
    %266 = vmatpush1.msra.mxu0 0.0
    %267 = vmatprep.subr.mxu0 0.0
    %268 = vmatpush1.msra.mxu0 0.0
    %269 = vmatprep.subr.mxu0 0.0
    %270 = vmatpush1.msra.mxu0 0.0
    %271 = vmatprep.subr.mxu0 0.0
    %272 = vmatpush1.msra.mxu0 0.0
    %273 = vmatprep.subr.mxu0 0.0
    %274 = vmatpush1.msra.mxu0 0.0
    %275 = vmatprep.mubr.f32.mxu0 0.0
    %276 = vmatmul.mubr.f32.gmra.mrb[0].mxu0 %v206
    %v277 = vpop.f32.mrb[0].mxu0
    %v278 = vadd.f32 0.0, %v277
    %v279 = vpop.f32.mrb[0].mxu0
    %280 = vmatprep.mubr.f32.mxu0 0.0
    %281 = vmatmul.mubr.f32.gmra.mrb[0].mxu0 %v209
    %v282 = vpop.f32.mrb[0].mxu0
    %v283 = vadd.f32 0.0, %v282
    %v284 = vpop.f32.mrb[0].mxu0
    %285 = vdwg.mxu0
    %v287 = vsel %vm106, %v203, 0
    %v290 = vsel %vm106, %v204, 0
    %292 = vmatprep.subr.mxu0 0.0
    %293 = vmatpush1.msra.mxu0 %v180
    %294 = vmatprep.subr.mxu0 0.0
    %295 = vmatpush1.msra.mxu0 %v185
    %296 = vmatprep.subr.mxu0 0.0
    %297 = vmatpush1.msra.mxu0 0.0
    %298 = vmatprep.subr.mxu0 0.0
    %299 = vmatpush1.msra.mxu0 0.0
    %300 = vmatprep.subr.mxu0 0.0
    %301 = vmatpush1.msra.mxu0 0.0
    %302 = vmatprep.subr.mxu0 0.0
    %303 = vmatpush1.msra.mxu0 0.0
    %304 = vmatprep.subr.mxu0 0.0
    %305 = vmatpush1.msra.mxu0 0.0
    %306 = vmatprep.subr.mxu0 0.0
    %307 = vmatpush1.msra.mxu0 0.0
    %308 = vmatprep.subr.mxu0 0.0
    %309 = vmatpush1.msra.mxu0 0.0
    %310 = vmatprep.subr.mxu0 0.0
    %311 = vmatpush1.msra.mxu0 0.0
    %312 = vmatprep.subr.mxu0 0.0
    %313 = vmatpush1.msra.mxu0 0.0
    %314 = vmatprep.subr.mxu0 0.0
    %315 = vmatpush1.msra.mxu0 0.0
    %316 = vmatprep.subr.mxu0 0.0
    %317 = vmatpush1.msra.mxu0 0.0
    %318 = vmatprep.subr.mxu0 0.0
    %319 = vmatpush1.msra.mxu0 0.0
    %320 = vmatprep.subr.mxu0 0.0
    %321 = vmatpush1.msra.mxu0 0.0
    %322 = vmatprep.subr.mxu0 0.0
    %323 = vmatpush1.msra.mxu0 0.0
    %324 = vmatprep.subr.mxu0 0.0
    %325 = vmatpush1.msra.mxu0 0.0
    %326 = vmatprep.subr.mxu0 0.0
    %327 = vmatpush1.msra.mxu0 0.0
    %328 = vmatprep.subr.mxu0 0.0
    %329 = vmatpush1.msra.mxu0 0.0
    %330 = vmatprep.subr.mxu0 0.0
    %331 = vmatpush1.msra.mxu0 0.0
    %332 = vmatprep.subr.mxu0 0.0
    %333 = vmatpush1.msra.mxu0 0.0
    %334 = vmatprep.subr.mxu0 0.0
    %335 = vmatpush1.msra.mxu0 0.0
    %336 = vmatprep.subr.mxu0 0.0
    %337 = vmatpush1.msra.mxu0 0.0
    %338 = vmatprep.subr.mxu0 0.0
    %339 = vmatpush1.msra.mxu0 0.0
    %340 = vmatprep.subr.mxu0 0.0
    %341 = vmatpush1.msra.mxu0 0.0
    %342 = vmatprep.subr.mxu0 0.0
    %343 = vmatpush1.msra.mxu0 0.0
    %344 = vmatprep.subr.mxu0 0.0
    %345 = vmatpush1.msra.mxu0 0.0
    %346 = vmatprep.subr.mxu0 0.0
    %347 = vmatpush1.msra.mxu0 0.0
    %348 = vmatprep.subr.mxu0 0.0
    %349 = vmatpush1.msra.mxu0 0.0
    %350 = vmatprep.subr.mxu0 0.0
    %351 = vmatpush1.msra.mxu0 0.0
    %352 = vmatprep.subr.mxu0 0.0
    %353 = vmatpush1.msra.mxu0 0.0
    %354 = vmatprep.subr.mxu0 0.0
    %355 = vmatpush1.msra.mxu0 0.0
    %356 = vmatprep.mubr.f32.mxu0 0.0
    %357 = vmatmul.mubr.f32.gmra.mrb[0].mxu0 %v287
    %v358 = vpop.f32.mrb[0].mxu0
    %v359 = vadd.f32 0.0, %v358
    %v360 = vpop.f32.mrb[0].mxu0
    %361 = vmatprep.mubr.f32.mxu0 0.0
    %362 = vmatmul.mubr.f32.gmra.mrb[0].mxu0 %v290
    %v363 = vpop.f32.mrb[0].mxu0
    %v364 = vadd.f32 0.0, %v363
    %v365 = vpop.f32.mrb[0].mxu0
    %366 = vdwg.mxu0
    %v367 = vld [vmem:[%s3] sm:$0xff]
    %v368 = vld [vmem:[%s3 + $0x8] sm:$0xff]
    %v369 = vld [vmem:[%s3 + $0x10] sm:$0xff]
    %v370 = vld [vmem:[%s3 + $0x18] sm:$0xff]
    %v371 = vld [vmem:[%s3 + $0x20] sm:$0xff]
    %v372 = vld [vmem:[%s3 + $0x28] sm:$0xff]
    %v373 = vld [vmem:[%s3 + $0x30] sm:$0xff]
    %v374 = vld [vmem:[%s3 + $0x38] sm:$0xff]
    %v375 = vld [vmem:[%s3 + $0x40] sm:$0xff]
    %v376 = vld [vmem:[%s3 + $0x48] sm:$0xff]
    %v377 = vld [vmem:[%s3 + $0x50] sm:$0xff]
    %v378 = vld [vmem:[%s3 + $0x58] sm:$0xff]
    %vm379 = vcmask 261120
    %v381 = vsel %vm379, %v180, 0
    %v384 = vsel %vm379, %v185, 0
    %386 = vmatprep.subr.mxu0 0.0
    %387 = vmatpush1.msra.mxu0 %v371
    %388 = vmatprep.subr.mxu0 0.0
    %389 = vmatpush1.msra.mxu0 %v372
    %390 = vmatprep.subr.mxu0 0.0
    %391 = vmatpush1.msra.mxu0 %v373
    %392 = vmatprep.subr.mxu0 0.0
    %393 = vmatpush1.msra.mxu0 %v374
    %394 = vmatprep.subr.mxu0 0.0
    %395 = vmatpush1.msra.mxu0 0.0
    %396 = vmatprep.subr.mxu0 0.0
    %397 = vmatpush1.msra.mxu0 0.0
    %398 = vmatprep.subr.mxu0 0.0
    %399 = vmatpush1.msra.mxu0 0.0
    %400 = vmatprep.subr.mxu0 0.0
    %401 = vmatpush1.msra.mxu0 0.0
    %402 = vmatprep.subr.mxu0 0.0
    %403 = vmatpush1.msra.mxu0 0.0
    %404 = vmatprep.subr.mxu0 0.0
    %405 = vmatpush1.msra.mxu0 0.0
    %406 = vmatprep.subr.mxu0 0.0
    %407 = vmatpush1.msra.mxu0 0.0
    %408 = vmatprep.subr.mxu0 0.0
    %409 = vmatpush1.msra.mxu0 0.0
    %410 = vmatprep.subr.mxu0 0.0
    %411 = vmatpush1.msra.mxu0 0.0
    %412 = vmatprep.subr.mxu0 0.0
    %413 = vmatpush1.msra.mxu0 0.0
    %414 = vmatprep.subr.mxu0 0.0
    %415 = vmatpush1.msra.mxu0 0.0
    %416 = vmatprep.subr.mxu0 0.0
    %417 = vmatpush1.msra.mxu0 0.0
    %418 = vmatprep.subr.mxu0 0.0
    %419 = vmatpush1.msra.mxu0 0.0
    %420 = vmatprep.subr.mxu0 0.0
    %421 = vmatpush1.msra.mxu0 0.0
    %422 = vmatprep.subr.mxu0 0.0
    %423 = vmatpush1.msra.mxu0 0.0
    %424 = vmatprep.subr.mxu0 0.0
    %425 = vmatpush1.msra.mxu0 0.0
    %426 = vmatprep.subr.mxu0 0.0
    %427 = vmatpush1.msra.mxu0 0.0
    %428 = vmatprep.subr.mxu0 0.0
    %429 = vmatpush1.msra.mxu0 0.0
    %430 = vmatprep.subr.mxu0 0.0
    %431 = vmatpush1.msra.mxu0 0.0
    %432 = vmatprep.subr.mxu0 0.0
    %433 = vmatpush1.msra.mxu0 0.0
    %434 = vmatprep.subr.mxu0 0.0
    %435 = vmatpush1.msra.mxu0 0.0
    %436 = vmatprep.subr.mxu0 0.0
    %437 = vmatpush1.msra.mxu0 0.0
    %438 = vmatprep.subr.mxu0 0.0
    %439 = vmatpush1.msra.mxu0 0.0
    %440 = vmatprep.subr.mxu0 0.0
    %441 = vmatpush1.msra.mxu0 0.0
    %442 = vmatprep.subr.mxu0 0.0
    %443 = vmatpush1.msra.mxu0 0.0
    %444 = vmatprep.subr.mxu0 0.0
    %445 = vmatpush1.msra.mxu0 0.0
    %446 = vmatprep.subr.mxu0 0.0
    %447 = vmatpush1.msra.mxu0 0.0
    %448 = vmatprep.subr.mxu0 0.0
    %449 = vmatpush1.msra.mxu0 0.0
    %450 = vmatprep.mubr.f32.mxu0 0.0
    %451 = vmatmul.mubr.f32.gmra.mrb[0].mxu0 %v381
    %v452 = vpop.f32.mrb[0].mxu0
    %v453 = vadd.f32 0.0, %v452
    %v454 = vpop.f32.mrb[0].mxu0
    %455 = vmatprep.mubr.f32.mxu0 0.0
    %456 = vmatmul.mubr.f32.gmra.mrb[0].mxu0 %v384
    %v457 = vpop.f32.mrb[0].mxu0
    %v458 = vadd.f32 0.0, %v457
    %v459 = vpop.f32.mrb[0].mxu0
    %460 = vdwg.mxu0
    %v462 = vsel %vm379, %v278, 0
    %v465 = vsel %vm379, %v283, 0
    %467 = vmatprep.subr.mxu0 0.0
    %468 = vmatpush1.msra.mxu0 %v367
    %469 = vmatprep.subr.mxu0 0.0
    %470 = vmatpush1.msra.mxu0 %v368
    %471 = vmatprep.subr.mxu0 0.0
    %472 = vmatpush1.msra.mxu0 %v369
    %473 = vmatprep.subr.mxu0 0.0
    %474 = vmatpush1.msra.mxu0 %v370
    %475 = vmatprep.subr.mxu0 0.0
    %476 = vmatpush1.msra.mxu0 0.0
    %477 = vmatprep.subr.mxu0 0.0
    %478 = vmatpush1.msra.mxu0 0.0
    %479 = vmatprep.subr.mxu0 0.0
    %480 = vmatpush1.msra.mxu0 0.0
    %481 = vmatprep.subr.mxu0 0.0
    %482 = vmatpush1.msra.mxu0 0.0
    %483 = vmatprep.subr.mxu0 0.0
    %484 = vmatpush1.msra.mxu0 0.0
    %485 = vmatprep.subr.mxu0 0.0
    %486 = vmatpush1.msra.mxu0 0.0
    %487 = vmatprep.subr.mxu0 0.0
    %488 = vmatpush1.msra.mxu0 0.0
    %489 = vmatprep.subr.mxu0 0.0
    %490 = vmatpush1.msra.mxu0 0.0
    %491 = vmatprep.subr.mxu0 0.0
    %492 = vmatpush1.msra.mxu0 0.0
    %493 = vmatprep.subr.mxu0 0.0
    %494 = vmatpush1.msra.mxu0 0.0
    %495 = vmatprep.subr.mxu0 0.0
    %496 = vmatpush1.msra.mxu0 0.0
    %497 = vmatprep.subr.mxu0 0.0
    %498 = vmatpush1.msra.mxu0 0.0
    %499 = vmatprep.subr.mxu0 0.0
    %500 = vmatpush1.msra.mxu0 0.0
    %501 = vmatprep.subr.mxu0 0.0
    %502 = vmatpush1.msra.mxu0 0.0
    %503 = vmatprep.subr.mxu0 0.0
    %504 = vmatpush1.msra.mxu0 0.0
    %505 = vmatprep.subr.mxu0 0.0
    %506 = vmatpush1.msra.mxu0 0.0
    %507 = vmatprep.subr.mxu0 0.0
    %508 = vmatpush1.msra.mxu0 0.0
    %509 = vmatprep.subr.mxu0 0.0
    %510 = vmatpush1.msra.mxu0 0.0
    %511 = vmatprep.subr.mxu0 0.0
    %512 = vmatpush1.msra.mxu0 0.0
    %513 = vmatprep.subr.mxu0 0.0
    %514 = vmatpush1.msra.mxu0 0.0
    %515 = vmatprep.subr.mxu0 0.0
    %516 = vmatpush1.msra.mxu0 0.0
    %517 = vmatprep.subr.mxu0 0.0
    %518 = vmatpush1.msra.mxu0 0.0
    %519 = vmatprep.subr.mxu0 0.0
    %520 = vmatpush1.msra.mxu0 0.0
    %521 = vmatprep.subr.mxu0 0.0
    %522 = vmatpush1.msra.mxu0 0.0
    %523 = vmatprep.subr.mxu0 0.0
    %524 = vmatpush1.msra.mxu0 0.0
    %525 = vmatprep.subr.mxu0 0.0
    %526 = vmatpush1.msra.mxu0 0.0
    %527 = vmatprep.subr.mxu0 0.0
    %528 = vmatpush1.msra.mxu0 0.0
    %529 = vmatprep.subr.mxu0 0.0
    %530 = vmatpush1.msra.mxu0 0.0
    %531 = vmatprep.mubr.f32.mxu0 0.0
    %532 = vmatmul.mubr.f32.gmra.mrb[0].mxu0 %v462
    %v533 = vpop.f32.mrb[0].mxu0
    %v534 = vadd.f32 %v453, %v533
    %v535 = vpop.f32.mrb[0].mxu0
    %536 = vmatprep.mubr.f32.mxu0 0.0
    %537 = vmatmul.mubr.f32.gmra.mrb[0].mxu0 %v465
    %v538 = vpop.f32.mrb[0].mxu0
    %v539 = vadd.f32 %v458, %v538
    %v540 = vpop.f32.mrb[0].mxu0
    %541 = vdwg.mxu0
    %v543 = vsel %vm379, %v359, 0
    %v546 = vsel %vm379, %v364, 0
    %548 = vmatprep.subr.mxu0 0.0
    %549 = vmatpush1.msra.mxu0 %v375
    %550 = vmatprep.subr.mxu0 0.0
    %551 = vmatpush1.msra.mxu0 %v376
    %552 = vmatprep.subr.mxu0 0.0
    %553 = vmatpush1.msra.mxu0 %v377
    %554 = vmatprep.subr.mxu0 0.0
    %555 = vmatpush1.msra.mxu0 %v378
    %556 = vmatprep.subr.mxu0 0.0
    %557 = vmatpush1.msra.mxu0 0.0
    %558 = vmatprep.subr.mxu0 0.0
    %559 = vmatpush1.msra.mxu0 0.0
    %560 = vmatprep.subr.mxu0 0.0
    %561 = vmatpush1.msra.mxu0 0.0
    %562 = vmatprep.subr.mxu0 0.0
    %563 = vmatpush1.msra.mxu0 0.0
    %564 = vmatprep.subr.mxu0 0.0
    %565 = vmatpush1.msra.mxu0 0.0
    %566 = vmatprep.subr.mxu0 0.0
    %567 = vmatpush1.msra.mxu0 0.0
    %568 = vmatprep.subr.mxu0 0.0
    %569 = vmatpush1.msra.mxu0 0.0
    %570 = vmatprep.subr.mxu0 0.0
    %571 = vmatpush1.msra.mxu0 0.0
    %572 = vmatprep.subr.mxu0 0.0
    %573 = vmatpush1.msra.mxu0 0.0
    %574 = vmatprep.subr.mxu0 0.0
    %575 = vmatpush1.msra.mxu0 0.0
    %576 = vmatprep.subr.mxu0 0.0
    %577 = vmatpush1.msra.mxu0 0.0
    %578 = vmatprep.subr.mxu0 0.0
    %579 = vmatpush1.msra.mxu0 0.0
    %580 = vmatprep.subr.mxu0 0.0
    %581 = vmatpush1.msra.mxu0 0.0
    %582 = vmatprep.subr.mxu0 0.0
    %583 = vmatpush1.msra.mxu0 0.0
    %584 = vmatprep.subr.mxu0 0.0
    %585 = vmatpush1.msra.mxu0 0.0
    %586 = vmatprep.subr.mxu0 0.0
    %587 = vmatpush1.msra.mxu0 0.0
    %588 = vmatprep.subr.mxu0 0.0
    %589 = vmatpush1.msra.mxu0 0.0
    %590 = vmatprep.subr.mxu0 0.0
    %591 = vmatpush1.msra.mxu0 0.0
    %592 = vmatprep.subr.mxu0 0.0
    %593 = vmatpush1.msra.mxu0 0.0
    %594 = vmatprep.subr.mxu0 0.0
    %595 = vmatpush1.msra.mxu0 0.0
    %596 = vmatprep.subr.mxu0 0.0
    %597 = vmatpush1.msra.mxu0 0.0
    %598 = vmatprep.subr.mxu0 0.0
    %599 = vmatpush1.msra.mxu0 0.0
    %600 = vmatprep.subr.mxu0 0.0
    %601 = vmatpush1.msra.mxu0 0.0
    %602 = vmatprep.subr.mxu0 0.0
    %603 = vmatpush1.msra.mxu0 0.0
    %604 = vmatprep.subr.mxu0 0.0
    %605 = vmatpush1.msra.mxu0 0.0
    %606 = vmatprep.subr.mxu0 0.0
    %607 = vmatpush1.msra.mxu0 0.0
    %608 = vmatprep.subr.mxu0 0.0
    %609 = vmatpush1.msra.mxu0 0.0
    %610 = vmatprep.subr.mxu0 0.0
    %611 = vmatpush1.msra.mxu0 0.0
    %612 = vmatprep.mubr.f32.mxu0 0.0
    %613 = vmatmul.mubr.f32.gmra.mrb[0].mxu0 %v543
    %v614 = vpop.f32.mrb[0].mxu0
    %v615 = vadd.f32 0.0, %v614
    %v616 = vpop.f32.mrb[0].mxu0
    %617 = vmatprep.mubr.f32.mxu0 0.0
    %618 = vmatmul.mubr.f32.gmra.mrb[0].mxu0 %v546
    %v619 = vpop.f32.mrb[0].mxu0
    %v620 = vadd.f32 0.0, %v619
    %v621 = vpop.f32.mrb[0].mxu0
    %622 = vdwg.mxu0
    %v623 = vadd.f32 %v534, %v615
    %v624 = vadd.f32 %v539, %v620
    %v625 = vld [vmem:[%s4] sm:$0x1]
    %v627 = vlaneseq
    %v628 = vshrl.u32 %v627, 7
    %v629 = vsub.s32 0, %v628
    %v630 = vrot.slane %v625, %v629
    %v632 = vadd.f32 %v623, %v630
    %v633 = vadd.f32 %v624, %v630
    %v634 = vmax.f32 %v632, 0.0
    %v635 = vmax.f32 %v633, 0.0
    %v636 = vld [vmem:[#allocation4] sm:$0xff]
    %v637 = vld [vmem:[#allocation4 + $0x8] sm:$0xff]
    %v638 = vld [vmem:[#allocation4 + $0x10] sm:$0xff]
    %v639 = vld [vmem:[#allocation4 + $0x18] sm:$0xff]
    %v640 = vld [vmem:[#allocation6] sm:$0x1]
    %v642 = vlaneseq
    %v643 = vshrl.u32 %v642, 7
    %v644 = vsub.s32 0, %v643
    %v645 = vrot.slane %v640, %v644
    %v648 = vsel %vm379, %v634, 0
    %v651 = vsel %vm379, %v635, 0
    %653 = vmatprep.subr.mxu0 0.0
    %654 = vmatpush1.msra.mxu0 %v636
    %655 = vmatprep.subr.mxu0 0.0
    %656 = vmatpush1.msra.mxu0 %v637
    %657 = vmatprep.subr.mxu0 0.0
    %658 = vmatpush1.msra.mxu0 %v638
    %659 = vmatprep.subr.mxu0 0.0
    %660 = vmatpush1.msra.mxu0 %v639
    %661 = vmatprep.subr.mxu0 0.0
    %662 = vmatpush1.msra.mxu0 0.0
    %663 = vmatprep.subr.mxu0 0.0
    %664 = vmatpush1.msra.mxu0 0.0
    %665 = vmatprep.subr.mxu0 0.0
    %666 = vmatpush1.msra.mxu0 0.0
    %667 = vmatprep.subr.mxu0 0.0
    %668 = vmatpush1.msra.mxu0 0.0
    %669 = vmatprep.subr.mxu0 0.0
    %670 = vmatpush1.msra.mxu0 0.0
    %671 = vmatprep.subr.mxu0 0.0
    %672 = vmatpush1.msra.mxu0 0.0
    %673 = vmatprep.subr.mxu0 0.0
    %674 = vmatpush1.msra.mxu0 0.0
    %675 = vmatprep.subr.mxu0 0.0
    %676 = vmatpush1.msra.mxu0 0.0
    %677 = vmatprep.subr.mxu0 0.0
    %678 = vmatpush1.msra.mxu0 0.0
    %679 = vmatprep.subr.mxu0 0.0
    %680 = vmatpush1.msra.mxu0 0.0
    %681 = vmatprep.subr.mxu0 0.0
    %682 = vmatpush1.msra.mxu0 0.0
    %683 = vmatprep.subr.mxu0 0.0
    %684 = vmatpush1.msra.mxu0 0.0
    %685 = vmatprep.subr.mxu0 0.0
    %686 = vmatpush1.msra.mxu0 0.0
    %687 = vmatprep.subr.mxu0 0.0
    %688 = vmatpush1.msra.mxu0 0.0
    %689 = vmatprep.subr.mxu0 0.0
    %690 = vmatpush1.msra.mxu0 0.0
    %691 = vmatprep.subr.mxu0 0.0
    %692 = vmatpush1.msra.mxu0 0.0
    %693 = vmatprep.subr.mxu0 0.0
    %694 = vmatpush1.msra.mxu0 0.0
    %695 = vmatprep.subr.mxu0 0.0
    %696 = vmatpush1.msra.mxu0 0.0
    %697 = vmatprep.subr.mxu0 0.0
    %698 = vmatpush1.msra.mxu0 0.0
    %699 = vmatprep.subr.mxu0 0.0
    %700 = vmatpush1.msra.mxu0 0.0
    %701 = vmatprep.subr.mxu0 0.0
    %702 = vmatpush1.msra.mxu0 0.0
    %703 = vmatprep.subr.mxu0 0.0
    %704 = vmatpush1.msra.mxu0 0.0
    %705 = vmatprep.subr.mxu0 0.0
    %706 = vmatpush1.msra.mxu0 0.0
    %707 = vmatprep.subr.mxu0 0.0
    %708 = vmatpush1.msra.mxu0 0.0
    %709 = vmatprep.subr.mxu0 0.0
    %710 = vmatpush1.msra.mxu0 0.0
    %711 = vmatprep.subr.mxu0 0.0
    %712 = vmatpush1.msra.mxu0 0.0
    %713 = vmatprep.subr.mxu0 0.0
    %714 = vmatpush1.msra.mxu0 0.0
    %715 = vmatprep.subr.mxu0 0.0
    %716 = vmatpush1.msra.mxu0 0.0
    %717 = vmatprep.mubr.f32.mxu0 0.0
    %718 = vmatmul.mubr.f32.gmra.mrb[0].mxu0 %v648
    %v719 = vpop.f32.mrb[0].mxu0
    %v720 = vadd.f32 %v645, %v719
    %v721 = vpop.f32.mrb[0].mxu0
    %722 = vmatprep.mubr.f32.mxu0 0.0
    %723 = vmatmul.mubr.f32.gmra.mrb[0].mxu0 %v651
    %v724 = vpop.f32.mrb[0].mxu0
    %v725 = vadd.f32 %v645, %v724
    %v726 = vpop.f32.mrb[0].mxu0
    %727 = vdwg.mxu0
    %v728 = vadd.f32 %v180, %v720
    %v729 = vadd.f32 %v185, %v725
    %v730 = vsub.s32 %v189, 2
    %v731 = vsub.s32 %v190, 2
    %vm732 = vcmp.eq.s32.totalorder %v192, %v730
    %vm733 = vcmp.eq.s32.totalorder %v192, %v731
    %v734 = vsel %vm732, 1.0, 0.0
    %v735 = vsel %vm733, 1.0, 0.0
    %v736 = vadd.s32 %v189, 2
    %v737 = vadd.s32 %v190, 2
    %vm738 = vcmp.eq.s32.totalorder %v192, %v736
    %vm739 = vcmp.eq.s32.totalorder %v192, %v737
    %v740 = vsel %vm738, 1.0, 0.0
    %v741 = vsel %vm739, 1.0, 0.0
    %v743 = vsel %vm106, %v734, 0
    %v746 = vsel %vm106, %v735, 0
    %748 = vmatprep.subr.mxu0 0.0
    %749 = vmatpush1.msra.mxu0 %v728
    %750 = vmatprep.subr.mxu0 0.0
    %751 = vmatpush1.msra.mxu0 %v729
    %752 = vmatprep.subr.mxu0 0.0
    %753 = vmatpush1.msra.mxu0 0.0
    %754 = vmatprep.subr.mxu0 0.0
    %755 = vmatpush1.msra.mxu0 0.0
    %756 = vmatprep.subr.mxu0 0.0
    %757 = vmatpush1.msra.mxu0 0.0
    %758 = vmatprep.subr.mxu0 0.0
    %759 = vmatpush1.msra.mxu0 0.0
    %760 = vmatprep.subr.mxu0 0.0
    %761 = vmatpush1.msra.mxu0 0.0
    %762 = vmatprep.subr.mxu0 0.0
    %763 = vmatpush1.msra.mxu0 0.0
    %764 = vmatprep.subr.mxu0 0.0
    %765 = vmatpush1.msra.mxu0 0.0
    %766 = vmatprep.subr.mxu0 0.0
    %767 = vmatpush1.msra.mxu0 0.0
    %768 = vmatprep.subr.mxu0 0.0
    %769 = vmatpush1.msra.mxu0 0.0
    %770 = vmatprep.subr.mxu0 0.0
    %771 = vmatpush1.msra.mxu0 0.0
    %772 = vmatprep.subr.mxu0 0.0
    %773 = vmatpush1.msra.mxu0 0.0
    %774 = vmatprep.subr.mxu0 0.0
    %775 = vmatpush1.msra.mxu0 0.0
    %776 = vmatprep.subr.mxu0 0.0
    %777 = vmatpush1.msra.mxu0 0.0
    %778 = vmatprep.subr.mxu0 0.0
    %779 = vmatpush1.msra.mxu0 0.0
    %780 = vmatprep.subr.mxu0 0.0
    %781 = vmatpush1.msra.mxu0 0.0
    %782 = vmatprep.subr.mxu0 0.0
    %783 = vmatpush1.msra.mxu0 0.0
    %784 = vmatprep.subr.mxu0 0.0
    %785 = vmatpush1.msra.mxu0 0.0
    %786 = vmatprep.subr.mxu0 0.0
    %787 = vmatpush1.msra.mxu0 0.0
    %788 = vmatprep.subr.mxu0 0.0
    %789 = vmatpush1.msra.mxu0 0.0
    %790 = vmatprep.subr.mxu0 0.0
    %791 = vmatpush1.msra.mxu0 0.0
    %792 = vmatprep.subr.mxu0 0.0
    %793 = vmatpush1.msra.mxu0 0.0
    %794 = vmatprep.subr.mxu0 0.0
    %795 = vmatpush1.msra.mxu0 0.0
    %796 = vmatprep.subr.mxu0 0.0
    %797 = vmatpush1.msra.mxu0 0.0
    %798 = vmatprep.subr.mxu0 0.0
    %799 = vmatpush1.msra.mxu0 0.0
    %800 = vmatprep.subr.mxu0 0.0
    %801 = vmatpush1.msra.mxu0 0.0
    %802 = vmatprep.subr.mxu0 0.0
    %803 = vmatpush1.msra.mxu0 0.0
    %804 = vmatprep.subr.mxu0 0.0
    %805 = vmatpush1.msra.mxu0 0.0
    %806 = vmatprep.subr.mxu0 0.0
    %807 = vmatpush1.msra.mxu0 0.0
    %808 = vmatprep.subr.mxu0 0.0
    %809 = vmatpush1.msra.mxu0 0.0
    %810 = vmatprep.subr.mxu0 0.0
    %811 = vmatpush1.msra.mxu0 0.0
    %812 = vmatprep.mubr.f32.mxu0 0.0
    %813 = vmatmul.mubr.f32.gmra.mrb[0].mxu0 %v743
    %v814 = vpop.f32.mrb[0].mxu0
    %v815 = vadd.f32 0.0, %v814
    %v816 = vpop.f32.mrb[0].mxu0
    %817 = vmatprep.mubr.f32.mxu0 0.0
    %818 = vmatmul.mubr.f32.gmra.mrb[0].mxu0 %v746
    %v819 = vpop.f32.mrb[0].mxu0
    %v820 = vadd.f32 0.0, %v819
    %v821 = vpop.f32.mrb[0].mxu0
    %822 = vdwg.mxu0
    %v824 = vsel %vm106, %v740, 0
    %v827 = vsel %vm106, %v741, 0
    %829 = vmatprep.subr.mxu0 0.0
    %830 = vmatpush1.msra.mxu0 %v728
    %831 = vmatprep.subr.mxu0 0.0
    %832 = vmatpush1.msra.mxu0 %v729
    %833 = vmatprep.subr.mxu0 0.0
    %834 = vmatpush1.msra.mxu0 0.0
    %835 = vmatprep.subr.mxu0 0.0
    %836 = vmatpush1.msra.mxu0 0.0
    %837 = vmatprep.subr.mxu0 0.0
    %838 = vmatpush1.msra.mxu0 0.0
    %839 = vmatprep.subr.mxu0 0.0
    %840 = vmatpush1.msra.mxu0 0.0
    %841 = vmatprep.subr.mxu0 0.0
    %842 = vmatpush1.msra.mxu0 0.0
    %843 = vmatprep.subr.mxu0 0.0
    %844 = vmatpush1.msra.mxu0 0.0
    %845 = vmatprep.subr.mxu0 0.0
    %846 = vmatpush1.msra.mxu0 0.0
    %847 = vmatprep.subr.mxu0 0.0
    %848 = vmatpush1.msra.mxu0 0.0
    %849 = vmatprep.subr.mxu0 0.0
    %850 = vmatpush1.msra.mxu0 0.0
    %851 = vmatprep.subr.mxu0 0.0
    %852 = vmatpush1.msra.mxu0 0.0
    %853 = vmatprep.subr.mxu0 0.0
    %854 = vmatpush1.msra.mxu0 0.0
    %855 = vmatprep.subr.mxu0 0.0
    %856 = vmatpush1.msra.mxu0 0.0
    %857 = vmatprep.subr.mxu0 0.0
    %858 = vmatpush1.msra.mxu0 0.0
    %859 = vmatprep.subr.mxu0 0.0
    %860 = vmatpush1.msra.mxu0 0.0
    %861 = vmatprep.subr.mxu0 0.0
    %862 = vmatpush1.msra.mxu0 0.0
    %863 = vmatprep.subr.mxu0 0.0
    %864 = vmatpush1.msra.mxu0 0.0
    %865 = vmatprep.subr.mxu0 0.0
    %866 = vmatpush1.msra.mxu0 0.0
    %867 = vmatprep.subr.mxu0 0.0
    %868 = vmatpush1.msra.mxu0 0.0
    %869 = vmatprep.subr.mxu0 0.0
    %870 = vmatpush1.msra.mxu0 0.0
    %871 = vmatprep.subr.mxu0 0.0
    %872 = vmatpush1.msra.mxu0 0.0
    %873 = vmatprep.subr.mxu0 0.0
    %874 = vmatpush1.msra.mxu0 0.0
    %875 = vmatprep.subr.mxu0 0.0
    %876 = vmatpush1.msra.mxu0 0.0
    %877 = vmatprep.subr.mxu0 0.0
    %878 = vmatpush1.msra.mxu0 0.0
    %879 = vmatprep.subr.mxu0 0.0
    %880 = vmatpush1.msra.mxu0 0.0
    %881 = vmatprep.subr.mxu0 0.0
    %882 = vmatpush1.msra.mxu0 0.0
    %883 = vmatprep.subr.mxu0 0.0
    %884 = vmatpush1.msra.mxu0 0.0
    %885 = vmatprep.subr.mxu0 0.0
    %886 = vmatpush1.msra.mxu0 0.0
    %887 = vmatprep.subr.mxu0 0.0
    %888 = vmatpush1.msra.mxu0 0.0
    %889 = vmatprep.subr.mxu0 0.0
    %890 = vmatpush1.msra.mxu0 0.0
    %891 = vmatprep.subr.mxu0 0.0
    %892 = vmatpush1.msra.mxu0 0.0
    %893 = vmatprep.mubr.f32.mxu0 0.0
    %894 = vmatmul.mubr.f32.gmra.mrb[0].mxu0 %v824
    %v895 = vpop.f32.mrb[0].mxu0
    %v896 = vadd.f32 0.0, %v895
    %v897 = vpop.f32.mrb[0].mxu0
    %898 = vmatprep.mubr.f32.mxu0 0.0
    %899 = vmatmul.mubr.f32.gmra.mrb[0].mxu0 %v827
    %v900 = vpop.f32.mrb[0].mxu0
    %v901 = vadd.f32 0.0, %v900
    %v902 = vpop.f32.mrb[0].mxu0
    %903 = vdwg.mxu0
    %s904 = scalar_lea.vmem %s3, 96
    %v905 = vld [vmem:[%s904] sm:$0xff]
    %v906 = vld [vmem:[%s904 + $0x8] sm:$0xff]
    %v907 = vld [vmem:[%s904 + $0x10] sm:$0xff]
    %v908 = vld [vmem:[%s904 + $0x18] sm:$0xff]
    %v909 = vld [vmem:[%s904 + $0x20] sm:$0xff]
    %v910 = vld [vmem:[%s904 + $0x28] sm:$0xff]
    %v911 = vld [vmem:[%s904 + $0x30] sm:$0xff]
    %v912 = vld [vmem:[%s904 + $0x38] sm:$0xff]
    %v913 = vld [vmem:[%s904 + $0x40] sm:$0xff]
    %v914 = vld [vmem:[%s904 + $0x48] sm:$0xff]
    %v915 = vld [vmem:[%s904 + $0x50] sm:$0xff]
    %v916 = vld [vmem:[%s904 + $0x58] sm:$0xff]
    %v918 = vsel %vm379, %v728, 0
    %v921 = vsel %vm379, %v729, 0
    %923 = vmatprep.subr.mxu0 0.0
    %924 = vmatpush1.msra.mxu0 %v909
    %925 = vmatprep.subr.mxu0 0.0
    %926 = vmatpush1.msra.mxu0 %v910
    %927 = vmatprep.subr.mxu0 0.0
    %928 = vmatpush1.msra.mxu0 %v911
    %929 = vmatprep.subr.mxu0 0.0
    %930 = vmatpush1.msra.mxu0 %v912
    %931 = vmatprep.subr.mxu0 0.0
    %932 = vmatpush1.msra.mxu0 0.0
    %933 = vmatprep.subr.mxu0 0.0
    %934 = vmatpush1.msra.mxu0 0.0
    %935 = vmatprep.subr.mxu0 0.0
    %936 = vmatpush1.msra.mxu0 0.0
    %937 = vmatprep.subr.mxu0 0.0
    %938 = vmatpush1.msra.mxu0 0.0
    %939 = vmatprep.subr.mxu0 0.0
    %940 = vmatpush1.msra.mxu0 0.0
    %941 = vmatprep.subr.mxu0 0.0
    %942 = vmatpush1.msra.mxu0 0.0
    %943 = vmatprep.subr.mxu0 0.0
    %944 = vmatpush1.msra.mxu0 0.0
    %945 = vmatprep.subr.mxu0 0.0
    %946 = vmatpush1.msra.mxu0 0.0
    %947 = vmatprep.subr.mxu0 0.0
    %948 = vmatpush1.msra.mxu0 0.0
    %949 = vmatprep.subr.mxu0 0.0
    %950 = vmatpush1.msra.mxu0 0.0
    %951 = vmatprep.subr.mxu0 0.0
    %952 = vmatpush1.msra.mxu0 0.0
    %953 = vmatprep.subr.mxu0 0.0
    %954 = vmatpush1.msra.mxu0 0.0
    %955 = vmatprep.subr.mxu0 0.0
    %956 = vmatpush1.msra.mxu0 0.0
    %957 = vmatprep.subr.mxu0 0.0
    %958 = vmatpush1.msra.mxu0 0.0
    %959 = vmatprep.subr.mxu0 0.0
    %960 = vmatpush1.msra.mxu0 0.0
    %961 = vmatprep.subr.mxu0 0.0
    %962 = vmatpush1.msra.mxu0 0.0
    %963 = vmatprep.subr.mxu0 0.0
    %964 = vmatpush1.msra.mxu0 0.0
    %965 = vmatprep.subr.mxu0 0.0
    %966 = vmatpush1.msra.mxu0 0.0
    %967 = vmatprep.subr.mxu0 0.0
    %968 = vmatpush1.msra.mxu0 0.0
    %969 = vmatprep.subr.mxu0 0.0
    %970 = vmatpush1.msra.mxu0 0.0
    %971 = vmatprep.subr.mxu0 0.0
    %972 = vmatpush1.msra.mxu0 0.0
    %973 = vmatprep.subr.mxu0 0.0
    %974 = vmatpush1.msra.mxu0 0.0
    %975 = vmatprep.subr.mxu0 0.0
    %976 = vmatpush1.msra.mxu0 0.0
    %977 = vmatprep.subr.mxu0 0.0
    %978 = vmatpush1.msra.mxu0 0.0
    %979 = vmatprep.subr.mxu0 0.0
    %980 = vmatpush1.msra.mxu0 0.0
    %981 = vmatprep.subr.mxu0 0.0
    %982 = vmatpush1.msra.mxu0 0.0
    %983 = vmatprep.subr.mxu0 0.0
    %984 = vmatpush1.msra.mxu0 0.0
    %985 = vmatprep.subr.mxu0 0.0
    %986 = vmatpush1.msra.mxu0 0.0
    %987 = vmatprep.mubr.f32.mxu0 0.0
    %988 = vmatmul.mubr.f32.gmra.mrb[0].mxu0 %v918
    %v989 = vpop.f32.mrb[0].mxu0
    %v990 = vadd.f32 0.0, %v989
    %v991 = vpop.f32.mrb[0].mxu0
    %992 = vmatprep.mubr.f32.mxu0 0.0
    %993 = vmatmul.mubr.f32.gmra.mrb[0].mxu0 %v921
    %v994 = vpop.f32.mrb[0].mxu0
    %v995 = vadd.f32 0.0, %v994
    %v996 = vpop.f32.mrb[0].mxu0
    %997 = vdwg.mxu0
    %v999 = vsel %vm379, %v815, 0
    %v1002 = vsel %vm379, %v820, 0
    %1004 = vmatprep.subr.mxu0 0.0
    %1005 = vmatpush1.msra.mxu0 %v905
    %1006 = vmatprep.subr.mxu0 0.0
    %1007 = vmatpush1.msra.mxu0 %v906
    %1008 = vmatprep.subr.mxu0 0.0
    %1009 = vmatpush1.msra.mxu0 %v907
    %1010 = vmatprep.subr.mxu0 0.0
    %1011 = vmatpush1.msra.mxu0 %v908
    %1012 = vmatprep.subr.mxu0 0.0
    %1013 = vmatpush1.msra.mxu0 0.0
    %1014 = vmatprep.subr.mxu0 0.0
    %1015 = vmatpush1.msra.mxu0 0.0
    %1016 = vmatprep.subr.mxu0 0.0
    %1017 = vmatpush1.msra.mxu0 0.0
    %1018 = vmatprep.subr.mxu0 0.0
    %1019 = vmatpush1.msra.mxu0 0.0
    %1020 = vmatprep.subr.mxu0 0.0
    %1021 = vmatpush1.msra.mxu0 0.0
    %1022 = vmatprep.subr.mxu0 0.0
    %1023 = vmatpush1.msra.mxu0 0.0
    %1024 = vmatprep.subr.mxu0 0.0
    %1025 = vmatpush1.msra.mxu0 0.0
    %1026 = vmatprep.subr.mxu0 0.0
    %1027 = vmatpush1.msra.mxu0 0.0
    %1028 = vmatprep.subr.mxu0 0.0
    %1029 = vmatpush1.msra.mxu0 0.0
    %1030 = vmatprep.subr.mxu0 0.0
    %1031 = vmatpush1.msra.mxu0 0.0
    %1032 = vmatprep.subr.mxu0 0.0
    %1033 = vmatpush1.msra.mxu0 0.0
    %1034 = vmatprep.subr.mxu0 0.0
    %1035 = vmatpush1.msra.mxu0 0.0
    %1036 = vmatprep.subr.mxu0 0.0
    %1037 = vmatpush1.msra.mxu0 0.0
    %1038 = vmatprep.subr.mxu0 0.0
    %1039 = vmatpush1.msra.mxu0 0.0
    %1040 = vmatprep.subr.mxu0 0.0
    %1041 = vmatpush1.msra.mxu0 0.0
    %1042 = vmatprep.subr.mxu0 0.0
    %1043 = vmatpush1.msra.mxu0 0.0
    %1044 = vmatprep.subr.mxu0 0.0
    %1045 = vmatpush1.msra.mxu0 0.0
    %1046 = vmatprep.subr.mxu0 0.0
    %1047 = vmatpush1.msra.mxu0 0.0
    %1048 = vmatprep.subr.mxu0 0.0
    %1049 = vmatpush1.msra.mxu0 0.0
    %1050 = vmatprep.subr.mxu0 0.0
    %1051 = vmatpush1.msra.mxu0 0.0
    %1052 = vmatprep.subr.mxu0 0.0
    %1053 = vmatpush1.msra.mxu0 0.0
    %1054 = vmatprep.subr.mxu0 0.0
    %1055 = vmatpush1.msra.mxu0 0.0
    %1056 = vmatprep.subr.mxu0 0.0
    %1057 = vmatpush1.msra.mxu0 0.0
    %1058 = vmatprep.subr.mxu0 0.0
    %1059 = vmatpush1.msra.mxu0 0.0
    %1060 = vmatprep.subr.mxu0 0.0
    %1061 = vmatpush1.msra.mxu0 0.0
    %1062 = vmatprep.subr.mxu0 0.0
    %1063 = vmatpush1.msra.mxu0 0.0
    %1064 = vmatprep.subr.mxu0 0.0
    %1065 = vmatpush1.msra.mxu0 0.0
    %1066 = vmatprep.subr.mxu0 0.0
    %1067 = vmatpush1.msra.mxu0 0.0
    %1068 = vmatprep.mubr.f32.mxu0 0.0
    %1069 = vmatmul.mubr.f32.gmra.mrb[0].mxu0 %v999
    %v1070 = vpop.f32.mrb[0].mxu0
    %v1071 = vadd.f32 %v990, %v1070
    %v1072 = vpop.f32.mrb[0].mxu0
    %1073 = vmatprep.mubr.f32.mxu0 0.0
    %1074 = vmatmul.mubr.f32.gmra.mrb[0].mxu0 %v1002
    %v1075 = vpop.f32.mrb[0].mxu0
    %v1076 = vadd.f32 %v995, %v1075
    %v1077 = vpop.f32.mrb[0].mxu0
    %1078 = vdwg.mxu0
    %v1080 = vsel %vm379, %v896, 0
    %v1083 = vsel %vm379, %v901, 0
    %1085 = vmatprep.subr.mxu0 0.0
    %1086 = vmatpush1.msra.mxu0 %v913
    %1087 = vmatprep.subr.mxu0 0.0
    %1088 = vmatpush1.msra.mxu0 %v914
    %1089 = vmatprep.subr.mxu0 0.0
    %1090 = vmatpush1.msra.mxu0 %v915
    %1091 = vmatprep.subr.mxu0 0.0
    %1092 = vmatpush1.msra.mxu0 %v916
    %1093 = vmatprep.subr.mxu0 0.0
    %1094 = vmatpush1.msra.mxu0 0.0
    %1095 = vmatprep.subr.mxu0 0.0
    %1096 = vmatpush1.msra.mxu0 0.0
    %1097 = vmatprep.subr.mxu0 0.0
    %1098 = vmatpush1.msra.mxu0 0.0
    %1099 = vmatprep.subr.mxu0 0.0
    %1100 = vmatpush1.msra.mxu0 0.0
    %1101 = vmatprep.subr.mxu0 0.0
    %1102 = vmatpush1.msra.mxu0 0.0
    %1103 = vmatprep.subr.mxu0 0.0
    %1104 = vmatpush1.msra.mxu0 0.0
    %1105 = vmatprep.subr.mxu0 0.0
    %1106 = vmatpush1.msra.mxu0 0.0
    %1107 = vmatprep.subr.mxu0 0.0
    %1108 = vmatpush1.msra.mxu0 0.0
    %1109 = vmatprep.subr.mxu0 0.0
    %1110 = vmatpush1.msra.mxu0 0.0
    %1111 = vmatprep.subr.mxu0 0.0
    %1112 = vmatpush1.msra.mxu0 0.0
    %1113 = vmatprep.subr.mxu0 0.0
    %1114 = vmatpush1.msra.mxu0 0.0
    %1115 = vmatprep.subr.mxu0 0.0
    %1116 = vmatpush1.msra.mxu0 0.0
    %1117 = vmatprep.subr.mxu0 0.0
    %1118 = vmatpush1.msra.mxu0 0.0
    %1119 = vmatprep.subr.mxu0 0.0
    %1120 = vmatpush1.msra.mxu0 0.0
    %1121 = vmatprep.subr.mxu0 0.0
    %1122 = vmatpush1.msra.mxu0 0.0
    %1123 = vmatprep.subr.mxu0 0.0
    %1124 = vmatpush1.msra.mxu0 0.0
    %1125 = vmatprep.subr.mxu0 0.0
    %1126 = vmatpush1.msra.mxu0 0.0
    %1127 = vmatprep.subr.mxu0 0.0
    %1128 = vmatpush1.msra.mxu0 0.0
    %1129 = vmatprep.subr.mxu0 0.0
    %1130 = vmatpush1.msra.mxu0 0.0
    %1131 = vmatprep.subr.mxu0 0.0
    %1132 = vmatpush1.msra.mxu0 0.0
    %1133 = vmatprep.subr.mxu0 0.0
    %1134 = vmatpush1.msra.mxu0 0.0
    %1135 = vmatprep.subr.mxu0 0.0
    %1136 = vmatpush1.msra.mxu0 0.0
    %1137 = vmatprep.subr.mxu0 0.0
    %1138 = vmatpush1.msra.mxu0 0.0
    %1139 = vmatprep.subr.mxu0 0.0
    %1140 = vmatpush1.msra.mxu0 0.0
    %1141 = vmatprep.subr.mxu0 0.0
    %1142 = vmatpush1.msra.mxu0 0.0
    %1143 = vmatprep.subr.mxu0 0.0
    %1144 = vmatpush1.msra.mxu0 0.0
    %1145 = vmatprep.subr.mxu0 0.0
    %1146 = vmatpush1.msra.mxu0 0.0
    %1147 = vmatprep.subr.mxu0 0.0
    %1148 = vmatpush1.msra.mxu0 0.0
    %1149 = vmatprep.mubr.f32.mxu0 0.0
    %1150 = vmatmul.mubr.f32.gmra.mrb[0].mxu0 %v1080
    %v1151 = vpop.f32.mrb[0].mxu0
    %v1152 = vadd.f32 0.0, %v1151
    %v1153 = vpop.f32.mrb[0].mxu0
    %1154 = vmatprep.mubr.f32.mxu0 0.0
    %1155 = vmatmul.mubr.f32.gmra.mrb[0].mxu0 %v1083
    %v1156 = vpop.f32.mrb[0].mxu0
    %v1157 = vadd.f32 0.0, %v1156
    %v1158 = vpop.f32.mrb[0].mxu0
    %1159 = vdwg.mxu0
    %v1160 = vadd.f32 %v1071, %v1152
    %v1161 = vadd.f32 %v1076, %v1157
    %s1162 = scalar_lea.vmem %s4, 1
    %v1163 = vld [vmem:[%s1162] sm:$0x1]
    %v1165 = vlaneseq
    %v1166 = vshrl.u32 %v1165, 7
    %v1167 = vsub.s32 0, %v1166
    %v1168 = vrot.slane %v1163, %v1167
    %v1170 = vadd.f32 %v1160, %v1168
    %v1171 = vadd.f32 %v1161, %v1168
    %v1172 = vmax.f32 %v1170, 0.0
    %v1173 = vmax.f32 %v1171, 0.0
    %s1174 = scalar_lea.vmem [#allocation4], 32
    %v1175 = vld [vmem:[%s1174] sm:$0xff]
    %v1176 = vld [vmem:[%s1174 + $0x8] sm:$0xff]
    %v1177 = vld [vmem:[%s1174 + $0x10] sm:$0xff]
    %v1178 = vld [vmem:[%s1174 + $0x18] sm:$0xff]
    %s1179 = scalar_lea.vmem [#allocation6], 1
    %v1180 = vld [vmem:[%s1179] sm:$0x1]
    %v1182 = vlaneseq
    %v1183 = vshrl.u32 %v1182, 7
    %v1184 = vsub.s32 0, %v1183
    %v1185 = vrot.slane %v1180, %v1184
    %v1188 = vsel %vm379, %v1172, 0
    %v1191 = vsel %vm379, %v1173, 0
    %1193 = vmatprep.subr.mxu0 0.0
    %1194 = vmatpush1.msra.mxu0 %v1175
    %1195 = vmatprep.subr.mxu0 0.0
    %1196 = vmatpush1.msra.mxu0 %v1176
    %1197 = vmatprep.subr.mxu0 0.0
    %1198 = vmatpush1.msra.mxu0 %v1177
    %1199 = vmatprep.subr.mxu0 0.0
    %1200 = vmatpush1.msra.mxu0 %v1178
    %1201 = vmatprep.subr.mxu0 0.0
    %1202 = vmatpush1.msra.mxu0 0.0
    %1203 = vmatprep.subr.mxu0 0.0
    %1204 = vmatpush1.msra.mxu0 0.0
    %1205 = vmatprep.subr.mxu0 0.0
    %1206 = vmatpush1.msra.mxu0 0.0
    %1207 = vmatprep.subr.mxu0 0.0
    %1208 = vmatpush1.msra.mxu0 0.0
    %1209 = vmatprep.subr.mxu0 0.0
    %1210 = vmatpush1.msra.mxu0 0.0
    %1211 = vmatprep.subr.mxu0 0.0
    %1212 = vmatpush1.msra.mxu0 0.0
    %1213 = vmatprep.subr.mxu0 0.0
    %1214 = vmatpush1.msra.mxu0 0.0
    %1215 = vmatprep.subr.mxu0 0.0
    %1216 = vmatpush1.msra.mxu0 0.0
    %1217 = vmatprep.subr.mxu0 0.0
    %1218 = vmatpush1.msra.mxu0 0.0
    %1219 = vmatprep.subr.mxu0 0.0
    %1220 = vmatpush1.msra.mxu0 0.0
    %1221 = vmatprep.subr.mxu0 0.0
    %1222 = vmatpush1.msra.mxu0 0.0
    %1223 = vmatprep.subr.mxu0 0.0
    %1224 = vmatpush1.msra.mxu0 0.0
    %1225 = vmatprep.subr.mxu0 0.0
    %1226 = vmatpush1.msra.mxu0 0.0
    %1227 = vmatprep.subr.mxu0 0.0
    %1228 = vmatpush1.msra.mxu0 0.0
    %1229 = vmatprep.subr.mxu0 0.0
    %1230 = vmatpush1.msra.mxu0 0.0
    %1231 = vmatprep.subr.mxu0 0.0
    %1232 = vmatpush1.msra.mxu0 0.0
    %1233 = vmatprep.subr.mxu0 0.0
    %1234 = vmatpush1.msra.mxu0 0.0
    %1235 = vmatprep.subr.mxu0 0.0
    %1236 = vmatpush1.msra.mxu0 0.0
    %1237 = vmatprep.subr.mxu0 0.0
    %1238 = vmatpush1.msra.mxu0 0.0
    %1239 = vmatprep.subr.mxu0 0.0
    %1240 = vmatpush1.msra.mxu0 0.0
    %1241 = vmatprep.subr.mxu0 0.0
    %1242 = vmatpush1.msra.mxu0 0.0
    %1243 = vmatprep.subr.mxu0 0.0
    %1244 = vmatpush1.msra.mxu0 0.0
    %1245 = vmatprep.subr.mxu0 0.0
    %1246 = vmatpush1.msra.mxu0 0.0
    %1247 = vmatprep.subr.mxu0 0.0
    %1248 = vmatpush1.msra.mxu0 0.0
    %1249 = vmatprep.subr.mxu0 0.0
    %1250 = vmatpush1.msra.mxu0 0.0
    %1251 = vmatprep.subr.mxu0 0.0
    %1252 = vmatpush1.msra.mxu0 0.0
    %1253 = vmatprep.subr.mxu0 0.0
    %1254 = vmatpush1.msra.mxu0 0.0
    %1255 = vmatprep.subr.mxu0 0.0
    %1256 = vmatpush1.msra.mxu0 0.0
    %1257 = vmatprep.mubr.f32.mxu0 0.0
    %1258 = vmatmul.mubr.f32.gmra.mrb[0].mxu0 %v1188
    %v1259 = vpop.f32.mrb[0].mxu0
    %v1260 = vadd.f32 %v1185, %v1259
    %v1261 = vpop.f32.mrb[0].mxu0
    %1262 = vmatprep.mubr.f32.mxu0 0.0
    %1263 = vmatmul.mubr.f32.gmra.mrb[0].mxu0 %v1191
    %v1264 = vpop.f32.mrb[0].mxu0
    %v1265 = vadd.f32 %v1185, %v1264
    %v1266 = vpop.f32.mrb[0].mxu0
    %1267 = vdwg.mxu0
    %v1268 = vadd.f32 %v728, %v1260
    %v1269 = vadd.f32 %v729, %v1265
    %v1270 = vld [vmem:[#allocation7] sm:$0xff]
    %v1271 = vld [vmem:[#allocation7 + $0x8] sm:$0xff]
    %v1272 = vld [vmem:[#allocation7 + $0x10] sm:$0xff]
    %v1273 = vld [vmem:[#allocation7 + $0x18] sm:$0xff]
    %v1274 = vld [vmem:[%s8] sm:$0x1]
    %v1276 = vlaneseq
    %v1277 = vshrl.u32 %v1276, 7
    %v1278 = vsub.s32 0, %v1277
    %v1279 = vrot.slane %v1274, %v1278
    %v1282 = vsel %vm379, %v1268, 0
    %v1285 = vsel %vm379, %v1269, 0
    %1287 = vmatprep.subr.mxu0 0.0
    %1288 = vmatpush1.msra.mxu0 %v1270
    %1289 = vmatprep.subr.mxu0 0.0
    %1290 = vmatpush1.msra.mxu0 %v1271
    %1291 = vmatprep.subr.mxu0 0.0
    %1292 = vmatpush1.msra.mxu0 %v1272
    %1293 = vmatprep.subr.mxu0 0.0
    %1294 = vmatpush1.msra.mxu0 %v1273
    %1295 = vmatprep.subr.mxu0 0.0
    %1296 = vmatpush1.msra.mxu0 0.0
    %1297 = vmatprep.subr.mxu0 0.0
    %1298 = vmatpush1.msra.mxu0 0.0
    %1299 = vmatprep.subr.mxu0 0.0
    %1300 = vmatpush1.msra.mxu0 0.0
    %1301 = vmatprep.subr.mxu0 0.0
    %1302 = vmatpush1.msra.mxu0 0.0
    %1303 = vmatprep.subr.mxu0 0.0
    %1304 = vmatpush1.msra.mxu0 0.0
    %1305 = vmatprep.subr.mxu0 0.0
    %1306 = vmatpush1.msra.mxu0 0.0
    %1307 = vmatprep.subr.mxu0 0.0
    %1308 = vmatpush1.msra.mxu0 0.0
    %1309 = vmatprep.subr.mxu0 0.0
    %1310 = vmatpush1.msra.mxu0 0.0
    %1311 = vmatprep.subr.mxu0 0.0
    %1312 = vmatpush1.msra.mxu0 0.0
    %1313 = vmatprep.subr.mxu0 0.0
    %1314 = vmatpush1.msra.mxu0 0.0
    %1315 = vmatprep.subr.mxu0 0.0
    %1316 = vmatpush1.msra.mxu0 0.0
    %1317 = vmatprep.subr.mxu0 0.0
    %1318 = vmatpush1.msra.mxu0 0.0
    %1319 = vmatprep.subr.mxu0 0.0
    %1320 = vmatpush1.msra.mxu0 0.0
    %1321 = vmatprep.subr.mxu0 0.0
    %1322 = vmatpush1.msra.mxu0 0.0
    %1323 = vmatprep.subr.mxu0 0.0
    %1324 = vmatpush1.msra.mxu0 0.0
    %1325 = vmatprep.subr.mxu0 0.0
    %1326 = vmatpush1.msra.mxu0 0.0
    %1327 = vmatprep.subr.mxu0 0.0
    %1328 = vmatpush1.msra.mxu0 0.0
    %1329 = vmatprep.subr.mxu0 0.0
    %1330 = vmatpush1.msra.mxu0 0.0
    %1331 = vmatprep.subr.mxu0 0.0
    %1332 = vmatpush1.msra.mxu0 0.0
    %1333 = vmatprep.subr.mxu0 0.0
    %1334 = vmatpush1.msra.mxu0 0.0
    %1335 = vmatprep.subr.mxu0 0.0
    %1336 = vmatpush1.msra.mxu0 0.0
    %1337 = vmatprep.subr.mxu0 0.0
    %1338 = vmatpush1.msra.mxu0 0.0
    %1339 = vmatprep.subr.mxu0 0.0
    %1340 = vmatpush1.msra.mxu0 0.0
    %1341 = vmatprep.subr.mxu0 0.0
    %1342 = vmatpush1.msra.mxu0 0.0
    %1343 = vmatprep.subr.mxu0 0.0
    %1344 = vmatpush1.msra.mxu0 0.0
    %1345 = vmatprep.subr.mxu0 0.0
    %1346 = vmatpush1.msra.mxu0 0.0
    %1347 = vmatprep.subr.mxu0 0.0
    %1348 = vmatpush1.msra.mxu0 0.0
    %1349 = vmatprep.subr.mxu0 0.0
    %1350 = vmatpush1.msra.mxu0 0.0
    %1351 = vmatprep.mubr.f32.mxu0 0.0
    %1352 = vmatmul.mubr.f32.gmra.mrb[0].mxu0 %v1282
    %v1353 = vpop.f32.mrb[0].mxu0
    %v1354 = vadd.f32 %v1279, %v1353
    %v1355 = vpop.f32.mrb[0].mxu0
    %1356 = vmatprep.mubr.f32.mxu0 0.0
    %1357 = vmatmul.mubr.f32.gmra.mrb[0].mxu0 %v1285
    %v1358 = vpop.f32.mrb[0].mxu0
    %v1359 = vadd.f32 %v1279, %v1358
    %v1360 = vpop.f32.mrb[0].mxu0
    %1361 = vdwg.mxu0
    %vm1362 = vcmp.ge.s32.totalorder %v192, 24
    %v1363 = vsel %vm1362, %v1354, -1e+30
    %v1364 = vsel %vm1362, %v1359, -1e+30
    %v1365 = vsel %vm379, %v1363, -inf
    %1366 = vmax.xlane.f32.xlu0 %v1365
    %v1367 = vpop.xlane.xlu0 %1366
    %v1368 = vsel %vm379, %v1364, -inf
    %1369 = vmax.xlane.f32.xlu0 %v1368
    %v1370 = vpop.xlane.xlu0 %1369
    %v1371 = vsub.f32 %v1354, %v1367
    %v1372 = vsub.f32 %v1359, %v1370
    %v1373 = vmul.f32 %v1371, 1.442695
    %v1374 = vpow.pop %v1373
    %v1375 = vmul.f32 %v1372, 1.442695
    %v1376 = vpow.pop %v1375
    %v1377 = vsel %vm1362, %v1374, 0.0
    %v1378 = vsel %vm1362, %v1376, 0.0
    %v1379 = vsel %vm379, %v1377, 0.0
    %1380 = vadd.xlane.f32.xlu0 %v1379
    %v1381 = vpop.xlane.xlu0 %1380
    %v1382 = vsel %vm379, %v1378, 0.0
    %1383 = vadd.xlane.f32.xlu0 %v1382
    %v1384 = vpop.xlane.xlu0 %1383
    %v1385 = vrcp.pop %v1381
    %v1386 = vmul.f32 %v1377, %v1385
    %v1387 = vrcp.pop %v1384
    %v1388 = vmul.f32 %v1378, %v1387
    %v1389 = vsel %vm1362, %v1386, %v1354
    %v1390 = vsel %vm1362, %v1388, %v1359
    %1391 = vst.msk [vmem:[%s11] sm:$0xff] %vm379, %v1389
    %1392 = vst.msk [vmem:[%s11 + $0x8] sm:$0xff] %vm379, %v1390
    %v1393 = vld [vmem:[%s9] sm:$0xff]
    %v1394 = vld [vmem:[%s9 + $0x8] sm:$0xff]
    %v1395 = vld [vmem:[%s9 + $0x10] sm:$0xff]
    %v1396 = vld [vmem:[%s9 + $0x18] sm:$0xff]
    %v1397 = vld [vmem:[%s10] sm:$0x1]
    %v1399 = vlaneseq
    %v1400 = vshrl.u32 %v1399, 7
    %v1401 = vsub.s32 0, %v1400
    %v1402 = vrot.slane %v1397, %v1401
    %1404 = vmatprep.subr.mxu0 0.0
    %1405 = vmatpush1.msra.mxu0 %v1393
    %1406 = vmatprep.subr.mxu0 0.0
    %1407 = vmatpush1.msra.mxu0 %v1394
    %1408 = vmatprep.subr.mxu0 0.0
    %1409 = vmatpush1.msra.mxu0 %v1395
    %1410 = vmatprep.subr.mxu0 0.0
    %1411 = vmatpush1.msra.mxu0 %v1396
    %1412 = vmatprep.subr.mxu0 0.0
    %1413 = vmatpush1.msra.mxu0 0.0
    %1414 = vmatprep.subr.mxu0 0.0
    %1415 = vmatpush1.msra.mxu0 0.0
    %1416 = vmatprep.subr.mxu0 0.0
    %1417 = vmatpush1.msra.mxu0 0.0
    %1418 = vmatprep.subr.mxu0 0.0
    %1419 = vmatpush1.msra.mxu0 0.0
    %1420 = vmatprep.subr.mxu0 0.0
    %1421 = vmatpush1.msra.mxu0 0.0
    %1422 = vmatprep.subr.mxu0 0.0
    %1423 = vmatpush1.msra.mxu0 0.0
    %1424 = vmatprep.subr.mxu0 0.0
    %1425 = vmatpush1.msra.mxu0 0.0
    %1426 = vmatprep.subr.mxu0 0.0
    %1427 = vmatpush1.msra.mxu0 0.0
    %1428 = vmatprep.subr.mxu0 0.0
    %1429 = vmatpush1.msra.mxu0 0.0
    %1430 = vmatprep.subr.mxu0 0.0
    %1431 = vmatpush1.msra.mxu0 0.0
    %1432 = vmatprep.subr.mxu0 0.0
    %1433 = vmatpush1.msra.mxu0 0.0
    %1434 = vmatprep.subr.mxu0 0.0
    %1435 = vmatpush1.msra.mxu0 0.0
    %1436 = vmatprep.subr.mxu0 0.0
    %1437 = vmatpush1.msra.mxu0 0.0
    %1438 = vmatprep.subr.mxu0 0.0
    %1439 = vmatpush1.msra.mxu0 0.0
    %1440 = vmatprep.subr.mxu0 0.0
    %1441 = vmatpush1.msra.mxu0 0.0
    %1442 = vmatprep.subr.mxu0 0.0
    %1443 = vmatpush1.msra.mxu0 0.0
    %1444 = vmatprep.subr.mxu0 0.0
    %1445 = vmatpush1.msra.mxu0 0.0
    %1446 = vmatprep.subr.mxu0 0.0
    %1447 = vmatpush1.msra.mxu0 0.0
    %1448 = vmatprep.subr.mxu0 0.0
    %1449 = vmatpush1.msra.mxu0 0.0
    %1450 = vmatprep.subr.mxu0 0.0
    %1451 = vmatpush1.msra.mxu0 0.0
    %1452 = vmatprep.subr.mxu0 0.0
    %1453 = vmatpush1.msra.mxu0 0.0
    %1454 = vmatprep.subr.mxu0 0.0
    %1455 = vmatpush1.msra.mxu0 0.0
    %1456 = vmatprep.subr.mxu0 0.0
    %1457 = vmatpush1.msra.mxu0 0.0
    %1458 = vmatprep.subr.mxu0 0.0
    %1459 = vmatpush1.msra.mxu0 0.0
    %1460 = vmatprep.subr.mxu0 0.0
    %1461 = vmatpush1.msra.mxu0 0.0
    %1462 = vmatprep.subr.mxu0 0.0
    %1463 = vmatpush1.msra.mxu0 0.0
    %1464 = vmatprep.subr.mxu0 0.0
    %1465 = vmatpush1.msra.mxu0 0.0
    %1466 = vmatprep.subr.mxu0 0.0
    %1467 = vmatpush1.msra.mxu0 0.0
    %1468 = vmatprep.mubr.f32.mxu0 0.0
    %1469 = vmatmul.mubr.f32.gmra.mrb[0].mxu0 %v1282
    %v1470 = vpop.f32.mrb[0].mxu0
    %v1471 = vadd.f32 %v1402, %v1470
    %v1472 = vpop.f32.mrb[0].mxu0
    %1473 = vmatprep.mubr.f32.mxu0 0.0
    %1474 = vmatmul.mubr.f32.gmra.mrb[0].mxu0 %v1285
    %v1475 = vpop.f32.mrb[0].mxu0
    %v1476 = vadd.f32 %v1402, %v1475
    %v1477 = vpop.f32.mrb[0].mxu0
    %1478 = vdwg.mxu0
    %vm1479 = vcmask 64512
    %1480 = vst.msk [vmem:[%s12] sm:$0xff] %vm1479, %v1471
    %1481 = vst.msk [vmem:[%s12 + $0x8] sm:$0xff] %vm1479, %v1476
    // Predicated region
    $region62: #{input_block_forward.3} parent=1 // pred_check
      _
    $region63: #{input_block_forward.3} parent=1 // pred_check_branch
      %1483 = sbr.rel (0) target = $region65
    $region64: #{input_block_forward.3} parent=1 // pred_region
      _
    $region65: #{input_block_forward.3} parent=1 // pred_fallthru
      _
    // Predicated region
    $region66: #{input_block_forward.3} parent=1 // pred_check
      _
    $region67: #{input_block_forward.3} parent=1 // pred_check_branch
      %1485 = sbr.rel (0) target = $region69
    $region68: #{input_block_forward.3} parent=1 // pred_region
      _
    $region69: #{input_block_forward.3} parent=1 // pred_fallthru
      _
    // Predicated region
    $region70: #{input_block_forward.3} parent=1 // pred_check
      _
    $region71: #{input_block_forward.3} parent=1 // pred_check_branch
      %1487 = sbr.rel (0) target = $region73
    $region72: #{input_block_forward.3} parent=1 // pred_region
      _
    $region73: #{input_block_forward.3} parent=1 // pred_fallthru
      _
    // Predicated region
    $region74: #{input_block_forward.3} parent=1 // pred_check
      _
    $region75: #{input_block_forward.3} parent=1 // pred_check_branch
      %1489 = sbr.rel (0) target = $region77
    $region76: #{input_block_forward.3} parent=1 // pred_region
      _
    $region77: #{input_block_forward.3} parent=1 // pred_fallthru
      _
    %1490 = vsyncpa [#allocation3], 1
    %1491 = vsyncpa [#allocation5], 1
    %1492 = vsyncpa [#allocation8], 1

// kernel: input_block_forward.4
$region0: #{input_block_forward.4}
  #allocation0 [shape = 'u32[]', space=smem, size = 0x4, offset = 0x4, fixed_abs, tag = 'smem constant byte address 0x4 - core index']
  #allocation1 [shape = 'u32[144,128]{1,0:T(1,128)}', space=vmem, size = 0x12000, scoped, tag = 'internal scratch']
  %s0 = inlined_call_operand.smem [shape: u32[31], index: -1, kind: input, shape index: {}]
  %s1 = sld [smem:[%s0]]
  %s2 = scalar_lea.smem %s0, 1
  %s3 = sld [smem:[%s2]]
  %s4 = scalar_lea.smem %s0, 2
  %s5 = sld [smem:[%s4]]
  %s6 = scalar_lea.smem %s0, 3
  %s7 = sld [smem:[%s6]]
  %s8 = scalar_lea.smem %s0, 4
  %s9 = sld [smem:[%s8]]
  %s10 = scalar_lea.smem %s0, 5
  %s11 = sld [smem:[%s10]]
  %s12 = scalar_lea.smem %s0, 6
  %s13 = sld [smem:[%s12]]
  %s14 = scalar_lea.smem %s0, 7
  %s15 = sld [smem:[%s14]]
  %s16 = scalar_lea.smem %s0, 8
  %s17 = sld [smem:[%s16]]
  %s18 = scalar_lea.smem %s0, 9
  %s19 = sld [smem:[%s18]]
  %s20 = scalar_lea.smem %s0, 10
  %s21 = sld [smem:[%s20]]
  %s22 = scalar_lea.smem %s0, 11
  %s23 = sld [smem:[%s22]]
  %s24 = scalar_lea.smem %s0, 12
  %s25 = sld [smem:[%s24]]
  %s26 = scalar_lea.smem %s0, 13
  %s27 = sld [smem:[%s26]]
  %s28 = scalar_lea.smem %s0, 14
  %s29 = sld [smem:[%s28]]
  %s30 = scalar_lea.smem %s0, 15
  %s31 = sld [smem:[%s30]]
  %s32 = scalar_lea.smem %s0, 16
  %s33 = sld [smem:[%s32]]
  %s34 = scalar_lea.smem %s0, 17
  %s35 = sld [smem:[%s34]]
  %s36 = scalar_lea.smem %s0, 18
  %s37 = sld [smem:[%s36]]
  %s38 = scalar_lea.smem %s0, 19
  %s39 = sld [smem:[%s38]]
  %s40 = scalar_lea.smem %s0, 20
  %s41 = sld [smem:[%s40]]
  %s42 = scalar_lea.smem %s0, 21
  %s43 = sld [smem:[%s42]]
  %s44 = scalar_lea.smem %s0, 22
  %s45 = sld [smem:[%s44]]
  %s46 = scalar_lea.smem %s0, 23
  %s47 = sld [smem:[%s46]]
  %s48 = scalar_lea.smem %s0, 24
  %s49 = sld [smem:[%s48]]
  %s50 = scalar_lea.smem %s0, 25
  %s51 = sld [smem:[%s50]]
  %s52 = scalar_lea.smem %s0, 26
  %s53 = sld [smem:[%s52]]
  %s54 = scalar_lea.smem %s0, 27
  %s55 = sld [smem:[%s54]]
  %s56 = scalar_lea.smem %s0, 28
  %s57 = sld [smem:[%s56]]
  %s58 = scalar_lea.smem %s0, 29
  %s59 = sld [smem:[%s58]]
  %s60 = scalar_lea.smem %s0, 30
  %s61 = sld [smem:[%s60]]
  %s62 = sld [smem:[#allocation0]]
  $region130: #{input_block_forward.4} parent=0
    _
  %s64 = ssub.s32 1, %s62
  %s65 = scalar_select 0, %s64, %s62
  // Predicated region
  $region2: #{input_block_forward.4} parent=0 // pred_check
    _
  $region3: #{input_block_forward.4} parent=0 // pred_check_branch
    %67 = sbr.rel (0) target = $region5
  $region4: #{input_block_forward.4} parent=0 // pred_region
    _
  $region5: #{input_block_forward.4} parent=0 // pred_fallthru
    _
  // Predicated region
  $region6: #{input_block_forward.4} parent=0 // pred_check
    _
  $region7: #{input_block_forward.4} parent=0 // pred_check_branch
    %69 = sbr.rel (0) target = $region9
  $region8: #{input_block_forward.4} parent=0 // pred_region
    _
  $region9: #{input_block_forward.4} parent=0 // pred_fallthru
    _
  // Predicated region
  $region10: #{input_block_forward.4} parent=0 // pred_check
    _
  $region11: #{input_block_forward.4} parent=0 // pred_check_branch
    %71 = sbr.rel (0) target = $region13
  $region12: #{input_block_forward.4} parent=0 // pred_region
    _
  $region13: #{input_block_forward.4} parent=0 // pred_fallthru
    _
  // Predicated region
  $region14: #{input_block_forward.4} parent=0 // pred_check
    _
  $region15: #{input_block_forward.4} parent=0 // pred_check_branch
    %73 = sbr.rel (0) target = $region17
  $region16: #{input_block_forward.4} parent=0 // pred_region
    _
  $region17: #{input_block_forward.4} parent=0 // pred_fallthru
    _
  // Predicated region
  $region18: #{input_block_forward.4} parent=0 // pred_check
    _
  $region19: #{input_block_forward.4} parent=0 // pred_check_branch
    %75 = sbr.rel (0) target = $region21
  $region20: #{input_block_forward.4} parent=0 // pred_region
    _
  $region21: #{input_block_forward.4} parent=0 // pred_fallthru
    _
  // Predicated region
  $region22: #{input_block_forward.4} parent=0 // pred_check
    _
  $region23: #{input_block_forward.4} parent=0 // pred_check_branch
    %77 = sbr.rel (0) target = $region25
  $region24: #{input_block_forward.4} parent=0 // pred_region
    _
  $region25: #{input_block_forward.4} parent=0 // pred_fallthru
    _
  // Predicated region
  $region26: #{input_block_forward.4} parent=0 // pred_check
    _
  $region27: #{input_block_forward.4} parent=0 // pred_check_branch
    %79 = sbr.rel (0) target = $region29
  $region28: #{input_block_forward.4} parent=0 // pred_region
    _
  $region29: #{input_block_forward.4} parent=0 // pred_fallthru
    _
  // Predicated region
  $region30: #{input_block_forward.4} parent=0 // pred_check
    _
  $region31: #{input_block_forward.4} parent=0 // pred_check_branch
    %81 = sbr.rel (0) target = $region33
  $region32: #{input_block_forward.4} parent=0 // pred_region
    _
  $region33: #{input_block_forward.4} parent=0 // pred_fallthru
    _
  // Predicated region
  $region34: #{input_block_forward.4} parent=0 // pred_check
    _
  $region35: #{input_block_forward.4} parent=0 // pred_check_branch
    %83 = sbr.rel (0) target = $region37
  $region36: #{input_block_forward.4} parent=0 // pred_region
    _
  $region37: #{input_block_forward.4} parent=0 // pred_fallthru
    _
  // Predicated region
  $region38: #{input_block_forward.4} parent=0 // pred_check
    _
  $region39: #{input_block_forward.4} parent=0 // pred_check_branch
    %85 = sbr.rel (0) target = $region41
  $region40: #{input_block_forward.4} parent=0 // pred_region
    _
  $region41: #{input_block_forward.4} parent=0 // pred_fallthru
    _
  // Predicated region
  $region42: #{input_block_forward.4} parent=0 // pred_check
    _
  $region43: #{input_block_forward.4} parent=0 // pred_check_branch
    %87 = sbr.rel (0) target = $region45
  $region44: #{input_block_forward.4} parent=0 // pred_region
    _
  $region45: #{input_block_forward.4} parent=0 // pred_fallthru
    _
  // Predicated region
  $region46: #{input_block_forward.4} parent=0 // pred_check
    _
  $region47: #{input_block_forward.4} parent=0 // pred_check_branch
    %89 = sbr.rel (0) target = $region49
  $region48: #{input_block_forward.4} parent=0 // pred_region
    _
  $region49: #{input_block_forward.4} parent=0 // pred_fallthru
    _
  // Predicated region
  $region50: #{input_block_forward.4} parent=0 // pred_check
    _
  $region51: #{input_block_forward.4} parent=0 // pred_check_branch
    %91 = sbr.rel (0) target = $region53
  $region52: #{input_block_forward.4} parent=0 // pred_region
    _
  $region53: #{input_block_forward.4} parent=0 // pred_fallthru
    _
  // Predicated region
  $region54: #{input_block_forward.4} parent=0 // pred_check
    _
  $region55: #{input_block_forward.4} parent=0 // pred_check_branch
    %93 = sbr.rel (0) target = $region57
  $region56: #{input_block_forward.4} parent=0 // pred_region
    _
  $region57: #{input_block_forward.4} parent=0 // pred_fallthru
    _
  // Predicated region
  $region58: #{input_block_forward.4} parent=0 // pred_check
    _
  $region59: #{input_block_forward.4} parent=0 // pred_check_branch
    %95 = sbr.rel (0) target = $region61
  $region60: #{input_block_forward.4} parent=0 // pred_region
    _
  $region61: #{input_block_forward.4} parent=0 // pred_fallthru
    _
  // Predicated region
  $region62: #{input_block_forward.4} parent=0 // pred_check
    _
  $region63: #{input_block_forward.4} parent=0 // pred_check_branch
    %97 = sbr.rel (0) target = $region65
  $region64: #{input_block_forward.4} parent=0 // pred_region
    _
  $region65: #{input_block_forward.4} parent=0 // pred_fallthru
    _
  // Predicated region
  $region66: #{input_block_forward.4} parent=0 // pred_check
    _
  $region67: #{input_block_forward.4} parent=0 // pred_check_branch
    %99 = sbr.rel (0) target = $region69
  $region68: #{input_block_forward.4} parent=0 // pred_region
    _
  $region69: #{input_block_forward.4} parent=0 // pred_fallthru
    _
  // Predicated region
  $region70: #{input_block_forward.4} parent=0 // pred_check
    _
  $region71: #{input_block_forward.4} parent=0 // pred_check_branch
    %101 = sbr.rel (0) target = $region73
  $region72: #{input_block_forward.4} parent=0 // pred_region
    _
  $region73: #{input_block_forward.4} parent=0 // pred_fallthru
    _
  // Predicated region
  $region74: #{input_block_forward.4} parent=0 // pred_check
    _
  $region75: #{input_block_forward.4} parent=0 // pred_check_branch
    %103 = sbr.rel (0) target = $region77
  $region76: #{input_block_forward.4} parent=0 // pred_region
    _
  $region77: #{input_block_forward.4} parent=0 // pred_fallthru
    _
  // Predicated region
  $region78: #{input_block_forward.4} parent=0 // pred_check
    _
  $region79: #{input_block_forward.4} parent=0 // pred_check_branch
    %105 = sbr.rel (0) target = $region81
  $region80: #{input_block_forward.4} parent=0 // pred_region
    _
  $region81: #{input_block_forward.4} parent=0 // pred_fallthru
    _
  // Predicated region
  $region82: #{input_block_forward.4} parent=0 // pred_check
    _
  $region83: #{input_block_forward.4} parent=0 // pred_check_branch
    %107 = sbr.rel (0) target = $region85
  $region84: #{input_block_forward.4} parent=0 // pred_region
    _
  $region85: #{input_block_forward.4} parent=0 // pred_fallthru
    _
  // Predicated region
  $region86: #{input_block_forward.4} parent=0 // pred_check
    _
  $region87: #{input_block_forward.4} parent=0 // pred_check_branch
    %109 = sbr.rel (0) target = $region89
  $region88: #{input_block_forward.4} parent=0 // pred_region
    _
  $region89: #{input_block_forward.4} parent=0 // pred_fallthru
    _
  // Predicated region
  $region90: #{input_block_forward.4} parent=0 // pred_check
    _
  $region91: #{input_block_forward.4} parent=0 // pred_check_branch
    %111 = sbr.rel (0) target = $region93
  $region92: #{input_block_forward.4} parent=0 // pred_region
    _
  $region93: #{input_block_forward.4} parent=0 // pred_fallthru
    _
  // Predicated region
  $region94: #{input_block_forward.4} parent=0 // pred_check
    _
  $region95: #{input_block_forward.4} parent=0 // pred_check_branch
    %113 = sbr.rel (0) target = $region97
  $region96: #{input_block_forward.4} parent=0 // pred_region
    _
  $region97: #{input_block_forward.4} parent=0 // pred_fallthru
    _
  // Predicated region
  $region98: #{input_block_forward.4} parent=0 // pred_check
    _
  $region99: #{input_block_forward.4} parent=0 // pred_check_branch
    %115 = sbr.rel (0) target = $region101
  $region100: #{input_block_forward.4} parent=0 // pred_region
    _
  $region101: #{input_block_forward.4} parent=0 // pred_fallthru
    _
  // Predicated region
  $region102: #{input_block_forward.4} parent=0 // pred_check
    _
  $region103: #{input_block_forward.4} parent=0 // pred_check_branch
    %117 = sbr.rel (0) target = $region105
  $region104: #{input_block_forward.4} parent=0 // pred_region
    _
  $region105: #{input_block_forward.4} parent=0 // pred_fallthru
    _
  // Predicated region
  $region106: #{input_block_forward.4} parent=0 // pred_check
    _
  $region107: #{input_block_forward.4} parent=0 // pred_check_branch
    %119 = sbr.rel (0) target = $region109
  $region108: #{input_block_forward.4} parent=0 // pred_region
    _
  $region109: #{input_block_forward.4} parent=0 // pred_fallthru
    _
  // Predicated region
  $region110: #{input_block_forward.4} parent=0 // pred_check
    _
  $region111: #{input_block_forward.4} parent=0 // pred_check_branch
    %121 = sbr.rel (0) target = $region113
  $region112: #{input_block_forward.4} parent=0 // pred_region
    _
  $region113: #{input_block_forward.4} parent=0 // pred_fallthru
    _
  // Predicated region
  $region114: #{input_block_forward.4} parent=0 // pred_check
    _
  $region115: #{input_block_forward.4} parent=0 // pred_check_branch
    %123 = sbr.rel (0) target = $region117
  $region116: #{input_block_forward.4} parent=0 // pred_region
    _
  $region117: #{input_block_forward.4} parent=0 // pred_fallthru
    _
  // Predicated region
  $region118: #{input_block_forward.4} parent=0 // pred_check
    _
  $region119: #{input_block_forward.4} parent=0 // pred_check_branch
    %125 = sbr.rel (0) target = $region121
  $region120: #{input_block_forward.4} parent=0 // pred_region
    _
  $region121: #{input_block_forward.4} parent=0 // pred_fallthru
    _
  %v126 = vld [vmem:[%s1] sm:$0xff]
  %v127 = vld [vmem:[%s3] sm:$0xff]
  %v128 = vld [vmem:[%s3 + $0x8] sm:$0xff]
  %v129 = vld [vmem:[%s5] sm:$0xff]
  %v130 = vld [vmem:[%s5 + $0x8] sm:$0xff]
  %v131 = vld [vmem:[%s7] sm:$0xff]
  %v132 = vadd.f32 %v126, %v131
  %v133 = vld [vmem:[%s9] sm:$0xff]
  %v134 = vld [vmem:[%s9 + $0x8] sm:$0xff]
  %v135 = vld [vmem:[%s9 + $0x10] sm:$0xff]
  %v136 = vld [vmem:[%s9 + $0x18] sm:$0xff]
  %v137 = vld [vmem:[%s11] sm:$0x1]
  %v139 = vlaneseq
  %v140 = vshrl.u32 %v139, 7
  %v141 = vsub.s32 0, %v140
  %v142 = vrot.slane %v137, %v141
  %vm144 = vcmask 261120
  %v146 = vsel %vm144, %v132, 0
  %148 = vmatprep.subr.mxu0 0.0
  %149 = vmatpush1.msra.mxu0 %v133
  %150 = vmatprep.subr.mxu0 0.0
  %151 = vmatpush1.msra.mxu0 %v134
  %152 = vmatprep.subr.mxu0 0.0
  %153 = vmatpush1.msra.mxu0 %v135
  %154 = vmatprep.subr.mxu0 0.0
  %155 = vmatpush1.msra.mxu0 %v136
  %156 = vmatprep.subr.mxu0 0.0
  %157 = vmatpush1.msra.mxu0 0.0
  %158 = vmatprep.subr.mxu0 0.0
  %159 = vmatpush1.msra.mxu0 0.0
  %160 = vmatprep.subr.mxu0 0.0
  %161 = vmatpush1.msra.mxu0 0.0
  %162 = vmatprep.subr.mxu0 0.0
  %163 = vmatpush1.msra.mxu0 0.0
  %164 = vmatprep.subr.mxu0 0.0
  %165 = vmatpush1.msra.mxu0 0.0
  %166 = vmatprep.subr.mxu0 0.0
  %167 = vmatpush1.msra.mxu0 0.0
  %168 = vmatprep.subr.mxu0 0.0
  %169 = vmatpush1.msra.mxu0 0.0
  %170 = vmatprep.subr.mxu0 0.0
  %171 = vmatpush1.msra.mxu0 0.0
  %172 = vmatprep.subr.mxu0 0.0
  %173 = vmatpush1.msra.mxu0 0.0
  %174 = vmatprep.subr.mxu0 0.0
  %175 = vmatpush1.msra.mxu0 0.0
  %176 = vmatprep.subr.mxu0 0.0
  %177 = vmatpush1.msra.mxu0 0.0
  %178 = vmatprep.subr.mxu0 0.0
  %179 = vmatpush1.msra.mxu0 0.0
  %180 = vmatprep.subr.mxu0 0.0
  %181 = vmatpush1.msra.mxu0 0.0
  %182 = vmatprep.subr.mxu0 0.0
  %183 = vmatpush1.msra.mxu0 0.0
  %184 = vmatprep.subr.mxu0 0.0
  %185 = vmatpush1.msra.mxu0 0.0
  %186 = vmatprep.subr.mxu0 0.0
  %187 = vmatpush1.msra.mxu0 0.0
  %188 = vmatprep.subr.mxu0 0.0
  %189 = vmatpush1.msra.mxu0 0.0
  %190 = vmatprep.subr.mxu0 0.0
  %191 = vmatpush1.msra.mxu0 0.0
  %192 = vmatprep.subr.mxu0 0.0
  %193 = vmatpush1.msra.mxu0 0.0
  %194 = vmatprep.subr.mxu0 0.0
  %195 = vmatpush1.msra.mxu0 0.0
  %196 = vmatprep.subr.mxu0 0.0
  %197 = vmatpush1.msra.mxu0 0.0
  %198 = vmatprep.subr.mxu0 0.0
  %199 = vmatpush1.msra.mxu0 0.0
  %200 = vmatprep.subr.mxu0 0.0
  %201 = vmatpush1.msra.mxu0 0.0
  %202 = vmatprep.subr.mxu0 0.0
  %203 = vmatpush1.msra.mxu0 0.0
  %204 = vmatprep.subr.mxu0 0.0
  %205 = vmatpush1.msra.mxu0 0.0
  %206 = vmatprep.subr.mxu0 0.0
  %207 = vmatpush1.msra.mxu0 0.0
  %208 = vmatprep.subr.mxu0 0.0
  %209 = vmatpush1.msra.mxu0 0.0
  %210 = vmatprep.subr.mxu0 0.0
  %211 = vmatpush1.msra.mxu0 0.0
  %212 = vmatprep.mubr.f32.mxu0 0.0
  %213 = vmatmul.mubr.f32.gmra.mrb[0].mxu0 %v146
  %v214 = vpop.f32.mrb[0].mxu0
  %v215 = vadd.f32 %v142, %v214
  %v216 = vpop.f32.mrb[0].mxu0
  %217 = vdwg.mxu0
  %v218 = vld [vmem:[%s13] sm:$0xff]
  %v219 = vld [vmem:[%s13 + $0x8] sm:$0xff]
  %v220 = vld [vmem:[%s13 + $0x10] sm:$0xff]
  %v221 = vld [vmem:[%s13 + $0x18] sm:$0xff]
  %v222 = vld [vmem:[%s15] sm:$0x1]
  %v224 = vlaneseq
  %v225 = vshrl.u32 %v224, 7
  %v226 = vsub.s32 0, %v225
  %v227 = vrot.slane %v222, %v226
  %229 = vmatprep.subr.mxu0 0.0
  %230 = vmatpush1.msra.mxu0 %v218
  %231 = vmatprep.subr.mxu0 0.0
  %232 = vmatpush1.msra.mxu0 %v219
  %233 = vmatprep.subr.mxu0 0.0
  %234 = vmatpush1.msra.mxu0 %v220
  %235 = vmatprep.subr.mxu0 0.0
  %236 = vmatpush1.msra.mxu0 %v221
  %237 = vmatprep.subr.mxu0 0.0
  %238 = vmatpush1.msra.mxu0 0.0
  %239 = vmatprep.subr.mxu0 0.0
  %240 = vmatpush1.msra.mxu0 0.0
  %241 = vmatprep.subr.mxu0 0.0
  %242 = vmatpush1.msra.mxu0 0.0
  %243 = vmatprep.subr.mxu0 0.0
  %244 = vmatpush1.msra.mxu0 0.0
  %245 = vmatprep.subr.mxu0 0.0
  %246 = vmatpush1.msra.mxu0 0.0
  %247 = vmatprep.subr.mxu0 0.0
  %248 = vmatpush1.msra.mxu0 0.0
  %249 = vmatprep.subr.mxu0 0.0
  %250 = vmatpush1.msra.mxu0 0.0
  %251 = vmatprep.subr.mxu0 0.0
  %252 = vmatpush1.msra.mxu0 0.0
  %253 = vmatprep.subr.mxu0 0.0
  %254 = vmatpush1.msra.mxu0 0.0
  %255 = vmatprep.subr.mxu0 0.0
  %256 = vmatpush1.msra.mxu0 0.0
  %257 = vmatprep.subr.mxu0 0.0
  %258 = vmatpush1.msra.mxu0 0.0
  %259 = vmatprep.subr.mxu0 0.0
  %260 = vmatpush1.msra.mxu0 0.0
  %261 = vmatprep.subr.mxu0 0.0
  %262 = vmatpush1.msra.mxu0 0.0
  %263 = vmatprep.subr.mxu0 0.0
  %264 = vmatpush1.msra.mxu0 0.0
  %265 = vmatprep.subr.mxu0 0.0
  %266 = vmatpush1.msra.mxu0 0.0
  %267 = vmatprep.subr.mxu0 0.0
  %268 = vmatpush1.msra.mxu0 0.0
  %269 = vmatprep.subr.mxu0 0.0
  %270 = vmatpush1.msra.mxu0 0.0
  %271 = vmatprep.subr.mxu0 0.0
  %272 = vmatpush1.msra.mxu0 0.0
  %273 = vmatprep.subr.mxu0 0.0
  %274 = vmatpush1.msra.mxu0 0.0
  %275 = vmatprep.subr.mxu0 0.0
  %276 = vmatpush1.msra.mxu0 0.0
  %277 = vmatprep.subr.mxu0 0.0
  %278 = vmatpush1.msra.mxu0 0.0
  %279 = vmatprep.subr.mxu0 0.0
  %280 = vmatpush1.msra.mxu0 0.0
  %281 = vmatprep.subr.mxu0 0.0
  %282 = vmatpush1.msra.mxu0 0.0
  %283 = vmatprep.subr.mxu0 0.0
  %284 = vmatpush1.msra.mxu0 0.0
  %285 = vmatprep.subr.mxu0 0.0
  %286 = vmatpush1.msra.mxu0 0.0
  %287 = vmatprep.subr.mxu0 0.0
  %288 = vmatpush1.msra.mxu0 0.0
  %289 = vmatprep.subr.mxu0 0.0
  %290 = vmatpush1.msra.mxu0 0.0
  %291 = vmatprep.subr.mxu0 0.0
  %292 = vmatpush1.msra.mxu0 0.0
  %293 = vmatprep.mubr.f32.mxu0 0.0
  %294 = vmatmul.mubr.f32.gmra.mrb[0].mxu0 %v146
  %v295 = vpop.f32.mrb[0].mxu0
  %v296 = vadd.f32 %v227, %v295
  %v297 = vpop.f32.mrb[0].mxu0
  %298 = vdwg.mxu0
  %v299 = vld [vmem:[%s17] sm:$0xff]
  %v300 = vld [vmem:[%s17 + $0x8] sm:$0xff]
  %v301 = vld [vmem:[%s17 + $0x10] sm:$0xff]
  %v302 = vld [vmem:[%s17 + $0x18] sm:$0xff]
  %v303 = vld [vmem:[%s19] sm:$0x1]
  %v305 = vlaneseq
  %v306 = vshrl.u32 %v305, 7
  %v307 = vsub.s32 0, %v306
  %v308 = vrot.slane %v303, %v307
  %v311 = vsel %vm144, %v126, 0
  %313 = vmatprep.subr.mxu0 0.0
  %314 = vmatpush1.msra.mxu0 %v299
  %315 = vmatprep.subr.mxu0 0.0
  %316 = vmatpush1.msra.mxu0 %v300
  %317 = vmatprep.subr.mxu0 0.0
  %318 = vmatpush1.msra.mxu0 %v301
  %319 = vmatprep.subr.mxu0 0.0
  %320 = vmatpush1.msra.mxu0 %v302
  %321 = vmatprep.subr.mxu0 0.0
  %322 = vmatpush1.msra.mxu0 0.0
  %323 = vmatprep.subr.mxu0 0.0
  %324 = vmatpush1.msra.mxu0 0.0
  %325 = vmatprep.subr.mxu0 0.0
  %326 = vmatpush1.msra.mxu0 0.0
  %327 = vmatprep.subr.mxu0 0.0
  %328 = vmatpush1.msra.mxu0 0.0
  %329 = vmatprep.subr.mxu0 0.0
  %330 = vmatpush1.msra.mxu0 0.0
  %331 = vmatprep.subr.mxu0 0.0
  %332 = vmatpush1.msra.mxu0 0.0
  %333 = vmatprep.subr.mxu0 0.0
  %334 = vmatpush1.msra.mxu0 0.0
  %335 = vmatprep.subr.mxu0 0.0
  %336 = vmatpush1.msra.mxu0 0.0
  %337 = vmatprep.subr.mxu0 0.0
  %338 = vmatpush1.msra.mxu0 0.0
  %339 = vmatprep.subr.mxu0 0.0
  %340 = vmatpush1.msra.mxu0 0.0
  %341 = vmatprep.subr.mxu0 0.0
  %342 = vmatpush1.msra.mxu0 0.0
  %343 = vmatprep.subr.mxu0 0.0
  %344 = vmatpush1.msra.mxu0 0.0
  %345 = vmatprep.subr.mxu0 0.0
  %346 = vmatpush1.msra.mxu0 0.0
  %347 = vmatprep.subr.mxu0 0.0
  %348 = vmatpush1.msra.mxu0 0.0
  %349 = vmatprep.subr.mxu0 0.0
  %350 = vmatpush1.msra.mxu0 0.0
  %351 = vmatprep.subr.mxu0 0.0
  %352 = vmatpush1.msra.mxu0 0.0
  %353 = vmatprep.subr.mxu0 0.0
  %354 = vmatpush1.msra.mxu0 0.0
  %355 = vmatprep.subr.mxu0 0.0
  %356 = vmatpush1.msra.mxu0 0.0
  %357 = vmatprep.subr.mxu0 0.0
  %358 = vmatpush1.msra.mxu0 0.0
  %359 = vmatprep.subr.mxu0 0.0
  %360 = vmatpush1.msra.mxu0 0.0
  %361 = vmatprep.subr.mxu0 0.0
  %362 = vmatpush1.msra.mxu0 0.0
  %363 = vmatprep.subr.mxu0 0.0
  %364 = vmatpush1.msra.mxu0 0.0
  %365 = vmatprep.subr.mxu0 0.0
  %366 = vmatpush1.msra.mxu0 0.0
  %367 = vmatprep.subr.mxu0 0.0
  %368 = vmatpush1.msra.mxu0 0.0
  %369 = vmatprep.subr.mxu0 0.0
  %370 = vmatpush1.msra.mxu0 0.0
  %371 = vmatprep.subr.mxu0 0.0
  %372 = vmatpush1.msra.mxu0 0.0
  %373 = vmatprep.subr.mxu0 0.0
  %374 = vmatpush1.msra.mxu0 0.0
  %375 = vmatprep.subr.mxu0 0.0
  %376 = vmatpush1.msra.mxu0 0.0
  %377 = vmatprep.mubr.f32.mxu0 0.0
  %378 = vmatmul.mubr.f32.gmra.mrb[0].mxu0 %v311
  %v379 = vpop.f32.mrb[0].mxu0
  %v380 = vadd.f32 %v308, %v379
  %v381 = vpop.f32.mrb[0].mxu0
  %382 = vdwg.mxu0
  %v383 = vlaneseq
  %v384 = vand.u32 %v383, 127
  %vm385 = vcmp.ge.s32.totalorder %v384, 0
  %vm386 = vcmp.lt.s32.totalorder %v384, 8
  %vm387 = vmand %vm385, %vm386
  %v388 = vsel %vm387, 1.0, 0.0
  %v389 = vmul.f32 %v215, %v388
  %v390 = vmul.f32 %v296, %v388
  %v392 = vsel %vm144, %v389, 0
  %v395 = vsel %vm144, %v390, 0
  %397 = vmatprep.subr.mxu0 0.0
  %398 = vmatpush1.xpose.msra.mxu0 %v395
  %399 = vmatprep.subr.mxu0 0.0
  %400 = vmatpush1.xpose.msra.mxu0 0.0
  %401 = vmatprep.subr.mxu0 0.0
  %402 = vmatpush1.xpose.msra.mxu0 0.0
  %403 = vmatprep.subr.mxu0 0.0
  %404 = vmatpush1.xpose.msra.mxu0 0.0
  %405 = vmatprep.subr.mxu0 0.0
  %406 = vmatpush1.xpose.msra.mxu0 0.0
  %407 = vmatprep.subr.mxu0 0.0
  %408 = vmatpush1.xpose.msra.mxu0 0.0
  %409 = vmatprep.subr.mxu0 0.0
  %410 = vmatpush1.xpose.msra.mxu0 0.0
  %411 = vmatprep.subr.mxu0 0.0
  %412 = vmatpush1.xpose.msra.mxu0 0.0
  %413 = vmatprep.subr.mxu0 0.0
  %414 = vmatpush1.xpose.msra.mxu0 0.0
  %415 = vmatprep.subr.mxu0 0.0
  %416 = vmatpush1.xpose.msra.mxu0 0.0
  %417 = vmatprep.subr.mxu0 0.0
  %418 = vmatpush1.xpose.msra.mxu0 0.0
  %419 = vmatprep.subr.mxu0 0.0
  %420 = vmatpush1.xpose.msra.mxu0 0.0
  %421 = vmatprep.subr.mxu0 0.0
  %422 = vmatpush1.xpose.msra.mxu0 0.0
  %423 = vmatprep.subr.mxu0 0.0
  %424 = vmatpush1.xpose.msra.mxu0 0.0
  %425 = vmatprep.subr.mxu0 0.0
  %426 = vmatpush1.xpose.msra.mxu0 0.0
  %427 = vmatprep.subr.mxu0 0.0
  %428 = vmatpush1.xpose.msra.mxu0 0.0
  %429 = vmatprep.subr.mxu0 0.0
  %430 = vmatpush1.xpose.msra.mxu0 0.0
  %431 = vmatprep.subr.mxu0 0.0
  %432 = vmatpush1.xpose.msra.mxu0 0.0
  %433 = vmatprep.subr.mxu0 0.0
  %434 = vmatpush1.xpose.msra.mxu0 0.0
  %435 = vmatprep.subr.mxu0 0.0
  %436 = vmatpush1.xpose.msra.mxu0 0.0
  %437 = vmatprep.subr.mxu0 0.0
  %438 = vmatpush1.xpose.msra.mxu0 0.0
  %439 = vmatprep.subr.mxu0 0.0
  %440 = vmatpush1.xpose.msra.mxu0 0.0
  %441 = vmatprep.subr.mxu0 0.0
  %442 = vmatpush1.xpose.msra.mxu0 0.0
  %443 = vmatprep.subr.mxu0 0.0
  %444 = vmatpush1.xpose.msra.mxu0 0.0
  %445 = vmatprep.subr.mxu0 0.0
  %446 = vmatpush1.xpose.msra.mxu0 0.0
  %447 = vmatprep.subr.mxu0 0.0
  %448 = vmatpush1.xpose.msra.mxu0 0.0
  %449 = vmatprep.subr.mxu0 0.0
  %450 = vmatpush1.xpose.msra.mxu0 0.0
  %451 = vmatprep.subr.mxu0 0.0
  %452 = vmatpush1.xpose.msra.mxu0 0.0
  %453 = vmatprep.subr.mxu0 0.0
  %454 = vmatpush1.xpose.msra.mxu0 0.0
  %455 = vmatprep.subr.mxu0 0.0
  %456 = vmatpush1.xpose.msra.mxu0 0.0
  %457 = vmatprep.subr.mxu0 0.0
  %458 = vmatpush1.xpose.msra.mxu0 0.0
  %459 = vmatprep.subr.mxu0 0.0
  %460 = vmatpush1.xpose.msra.mxu0 0.0
  %461 = vmatprep.mubr.f32.mxu0 0.0
  %462 = vmatmul.mubr.f32.gmra.mrb[0].mxu0 %v392
  %v463 = vpop.f32.mrb[0].mxu0
  %v464 = vadd.f32 0.0, %v463
  %v465 = vpop.f32.mrb[0].mxu0
  %466 = vdwg.mxu0
  %v467 = vmul.f32 %v464, 0.35355338
  %vm468 = vcmask 64512
  %v469 = vsel %vm468, %v467, -inf
  %470 = vmax.xlane.f32.xlu0 %v469
  %v471 = vpop.xlane.xlu0 %470
  %v472 = vsub.f32 %v467, %v471
  %v473 = vmul.f32 %v472, 1.442695
  %v474 = vpow.pop %v473
  %v475 = vsel %vm468, %v474, 0.0
  %476 = vadd.xlane.f32.xlu0 %v475
  %v477 = vpop.xlane.xlu0 %476
  %v478 = vrcp.pop %v477
  %v479 = vmul.f32 %v474, %v478
  %v480 = vmul.f32 %v380, %v388
  %vm481 = vcmp.ge.s32.totalorder %v384, 8
  %vm482 = vcmp.lt.s32.totalorder %v384, 16
  %vm483 = vmand %vm481, %vm482
  %v484 = vsel %vm483, 1.0, 0.0
  %v485 = vmul.f32 %v215, %v484
  %v486 = vmul.f32 %v296, %v484
  %v488 = vsel %vm144, %v485, 0
  %v491 = vsel %vm144, %v486, 0
  %493 = vmatprep.subr.mxu0 0.0
  %494 = vmatpush1.xpose.msra.mxu0 %v491
  %495 = vmatprep.subr.mxu0 0.0
  %496 = vmatpush1.xpose.msra.mxu0 0.0
  %497 = vmatprep.subr.mxu0 0.0
  %498 = vmatpush1.xpose.msra.mxu0 0.0
  %499 = vmatprep.subr.mxu0 0.0
  %500 = vmatpush1.xpose.msra.mxu0 0.0
  %501 = vmatprep.subr.mxu0 0.0
  %502 = vmatpush1.xpose.msra.mxu0 0.0
  %503 = vmatprep.subr.mxu0 0.0
  %504 = vmatpush1.xpose.msra.mxu0 0.0
  %505 = vmatprep.subr.mxu0 0.0
  %506 = vmatpush1.xpose.msra.mxu0 0.0
  %507 = vmatprep.subr.mxu0 0.0
  %508 = vmatpush1.xpose.msra.mxu0 0.0
  %509 = vmatprep.subr.mxu0 0.0
  %510 = vmatpush1.xpose.msra.mxu0 0.0
  %511 = vmatprep.subr.mxu0 0.0
  %512 = vmatpush1.xpose.msra.mxu0 0.0
  %513 = vmatprep.subr.mxu0 0.0
  %514 = vmatpush1.xpose.msra.mxu0 0.0
  %515 = vmatprep.subr.mxu0 0.0
  %516 = vmatpush1.xpose.msra.mxu0 0.0
  %517 = vmatprep.subr.mxu0 0.0
  %518 = vmatpush1.xpose.msra.mxu0 0.0
  %519 = vmatprep.subr.mxu0 0.0
  %520 = vmatpush1.xpose.msra.mxu0 0.0
  %521 = vmatprep.subr.mxu0 0.0
  %522 = vmatpush1.xpose.msra.mxu0 0.0
  %523 = vmatprep.subr.mxu0 0.0
  %524 = vmatpush1.xpose.msra.mxu0 0.0
  %525 = vmatprep.subr.mxu0 0.0
  %526 = vmatpush1.xpose.msra.mxu0 0.0
  %527 = vmatprep.subr.mxu0 0.0
  %528 = vmatpush1.xpose.msra.mxu0 0.0
  %529 = vmatprep.subr.mxu0 0.0
  %530 = vmatpush1.xpose.msra.mxu0 0.0
  %531 = vmatprep.subr.mxu0 0.0
  %532 = vmatpush1.xpose.msra.mxu0 0.0
  %533 = vmatprep.subr.mxu0 0.0
  %534 = vmatpush1.xpose.msra.mxu0 0.0
  %535 = vmatprep.subr.mxu0 0.0
  %536 = vmatpush1.xpose.msra.mxu0 0.0
  %537 = vmatprep.subr.mxu0 0.0
  %538 = vmatpush1.xpose.msra.mxu0 0.0
  %539 = vmatprep.subr.mxu0 0.0
  %540 = vmatpush1.xpose.msra.mxu0 0.0
  %541 = vmatprep.subr.mxu0 0.0
  %542 = vmatpush1.xpose.msra.mxu0 0.0
  %543 = vmatprep.subr.mxu0 0.0
  %544 = vmatpush1.xpose.msra.mxu0 0.0
  %545 = vmatprep.subr.mxu0 0.0
  %546 = vmatpush1.xpose.msra.mxu0 0.0
  %547 = vmatprep.subr.mxu0 0.0
  %548 = vmatpush1.xpose.msra.mxu0 0.0
  %549 = vmatprep.subr.mxu0 0.0
  %550 = vmatpush1.xpose.msra.mxu0 0.0
  %551 = vmatprep.subr.mxu0 0.0
  %552 = vmatpush1.xpose.msra.mxu0 0.0
  %553 = vmatprep.subr.mxu0 0.0
  %554 = vmatpush1.xpose.msra.mxu0 0.0
  %555 = vmatprep.subr.mxu0 0.0
  %556 = vmatpush1.xpose.msra.mxu0 0.0
  %557 = vmatprep.mubr.f32.mxu0 0.0
  %558 = vmatmul.mubr.f32.gmra.mrb[0].mxu0 %v488
  %v559 = vpop.f32.mrb[0].mxu0
  %v560 = vadd.f32 0.0, %v559
  %v561 = vpop.f32.mrb[0].mxu0
  %562 = vdwg.mxu0
  %v563 = vmul.f32 %v560, 0.35355338
  %v564 = vsel %vm468, %v563, -inf
  %565 = vmax.xlane.f32.xlu0 %v564
  %v566 = vpop.xlane.xlu0 %565
  %v567 = vsub.f32 %v563, %v566
  %v568 = vmul.f32 %v567, 1.442695
  %v569 = vpow.pop %v568
  %v570 = vsel %vm468, %v569, 0.0
  %571 = vadd.xlane.f32.xlu0 %v570
  %v572 = vpop.xlane.xlu0 %571
  %v573 = vrcp.pop %v572
  %v574 = vmul.f32 %v569, %v573
  %v575 = vmul.f32 %v380, %v484
  %v577 = vsel %vm468, %v574, 0
  %579 = vmatprep.subr.mxu0 0.0
  %580 = vmatpush1.msra.mxu0 %v575
  %581 = vmatprep.subr.mxu0 0.0
  %582 = vmatpush1.msra.mxu0 0.0
  %583 = vmatprep.subr.mxu0 0.0
  %584 = vmatpush1.msra.mxu0 0.0
  %585 = vmatprep.subr.mxu0 0.0
  %586 = vmatpush1.msra.mxu0 0.0
  %587 = vmatprep.subr.mxu0 0.0
  %588 = vmatpush1.msra.mxu0 0.0
  %589 = vmatprep.subr.mxu0 0.0
  %590 = vmatpush1.msra.mxu0 0.0
  %591 = vmatprep.subr.mxu0 0.0
  %592 = vmatpush1.msra.mxu0 0.0
  %593 = vmatprep.subr.mxu0 0.0
  %594 = vmatpush1.msra.mxu0 0.0
  %595 = vmatprep.subr.mxu0 0.0
  %596 = vmatpush1.msra.mxu0 0.0
  %597 = vmatprep.subr.mxu0 0.0
  %598 = vmatpush1.msra.mxu0 0.0
  %599 = vmatprep.subr.mxu0 0.0
  %600 = vmatpush1.msra.mxu0 0.0
  %601 = vmatprep.subr.mxu0 0.0
  %602 = vmatpush1.msra.mxu0 0.0
  %603 = vmatprep.subr.mxu0 0.0
  %604 = vmatpush1.msra.mxu0 0.0
  %605 = vmatprep.subr.mxu0 0.0
  %606 = vmatpush1.msra.mxu0 0.0
  %607 = vmatprep.subr.mxu0 0.0
  %608 = vmatpush1.msra.mxu0 0.0
  %609 = vmatprep.subr.mxu0 0.0
  %610 = vmatpush1.msra.mxu0 0.0
  %611 = vmatprep.subr.mxu0 0.0
  %612 = vmatpush1.msra.mxu0 0.0
  %613 = vmatprep.subr.mxu0 0.0
  %614 = vmatpush1.msra.mxu0 0.0
  %615 = vmatprep.subr.mxu0 0.0
  %616 = vmatpush1.msra.mxu0 0.0
  %617 = vmatprep.subr.mxu0 0.0
  %618 = vmatpush1.msra.mxu0 0.0
  %619 = vmatprep.subr.mxu0 0.0
  %620 = vmatpush1.msra.mxu0 0.0
  %621 = vmatprep.subr.mxu0 0.0
  %622 = vmatpush1.msra.mxu0 0.0
  %623 = vmatprep.subr.mxu0 0.0
  %624 = vmatpush1.msra.mxu0 0.0
  %625 = vmatprep.subr.mxu0 0.0
  %626 = vmatpush1.msra.mxu0 0.0
  %627 = vmatprep.subr.mxu0 0.0
  %628 = vmatpush1.msra.mxu0 0.0
  %629 = vmatprep.subr.mxu0 0.0
  %630 = vmatpush1.msra.mxu0 0.0
  %631 = vmatprep.subr.mxu0 0.0
  %632 = vmatpush1.msra.mxu0 0.0
  %633 = vmatprep.subr.mxu0 0.0
  %634 = vmatpush1.msra.mxu0 0.0
  %635 = vmatprep.subr.mxu0 0.0
  %636 = vmatpush1.msra.mxu0 0.0
  %637 = vmatprep.subr.mxu0 0.0
  %638 = vmatpush1.msra.mxu0 0.0
  %639 = vmatprep.subr.mxu0 0.0
  %640 = vmatpush1.msra.mxu0 0.0
  %641 = vmatprep.subr.mxu0 0.0
  %642 = vmatpush1.msra.mxu0 0.0
  %643 = vmatprep.mubr.f32.mxu0 0.0
  %644 = vmatmul.mubr.f32.gmra.mrb[0].mxu0 %v577
  %v645 = vpop.f32.mrb[0].mxu0
  %v646 = vadd.f32 0.0, %v645
  %v647 = vpop.f32.mrb[0].mxu0
  %648 = vdwg.mxu0
  %v650 = vsel %vm468, %v479, 0
  %652 = vmatprep.subr.mxu0 0.0
  %653 = vmatpush1.msra.mxu0 %v480
  %654 = vmatprep.subr.mxu0 0.0
  %655 = vmatpush1.msra.mxu0 0.0
  %656 = vmatprep.subr.mxu0 0.0
  %657 = vmatpush1.msra.mxu0 0.0
  %658 = vmatprep.subr.mxu0 0.0
  %659 = vmatpush1.msra.mxu0 0.0
  %660 = vmatprep.subr.mxu0 0.0
  %661 = vmatpush1.msra.mxu0 0.0
  %662 = vmatprep.subr.mxu0 0.0
  %663 = vmatpush1.msra.mxu0 0.0
  %664 = vmatprep.subr.mxu0 0.0
  %665 = vmatpush1.msra.mxu0 0.0
  %666 = vmatprep.subr.mxu0 0.0
  %667 = vmatpush1.msra.mxu0 0.0
  %668 = vmatprep.subr.mxu0 0.0
  %669 = vmatpush1.msra.mxu0 0.0
  %670 = vmatprep.subr.mxu0 0.0
  %671 = vmatpush1.msra.mxu0 0.0
  %672 = vmatprep.subr.mxu0 0.0
  %673 = vmatpush1.msra.mxu0 0.0
  %674 = vmatprep.subr.mxu0 0.0
  %675 = vmatpush1.msra.mxu0 0.0
  %676 = vmatprep.subr.mxu0 0.0
  %677 = vmatpush1.msra.mxu0 0.0
  %678 = vmatprep.subr.mxu0 0.0
  %679 = vmatpush1.msra.mxu0 0.0
  %680 = vmatprep.subr.mxu0 0.0
  %681 = vmatpush1.msra.mxu0 0.0
  %682 = vmatprep.subr.mxu0 0.0
  %683 = vmatpush1.msra.mxu0 0.0
  %684 = vmatprep.subr.mxu0 0.0
  %685 = vmatpush1.msra.mxu0 0.0
  %686 = vmatprep.subr.mxu0 0.0
  %687 = vmatpush1.msra.mxu0 0.0
  %688 = vmatprep.subr.mxu0 0.0
  %689 = vmatpush1.msra.mxu0 0.0
  %690 = vmatprep.subr.mxu0 0.0
  %691 = vmatpush1.msra.mxu0 0.0
  %692 = vmatprep.subr.mxu0 0.0
  %693 = vmatpush1.msra.mxu0 0.0
  %694 = vmatprep.subr.mxu0 0.0
  %695 = vmatpush1.msra.mxu0 0.0
  %696 = vmatprep.subr.mxu0 0.0
  %697 = vmatpush1.msra.mxu0 0.0
  %698 = vmatprep.subr.mxu0 0.0
  %699 = vmatpush1.msra.mxu0 0.0
  %700 = vmatprep.subr.mxu0 0.0
  %701 = vmatpush1.msra.mxu0 0.0
  %702 = vmatprep.subr.mxu0 0.0
  %703 = vmatpush1.msra.mxu0 0.0
  %704 = vmatprep.subr.mxu0 0.0
  %705 = vmatpush1.msra.mxu0 0.0
  %706 = vmatprep.subr.mxu0 0.0
  %707 = vmatpush1.msra.mxu0 0.0
  %708 = vmatprep.subr.mxu0 0.0
  %709 = vmatpush1.msra.mxu0 0.0
  %710 = vmatprep.subr.mxu0 0.0
  %711 = vmatpush1.msra.mxu0 0.0
  %712 = vmatprep.subr.mxu0 0.0
  %713 = vmatpush1.msra.mxu0 0.0
  %714 = vmatprep.subr.mxu0 0.0
  %715 = vmatpush1.msra.mxu0 0.0
  %716 = vmatprep.mubr.f32.mxu0 0.0
  %717 = vmatmul.mubr.f32.gmra.mrb[0].mxu0 %v650
  %v718 = vpop.f32.mrb[0].mxu0
  %v719 = vadd.f32 %v646, %v718
  %v720 = vpop.f32.mrb[0].mxu0
  %721 = vdwg.mxu0
  %vm722 = vcmp.ge.s32.totalorder %v384, 16
  %vm723 = vcmp.lt.s32.totalorder %v384, 24
  %vm724 = vmand %vm722, %vm723
  %v725 = vsel %vm724, 1.0, 0.0
  %v726 = vmul.f32 %v215, %v725
  %v727 = vmul.f32 %v296, %v725
  %v729 = vsel %vm144, %v726, 0
  %v732 = vsel %vm144, %v727, 0
  %734 = vmatprep.subr.mxu0 0.0
  %735 = vmatpush1.xpose.msra.mxu0 %v732
  %736 = vmatprep.subr.mxu0 0.0
  %737 = vmatpush1.xpose.msra.mxu0 0.0
  %738 = vmatprep.subr.mxu0 0.0
  %739 = vmatpush1.xpose.msra.mxu0 0.0
  %740 = vmatprep.subr.mxu0 0.0
  %741 = vmatpush1.xpose.msra.mxu0 0.0
  %742 = vmatprep.subr.mxu0 0.0
  %743 = vmatpush1.xpose.msra.mxu0 0.0
  %744 = vmatprep.subr.mxu0 0.0
  %745 = vmatpush1.xpose.msra.mxu0 0.0
  %746 = vmatprep.subr.mxu0 0.0
  %747 = vmatpush1.xpose.msra.mxu0 0.0
  %748 = vmatprep.subr.mxu0 0.0
  %749 = vmatpush1.xpose.msra.mxu0 0.0
  %750 = vmatprep.subr.mxu0 0.0
  %751 = vmatpush1.xpose.msra.mxu0 0.0
  %752 = vmatprep.subr.mxu0 0.0
  %753 = vmatpush1.xpose.msra.mxu0 0.0
  %754 = vmatprep.subr.mxu0 0.0
  %755 = vmatpush1.xpose.msra.mxu0 0.0
  %756 = vmatprep.subr.mxu0 0.0
  %757 = vmatpush1.xpose.msra.mxu0 0.0
  %758 = vmatprep.subr.mxu0 0.0
  %759 = vmatpush1.xpose.msra.mxu0 0.0
  %760 = vmatprep.subr.mxu0 0.0
  %761 = vmatpush1.xpose.msra.mxu0 0.0
  %762 = vmatprep.subr.mxu0 0.0
  %763 = vmatpush1.xpose.msra.mxu0 0.0
  %764 = vmatprep.subr.mxu0 0.0
  %765 = vmatpush1.xpose.msra.mxu0 0.0
  %766 = vmatprep.subr.mxu0 0.0
  %767 = vmatpush1.xpose.msra.mxu0 0.0
  %768 = vmatprep.subr.mxu0 0.0
  %769 = vmatpush1.xpose.msra.mxu0 0.0
  %770 = vmatprep.subr.mxu0 0.0
  %771 = vmatpush1.xpose.msra.mxu0 0.0
  %772 = vmatprep.subr.mxu0 0.0
  %773 = vmatpush1.xpose.msra.mxu0 0.0
  %774 = vmatprep.subr.mxu0 0.0
  %775 = vmatpush1.xpose.msra.mxu0 0.0
  %776 = vmatprep.subr.mxu0 0.0
  %777 = vmatpush1.xpose.msra.mxu0 0.0
  %778 = vmatprep.subr.mxu0 0.0
  %779 = vmatpush1.xpose.msra.mxu0 0.0
  %780 = vmatprep.subr.mxu0 0.0
  %781 = vmatpush1.xpose.msra.mxu0 0.0
  %782 = vmatprep.subr.mxu0 0.0
  %783 = vmatpush1.xpose.msra.mxu0 0.0
  %784 = vmatprep.subr.mxu0 0.0
  %785 = vmatpush1.xpose.msra.mxu0 0.0
  %786 = vmatprep.subr.mxu0 0.0
  %787 = vmatpush1.xpose.msra.mxu0 0.0
  %788 = vmatprep.subr.mxu0 0.0
  %789 = vmatpush1.xpose.msra.mxu0 0.0
  %790 = vmatprep.subr.mxu0 0.0
  %791 = vmatpush1.xpose.msra.mxu0 0.0
  %792 = vmatprep.subr.mxu0 0.0
  %793 = vmatpush1.xpose.msra.mxu0 0.0
  %794 = vmatprep.subr.mxu0 0.0
  %795 = vmatpush1.xpose.msra.mxu0 0.0
  %796 = vmatprep.subr.mxu0 0.0
  %797 = vmatpush1.xpose.msra.mxu0 0.0
  %798 = vmatprep.mubr.f32.mxu0 0.0
  %799 = vmatmul.mubr.f32.gmra.mrb[0].mxu0 %v729
  %v800 = vpop.f32.mrb[0].mxu0
  %v801 = vadd.f32 0.0, %v800
  %v802 = vpop.f32.mrb[0].mxu0
  %803 = vdwg.mxu0
  %v804 = vmul.f32 %v801, 0.35355338
  %v805 = vsel %vm468, %v804, -inf
  %806 = vmax.xlane.f32.xlu0 %v805
  %v807 = vpop.xlane.xlu0 %806
  %v808 = vsub.f32 %v804, %v807
  %v809 = vmul.f32 %v808, 1.442695
  %v810 = vpow.pop %v809
  %v811 = vsel %vm468, %v810, 0.0
  %812 = vadd.xlane.f32.xlu0 %v811
  %v813 = vpop.xlane.xlu0 %812
  %v814 = vrcp.pop %v813
  %v815 = vmul.f32 %v810, %v814
  %v816 = vmul.f32 %v380, %v725
  %v818 = vsel %vm468, %v815, 0
  %820 = vmatprep.subr.mxu0 0.0
  %821 = vmatpush1.msra.mxu0 %v816
  %822 = vmatprep.subr.mxu0 0.0
  %823 = vmatpush1.msra.mxu0 0.0
  %824 = vmatprep.subr.mxu0 0.0
  %825 = vmatpush1.msra.mxu0 0.0
  %826 = vmatprep.subr.mxu0 0.0
  %827 = vmatpush1.msra.mxu0 0.0
  %828 = vmatprep.subr.mxu0 0.0
  %829 = vmatpush1.msra.mxu0 0.0
  %830 = vmatprep.subr.mxu0 0.0
  %831 = vmatpush1.msra.mxu0 0.0
  %832 = vmatprep.subr.mxu0 0.0
  %833 = vmatpush1.msra.mxu0 0.0
  %834 = vmatprep.subr.mxu0 0.0
  %835 = vmatpush1.msra.mxu0 0.0
  %836 = vmatprep.subr.mxu0 0.0
  %837 = vmatpush1.msra.mxu0 0.0
  %838 = vmatprep.subr.mxu0 0.0
  %839 = vmatpush1.msra.mxu0 0.0
  %840 = vmatprep.subr.mxu0 0.0
  %841 = vmatpush1.msra.mxu0 0.0
  %842 = vmatprep.subr.mxu0 0.0
  %843 = vmatpush1.msra.mxu0 0.0
  %844 = vmatprep.subr.mxu0 0.0
  %845 = vmatpush1.msra.mxu0 0.0
  %846 = vmatprep.subr.mxu0 0.0
  %847 = vmatpush1.msra.mxu0 0.0
  %848 = vmatprep.subr.mxu0 0.0
  %849 = vmatpush1.msra.mxu0 0.0
  %850 = vmatprep.subr.mxu0 0.0
  %851 = vmatpush1.msra.mxu0 0.0
  %852 = vmatprep.subr.mxu0 0.0
  %853 = vmatpush1.msra.mxu0 0.0
  %854 = vmatprep.subr.mxu0 0.0
  %855 = vmatpush1.msra.mxu0 0.0
  %856 = vmatprep.subr.mxu0 0.0
  %857 = vmatpush1.msra.mxu0 0.0
  %858 = vmatprep.subr.mxu0 0.0
  %859 = vmatpush1.msra.mxu0 0.0
  %860 = vmatprep.subr.mxu0 0.0
  %861 = vmatpush1.msra.mxu0 0.0
  %862 = vmatprep.subr.mxu0 0.0
  %863 = vmatpush1.msra.mxu0 0.0
  %864 = vmatprep.subr.mxu0 0.0
  %865 = vmatpush1.msra.mxu0 0.0
  %866 = vmatprep.subr.mxu0 0.0
  %867 = vmatpush1.msra.mxu0 0.0
  %868 = vmatprep.subr.mxu0 0.0
  %869 = vmatpush1.msra.mxu0 0.0
  %870 = vmatprep.subr.mxu0 0.0
  %871 = vmatpush1.msra.mxu0 0.0
  %872 = vmatprep.subr.mxu0 0.0
  %873 = vmatpush1.msra.mxu0 0.0
  %874 = vmatprep.subr.mxu0 0.0
  %875 = vmatpush1.msra.mxu0 0.0
  %876 = vmatprep.subr.mxu0 0.0
  %877 = vmatpush1.msra.mxu0 0.0
  %878 = vmatprep.subr.mxu0 0.0
  %879 = vmatpush1.msra.mxu0 0.0
  %880 = vmatprep.subr.mxu0 0.0
  %881 = vmatpush1.msra.mxu0 0.0
  %882 = vmatprep.subr.mxu0 0.0
  %883 = vmatpush1.msra.mxu0 0.0
  %884 = vmatprep.mubr.f32.mxu0 0.0
  %885 = vmatmul.mubr.f32.gmra.mrb[0].mxu0 %v818
  %v886 = vpop.f32.mrb[0].mxu0
  %v887 = vadd.f32 0.0, %v886
  %v888 = vpop.f32.mrb[0].mxu0
  %889 = vdwg.mxu0
  %v890 = vadd.f32 %v719, %v887
  %vm891 = vcmp.ge.s32.totalorder %v384, 24
  %vm892 = vcmp.lt.s32.totalorder %v384, 32
  %vm893 = vmand %vm891, %vm892
  %v894 = vsel %vm893, 1.0, 0.0
  %v895 = vmul.f32 %v215, %v894
  %v896 = vmul.f32 %v296, %v894
  %v898 = vsel %vm144, %v895, 0
  %v901 = vsel %vm144, %v896, 0
  %903 = vmatprep.subr.mxu0 0.0
  %904 = vmatpush1.xpose.msra.mxu0 %v901
  %905 = vmatprep.subr.mxu0 0.0
  %906 = vmatpush1.xpose.msra.mxu0 0.0
  %907 = vmatprep.subr.mxu0 0.0
  %908 = vmatpush1.xpose.msra.mxu0 0.0
  %909 = vmatprep.subr.mxu0 0.0
  %910 = vmatpush1.xpose.msra.mxu0 0.0
  %911 = vmatprep.subr.mxu0 0.0
  %912 = vmatpush1.xpose.msra.mxu0 0.0
  %913 = vmatprep.subr.mxu0 0.0
  %914 = vmatpush1.xpose.msra.mxu0 0.0
  %915 = vmatprep.subr.mxu0 0.0
  %916 = vmatpush1.xpose.msra.mxu0 0.0
  %917 = vmatprep.subr.mxu0 0.0
  %918 = vmatpush1.xpose.msra.mxu0 0.0
  %919 = vmatprep.subr.mxu0 0.0
  %920 = vmatpush1.xpose.msra.mxu0 0.0
  %921 = vmatprep.subr.mxu0 0.0
  %922 = vmatpush1.xpose.msra.mxu0 0.0
  %923 = vmatprep.subr.mxu0 0.0
  %924 = vmatpush1.xpose.msra.mxu0 0.0
  %925 = vmatprep.subr.mxu0 0.0
  %926 = vmatpush1.xpose.msra.mxu0 0.0
  %927 = vmatprep.subr.mxu0 0.0
  %928 = vmatpush1.xpose.msra.mxu0 0.0
  %929 = vmatprep.subr.mxu0 0.0
  %930 = vmatpush1.xpose.msra.mxu0 0.0
  %931 = vmatprep.subr.mxu0 0.0
  %932 = vmatpush1.xpose.msra.mxu0 0.0
  %933 = vmatprep.subr.mxu0 0.0
  %934 = vmatpush1.xpose.msra.mxu0 0.0
  %935 = vmatprep.subr.mxu0 0.0
  %936 = vmatpush1.xpose.msra.mxu0 0.0
  %937 = vmatprep.subr.mxu0 0.0
  %938 = vmatpush1.xpose.msra.mxu0 0.0
  %939 = vmatprep.subr.mxu0 0.0
  %940 = vmatpush1.xpose.msra.mxu0 0.0
  %941 = vmatprep.subr.mxu0 0.0
  %942 = vmatpush1.xpose.msra.mxu0 0.0
  %943 = vmatprep.subr.mxu0 0.0
  %944 = vmatpush1.xpose.msra.mxu0 0.0
  %945 = vmatprep.subr.mxu0 0.0
  %946 = vmatpush1.xpose.msra.mxu0 0.0
  %947 = vmatprep.subr.mxu0 0.0
  %948 = vmatpush1.xpose.msra.mxu0 0.0
  %949 = vmatprep.subr.mxu0 0.0
  %950 = vmatpush1.xpose.msra.mxu0 0.0
  %951 = vmatprep.subr.mxu0 0.0
  %952 = vmatpush1.xpose.msra.mxu0 0.0
  %953 = vmatprep.subr.mxu0 0.0
  %954 = vmatpush1.xpose.msra.mxu0 0.0
  %955 = vmatprep.subr.mxu0 0.0
  %956 = vmatpush1.xpose.msra.mxu0 0.0
  %957 = vmatprep.subr.mxu0 0.0
  %958 = vmatpush1.xpose.msra.mxu0 0.0
  %959 = vmatprep.subr.mxu0 0.0
  %960 = vmatpush1.xpose.msra.mxu0 0.0
  %961 = vmatprep.subr.mxu0 0.0
  %962 = vmatpush1.xpose.msra.mxu0 0.0
  %963 = vmatprep.subr.mxu0 0.0
  %964 = vmatpush1.xpose.msra.mxu0 0.0
  %965 = vmatprep.subr.mxu0 0.0
  %966 = vmatpush1.xpose.msra.mxu0 0.0
  %967 = vmatprep.mubr.f32.mxu0 0.0
  %968 = vmatmul.mubr.f32.gmra.mrb[0].mxu0 %v898
  %v969 = vpop.f32.mrb[0].mxu0
  %v970 = vadd.f32 0.0, %v969
  %v971 = vpop.f32.mrb[0].mxu0
  %972 = vdwg.mxu0
  %v973 = vmul.f32 %v970, 0.35355338
  %v974 = vsel %vm468, %v973, -inf
  %975 = vmax.xlane.f32.xlu0 %v974
  %v976 = vpop.xlane.xlu0 %975
  %v977 = vsub.f32 %v973, %v976
  %v978 = vmul.f32 %v977, 1.442695
  %v979 = vpow.pop %v978
  %v980 = vsel %vm468, %v979, 0.0
  %981 = vadd.xlane.f32.xlu0 %v980
  %v982 = vpop.xlane.xlu0 %981
  %v983 = vrcp.pop %v982
  %v984 = vmul.f32 %v979, %v983
  %v985 = vmul.f32 %v380, %v894
  %v987 = vsel %vm468, %v984, 0
  %989 = vmatprep.subr.mxu0 0.0
  %990 = vmatpush1.msra.mxu0 %v985
  %991 = vmatprep.subr.mxu0 0.0
  %992 = vmatpush1.msra.mxu0 0.0
  %993 = vmatprep.subr.mxu0 0.0
  %994 = vmatpush1.msra.mxu0 0.0
  %995 = vmatprep.subr.mxu0 0.0
  %996 = vmatpush1.msra.mxu0 0.0
  %997 = vmatprep.subr.mxu0 0.0
  %998 = vmatpush1.msra.mxu0 0.0
  %999 = vmatprep.subr.mxu0 0.0
  %1000 = vmatpush1.msra.mxu0 0.0
  %1001 = vmatprep.subr.mxu0 0.0
  %1002 = vmatpush1.msra.mxu0 0.0
  %1003 = vmatprep.subr.mxu0 0.0
  %1004 = vmatpush1.msra.mxu0 0.0
  %1005 = vmatprep.subr.mxu0 0.0
  %1006 = vmatpush1.msra.mxu0 0.0
  %1007 = vmatprep.subr.mxu0 0.0
  %1008 = vmatpush1.msra.mxu0 0.0
  %1009 = vmatprep.subr.mxu0 0.0
  %1010 = vmatpush1.msra.mxu0 0.0
  %1011 = vmatprep.subr.mxu0 0.0
  %1012 = vmatpush1.msra.mxu0 0.0
  %1013 = vmatprep.subr.mxu0 0.0
  %1014 = vmatpush1.msra.mxu0 0.0
  %1015 = vmatprep.subr.mxu0 0.0
  %1016 = vmatpush1.msra.mxu0 0.0
  %1017 = vmatprep.subr.mxu0 0.0
  %1018 = vmatpush1.msra.mxu0 0.0
  %1019 = vmatprep.subr.mxu0 0.0
  %1020 = vmatpush1.msra.mxu0 0.0
  %1021 = vmatprep.subr.mxu0 0.0
  %1022 = vmatpush1.msra.mxu0 0.0
  %1023 = vmatprep.subr.mxu0 0.0
  %1024 = vmatpush1.msra.mxu0 0.0
  %1025 = vmatprep.subr.mxu0 0.0
  %1026 = vmatpush1.msra.mxu0 0.0
  %1027 = vmatprep.subr.mxu0 0.0
  %1028 = vmatpush1.msra.mxu0 0.0
  %1029 = vmatprep.subr.mxu0 0.0
  %1030 = vmatpush1.msra.mxu0 0.0
  %1031 = vmatprep.subr.mxu0 0.0
  %1032 = vmatpush1.msra.mxu0 0.0
  %1033 = vmatprep.subr.mxu0 0.0
  %1034 = vmatpush1.msra.mxu0 0.0
  %1035 = vmatprep.subr.mxu0 0.0
  %1036 = vmatpush1.msra.mxu0 0.0
  %1037 = vmatprep.subr.mxu0 0.0
  %1038 = vmatpush1.msra.mxu0 0.0
  %1039 = vmatprep.subr.mxu0 0.0
  %1040 = vmatpush1.msra.mxu0 0.0
  %1041 = vmatprep.subr.mxu0 0.0
  %1042 = vmatpush1.msra.mxu0 0.0
  %1043 = vmatprep.subr.mxu0 0.0
  %1044 = vmatpush1.msra.mxu0 0.0
  %1045 = vmatprep.subr.mxu0 0.0
  %1046 = vmatpush1.msra.mxu0 0.0
  %1047 = vmatprep.subr.mxu0 0.0
  %1048 = vmatpush1.msra.mxu0 0.0
  %1049 = vmatprep.subr.mxu0 0.0
  %1050 = vmatpush1.msra.mxu0 0.0
  %1051 = vmatprep.subr.mxu0 0.0
  %1052 = vmatpush1.msra.mxu0 0.0
  %1053 = vmatprep.mubr.f32.mxu0 0.0
  %1054 = vmatmul.mubr.f32.gmra.mrb[0].mxu0 %v987
  %v1055 = vpop.f32.mrb[0].mxu0
  %v1056 = vadd.f32 0.0, %v1055
  %v1057 = vpop.f32.mrb[0].mxu0
  %1058 = vdwg.mxu0
  %v1059 = vadd.f32 %v890, %v1056
  %v1060 = vld [vmem:[%s21] sm:$0xff]
  %v1061 = vld [vmem:[%s21 + $0x8] sm:$0xff]
  %v1062 = vld [vmem:[%s21 + $0x10] sm:$0xff]
  %v1063 = vld [vmem:[%s21 + $0x18] sm:$0xff]
  %v1064 = vld [vmem:[%s23] sm:$0x1]
  %v1066 = vlaneseq
  %v1067 = vshrl.u32 %v1066, 7
  %v1068 = vsub.s32 0, %v1067
  %v1069 = vrot.slane %v1064, %v1068
  %v1072 = vsel %vm144, %v1059, 0
  %1074 = vmatprep.subr.mxu0 0.0
  %1075 = vmatpush1.msra.mxu0 %v1060
  %1076 = vmatprep.subr.mxu0 0.0
  %1077 = vmatpush1.msra.mxu0 %v1061
  %1078 = vmatprep.subr.mxu0 0.0
  %1079 = vmatpush1.msra.mxu0 %v1062
  %1080 = vmatprep.subr.mxu0 0.0
  %1081 = vmatpush1.msra.mxu0 %v1063
  %1082 = vmatprep.subr.mxu0 0.0
  %1083 = vmatpush1.msra.mxu0 0.0
  %1084 = vmatprep.subr.mxu0 0.0
  %1085 = vmatpush1.msra.mxu0 0.0
  %1086 = vmatprep.subr.mxu0 0.0
  %1087 = vmatpush1.msra.mxu0 0.0
  %1088 = vmatprep.subr.mxu0 0.0
  %1089 = vmatpush1.msra.mxu0 0.0
  %1090 = vmatprep.subr.mxu0 0.0
  %1091 = vmatpush1.msra.mxu0 0.0
  %1092 = vmatprep.subr.mxu0 0.0
  %1093 = vmatpush1.msra.mxu0 0.0
  %1094 = vmatprep.subr.mxu0 0.0
  %1095 = vmatpush1.msra.mxu0 0.0
  %1096 = vmatprep.subr.mxu0 0.0
  %1097 = vmatpush1.msra.mxu0 0.0
  %1098 = vmatprep.subr.mxu0 0.0
  %1099 = vmatpush1.msra.mxu0 0.0
  %1100 = vmatprep.subr.mxu0 0.0
  %1101 = vmatpush1.msra.mxu0 0.0
  %1102 = vmatprep.subr.mxu0 0.0
  %1103 = vmatpush1.msra.mxu0 0.0
  %1104 = vmatprep.subr.mxu0 0.0
  %1105 = vmatpush1.msra.mxu0 0.0
  %1106 = vmatprep.subr.mxu0 0.0
  %1107 = vmatpush1.msra.mxu0 0.0
  %1108 = vmatprep.subr.mxu0 0.0
  %1109 = vmatpush1.msra.mxu0 0.0
  %1110 = vmatprep.subr.mxu0 0.0
  %1111 = vmatpush1.msra.mxu0 0.0
  %1112 = vmatprep.subr.mxu0 0.0
  %1113 = vmatpush1.msra.mxu0 0.0
  %1114 = vmatprep.subr.mxu0 0.0
  %1115 = vmatpush1.msra.mxu0 0.0
  %1116 = vmatprep.subr.mxu0 0.0
  %1117 = vmatpush1.msra.mxu0 0.0
  %1118 = vmatprep.subr.mxu0 0.0
  %1119 = vmatpush1.msra.mxu0 0.0
  %1120 = vmatprep.subr.mxu0 0.0
  %1121 = vmatpush1.msra.mxu0 0.0
  %1122 = vmatprep.subr.mxu0 0.0
  %1123 = vmatpush1.msra.mxu0 0.0
  %1124 = vmatprep.subr.mxu0 0.0
  %1125 = vmatpush1.msra.mxu0 0.0
  %1126 = vmatprep.subr.mxu0 0.0
  %1127 = vmatpush1.msra.mxu0 0.0
  %1128 = vmatprep.subr.mxu0 0.0
  %1129 = vmatpush1.msra.mxu0 0.0
  %1130 = vmatprep.subr.mxu0 0.0
  %1131 = vmatpush1.msra.mxu0 0.0
  %1132 = vmatprep.subr.mxu0 0.0
  %1133 = vmatpush1.msra.mxu0 0.0
  %1134 = vmatprep.subr.mxu0 0.0
  %1135 = vmatpush1.msra.mxu0 0.0
  %1136 = vmatprep.subr.mxu0 0.0
  %1137 = vmatpush1.msra.mxu0 0.0
  %1138 = vmatprep.mubr.f32.mxu0 0.0
  %1139 = vmatmul.mubr.f32.gmra.mrb[0].mxu0 %v1072
  %v1140 = vpop.f32.mrb[0].mxu0
  %v1141 = vadd.f32 %v1069, %v1140
  %v1142 = vpop.f32.mrb[0].mxu0
  %1143 = vdwg.mxu0
  %v1144 = vadd.f32 %v126, %v1141
  %v1145 = vld [vmem:[%s41] sm:$0x1]
  %v1146 = vld [vmem:[%s43] sm:$0x1]
  %v1147 = vsel %vm144, %v1144, 0.0
  %1148 = vadd.xlane.f32.xlu0 %v1147
  %v1149 = vpop.xlane.xlu0 %1148
  %v1150 = vrcp.pop 32.0
  %v1151 = vmul.f32 %v1149, %v1150
  %v1152 = vsub.f32 %v1144, %v1151
  %v1153 = vmul.f32 %v1152, %v1152
  %v1154 = vsel %vm144, %v1153, 0.0
  %1155 = vadd.xlane.f32.xlu0 %v1154
  %v1156 = vpop.xlane.xlu0 %1155
  %v1157 = vmul.f32 %v1156, %v1150
  %v1158 = vadd.f32 %v1157, 1e-05
  %v1159 = vrsqrt.pop %v1158
  %v1160 = vmul.f32 %v1152, %v1159
  %v1162 = vlaneseq
  %v1163 = vshrl.u32 %v1162, 7
  %v1164 = vsub.s32 0, %v1163
  %v1165 = vrot.slane %v1145, %v1164
  %v1167 = vmul.f32 %v1160, %v1165
  %v1169 = vlaneseq
  %v1170 = vshrl.u32 %v1169, 7
  %v1171 = vsub.s32 0, %v1170
  %v1172 = vrot.slane %v1146, %v1171
  %v1174 = vadd.f32 %v1167, %v1172
  %v1175 = vadd.f32 %v1174, %v131
  %v1176 = vld [vmem:[%s25] sm:$0xff]
  %v1177 = vld [vmem:[%s25 + $0x8] sm:$0xff]
  %v1178 = vld [vmem:[%s25 + $0x10] sm:$0xff]
  %v1179 = vld [vmem:[%s25 + $0x18] sm:$0xff]
  %v1180 = vld [vmem:[%s27] sm:$0x1]
  %v1182 = vlaneseq
  %v1183 = vshrl.u32 %v1182, 7
  %v1184 = vsub.s32 0, %v1183
  %v1185 = vrot.slane %v1180, %v1184
  %v1188 = vsel %vm144, %v1175, 0
  %1190 = vmatprep.subr.mxu0 0.0
  %1191 = vmatpush1.msra.mxu0 %v1176
  %1192 = vmatprep.subr.mxu0 0.0
  %1193 = vmatpush1.msra.mxu0 %v1177
  %1194 = vmatprep.subr.mxu0 0.0
  %1195 = vmatpush1.msra.mxu0 %v1178
  %1196 = vmatprep.subr.mxu0 0.0
  %1197 = vmatpush1.msra.mxu0 %v1179
  %1198 = vmatprep.subr.mxu0 0.0
  %1199 = vmatpush1.msra.mxu0 0.0
  %1200 = vmatprep.subr.mxu0 0.0
  %1201 = vmatpush1.msra.mxu0 0.0
  %1202 = vmatprep.subr.mxu0 0.0
  %1203 = vmatpush1.msra.mxu0 0.0
  %1204 = vmatprep.subr.mxu0 0.0
  %1205 = vmatpush1.msra.mxu0 0.0
  %1206 = vmatprep.subr.mxu0 0.0
  %1207 = vmatpush1.msra.mxu0 0.0
  %1208 = vmatprep.subr.mxu0 0.0
  %1209 = vmatpush1.msra.mxu0 0.0
  %1210 = vmatprep.subr.mxu0 0.0
  %1211 = vmatpush1.msra.mxu0 0.0
  %1212 = vmatprep.subr.mxu0 0.0
  %1213 = vmatpush1.msra.mxu0 0.0
  %1214 = vmatprep.subr.mxu0 0.0
  %1215 = vmatpush1.msra.mxu0 0.0
  %1216 = vmatprep.subr.mxu0 0.0
  %1217 = vmatpush1.msra.mxu0 0.0
  %1218 = vmatprep.subr.mxu0 0.0
  %1219 = vmatpush1.msra.mxu0 0.0
  %1220 = vmatprep.subr.mxu0 0.0
  %1221 = vmatpush1.msra.mxu0 0.0
  %1222 = vmatprep.subr.mxu0 0.0
  %1223 = vmatpush1.msra.mxu0 0.0
  %1224 = vmatprep.subr.mxu0 0.0
  %1225 = vmatpush1.msra.mxu0 0.0
  %1226 = vmatprep.subr.mxu0 0.0
  %1227 = vmatpush1.msra.mxu0 0.0
  %1228 = vmatprep.subr.mxu0 0.0
  %1229 = vmatpush1.msra.mxu0 0.0
  %1230 = vmatprep.subr.mxu0 0.0
  %1231 = vmatpush1.msra.mxu0 0.0
  %1232 = vmatprep.subr.mxu0 0.0
  %1233 = vmatpush1.msra.mxu0 0.0
  %1234 = vmatprep.subr.mxu0 0.0
  %1235 = vmatpush1.msra.mxu0 0.0
  %1236 = vmatprep.subr.mxu0 0.0
  %1237 = vmatpush1.msra.mxu0 0.0
  %1238 = vmatprep.subr.mxu0 0.0
  %1239 = vmatpush1.msra.mxu0 0.0
  %1240 = vmatprep.subr.mxu0 0.0
  %1241 = vmatpush1.msra.mxu0 0.0
  %1242 = vmatprep.subr.mxu0 0.0
  %1243 = vmatpush1.msra.mxu0 0.0
  %1244 = vmatprep.subr.mxu0 0.0
  %1245 = vmatpush1.msra.mxu0 0.0
  %1246 = vmatprep.subr.mxu0 0.0
  %1247 = vmatpush1.msra.mxu0 0.0
  %1248 = vmatprep.subr.mxu0 0.0
  %1249 = vmatpush1.msra.mxu0 0.0
  %1250 = vmatprep.subr.mxu0 0.0
  %1251 = vmatpush1.msra.mxu0 0.0
  %1252 = vmatprep.subr.mxu0 0.0
  %1253 = vmatpush1.msra.mxu0 0.0
  %1254 = vmatprep.mubr.f32.mxu0 0.0
  %1255 = vmatmul.mubr.f32.gmra.mrb[0].mxu0 %v1188
  %v1256 = vpop.f32.mrb[0].mxu0
  %v1257 = vadd.f32 %v1185, %v1256
  %v1258 = vpop.f32.mrb[0].mxu0
  %1259 = vdwg.mxu0
  %v1260 = vadd.f32 %v127, %v129
  %v1261 = vadd.f32 %v128, %v130
  %v1262 = vld [vmem:[%s29] sm:$0xff]
  %v1263 = vld [vmem:[%s29 + $0x8] sm:$0xff]
  %v1264 = vld [vmem:[%s29 + $0x10] sm:$0xff]
  %v1265 = vld [vmem:[%s29 + $0x18] sm:$0xff]
  %v1266 = vld [vmem:[%s31] sm:$0x1]
  %v1268 = vlaneseq
  %v1269 = vshrl.u32 %v1268, 7
  %v1270 = vsub.s32 0, %v1269
  %v1271 = vrot.slane %v1266, %v1270
  %v1274 = vsel %vm144, %v1260, 0
  %v1277 = vsel %vm144, %v1261, 0
  %1279 = vmatprep.subr.mxu0 0.0
  %1280 = vmatpush1.msra.mxu0 %v1262
  %1281 = vmatprep.subr.mxu0 0.0
  %1282 = vmatpush1.msra.mxu0 %v1263
  %1283 = vmatprep.subr.mxu0 0.0
  %1284 = vmatpush1.msra.mxu0 %v1264
  %1285 = vmatprep.subr.mxu0 0.0
  %1286 = vmatpush1.msra.mxu0 %v1265
  %1287 = vmatprep.subr.mxu0 0.0
  %1288 = vmatpush1.msra.mxu0 0.0
  %1289 = vmatprep.subr.mxu0 0.0
  %1290 = vmatpush1.msra.mxu0 0.0
  %1291 = vmatprep.subr.mxu0 0.0
  %1292 = vmatpush1.msra.mxu0 0.0
  %1293 = vmatprep.subr.mxu0 0.0
  %1294 = vmatpush1.msra.mxu0 0.0
  %1295 = vmatprep.subr.mxu0 0.0
  %1296 = vmatpush1.msra.mxu0 0.0
  %1297 = vmatprep.subr.mxu0 0.0
  %1298 = vmatpush1.msra.mxu0 0.0
  %1299 = vmatprep.subr.mxu0 0.0
  %1300 = vmatpush1.msra.mxu0 0.0
  %1301 = vmatprep.subr.mxu0 0.0
  %1302 = vmatpush1.msra.mxu0 0.0
  %1303 = vmatprep.subr.mxu0 0.0
  %1304 = vmatpush1.msra.mxu0 0.0
  %1305 = vmatprep.subr.mxu0 0.0
  %1306 = vmatpush1.msra.mxu0 0.0
  %1307 = vmatprep.subr.mxu0 0.0
  %1308 = vmatpush1.msra.mxu0 0.0
  %1309 = vmatprep.subr.mxu0 0.0
  %1310 = vmatpush1.msra.mxu0 0.0
  %1311 = vmatprep.subr.mxu0 0.0
  %1312 = vmatpush1.msra.mxu0 0.0
  %1313 = vmatprep.subr.mxu0 0.0
  %1314 = vmatpush1.msra.mxu0 0.0
  %1315 = vmatprep.subr.mxu0 0.0
  %1316 = vmatpush1.msra.mxu0 0.0
  %1317 = vmatprep.subr.mxu0 0.0
  %1318 = vmatpush1.msra.mxu0 0.0
  %1319 = vmatprep.subr.mxu0 0.0
  %1320 = vmatpush1.msra.mxu0 0.0
  %1321 = vmatprep.subr.mxu0 0.0
  %1322 = vmatpush1.msra.mxu0 0.0
  %1323 = vmatprep.subr.mxu0 0.0
  %1324 = vmatpush1.msra.mxu0 0.0
  %1325 = vmatprep.subr.mxu0 0.0
  %1326 = vmatpush1.msra.mxu0 0.0
  %1327 = vmatprep.subr.mxu0 0.0
  %1328 = vmatpush1.msra.mxu0 0.0
  %1329 = vmatprep.subr.mxu0 0.0
  %1330 = vmatpush1.msra.mxu0 0.0
  %1331 = vmatprep.subr.mxu0 0.0
  %1332 = vmatpush1.msra.mxu0 0.0
  %1333 = vmatprep.subr.mxu0 0.0
  %1334 = vmatpush1.msra.mxu0 0.0
  %1335 = vmatprep.subr.mxu0 0.0
  %1336 = vmatpush1.msra.mxu0 0.0
  %1337 = vmatprep.subr.mxu0 0.0
  %1338 = vmatpush1.msra.mxu0 0.0
  %1339 = vmatprep.subr.mxu0 0.0
  %1340 = vmatpush1.msra.mxu0 0.0
  %1341 = vmatprep.subr.mxu0 0.0
  %1342 = vmatpush1.msra.mxu0 0.0
  %1343 = vmatprep.mubr.f32.mxu0 0.0
  %1344 = vmatmul.mubr.f32.gmra.mrb[0].mxu0 %v1274
  %v1345 = vpop.f32.mrb[0].mxu0
  %v1346 = vadd.f32 %v1271, %v1345
  %v1347 = vpop.f32.mrb[0].mxu0
  %1348 = vmatprep.mubr.f32.mxu0 0.0
  %1349 = vmatmul.mubr.f32.gmra.mrb[0].mxu0 %v1277
  %v1350 = vpop.f32.mrb[0].mxu0
  %v1351 = vadd.f32 %v1271, %v1350
  %v1352 = vpop.f32.mrb[0].mxu0
  %1353 = vdwg.mxu0
  %v1354 = vld [vmem:[%s33] sm:$0xff]
  %v1355 = vld [vmem:[%s33 + $0x8] sm:$0xff]
  %v1356 = vld [vmem:[%s33 + $0x10] sm:$0xff]
  %v1357 = vld [vmem:[%s33 + $0x18] sm:$0xff]
  %v1358 = vld [vmem:[%s35] sm:$0x1]
  %v1360 = vlaneseq
  %v1361 = vshrl.u32 %v1360, 7
  %v1362 = vsub.s32 0, %v1361
  %v1363 = vrot.slane %v1358, %v1362
  %v1366 = vsel %vm144, %v127, 0
  %v1369 = vsel %vm144, %v128, 0
  %1371 = vmatprep.subr.mxu0 0.0
  %1372 = vmatpush1.msra.mxu0 %v1354
  %1373 = vmatprep.subr.mxu0 0.0
  %1374 = vmatpush1.msra.mxu0 %v1355
  %1375 = vmatprep.subr.mxu0 0.0
  %1376 = vmatpush1.msra.mxu0 %v1356
  %1377 = vmatprep.subr.mxu0 0.0
  %1378 = vmatpush1.msra.mxu0 %v1357
  %1379 = vmatprep.subr.mxu0 0.0
  %1380 = vmatpush1.msra.mxu0 0.0
  %1381 = vmatprep.subr.mxu0 0.0
  %1382 = vmatpush1.msra.mxu0 0.0
  %1383 = vmatprep.subr.mxu0 0.0
  %1384 = vmatpush1.msra.mxu0 0.0
  %1385 = vmatprep.subr.mxu0 0.0
  %1386 = vmatpush1.msra.mxu0 0.0
  %1387 = vmatprep.subr.mxu0 0.0
  %1388 = vmatpush1.msra.mxu0 0.0
  %1389 = vmatprep.subr.mxu0 0.0
  %1390 = vmatpush1.msra.mxu0 0.0
  %1391 = vmatprep.subr.mxu0 0.0
  %1392 = vmatpush1.msra.mxu0 0.0
  %1393 = vmatprep.subr.mxu0 0.0
  %1394 = vmatpush1.msra.mxu0 0.0
  %1395 = vmatprep.subr.mxu0 0.0
  %1396 = vmatpush1.msra.mxu0 0.0
  %1397 = vmatprep.subr.mxu0 0.0
  %1398 = vmatpush1.msra.mxu0 0.0
  %1399 = vmatprep.subr.mxu0 0.0
  %1400 = vmatpush1.msra.mxu0 0.0
  %1401 = vmatprep.subr.mxu0 0.0
  %1402 = vmatpush1.msra.mxu0 0.0
  %1403 = vmatprep.subr.mxu0 0.0
  %1404 = vmatpush1.msra.mxu0 0.0
  %1405 = vmatprep.subr.mxu0 0.0
  %1406 = vmatpush1.msra.mxu0 0.0
  %1407 = vmatprep.subr.mxu0 0.0
  %1408 = vmatpush1.msra.mxu0 0.0
  %1409 = vmatprep.subr.mxu0 0.0
  %1410 = vmatpush1.msra.mxu0 0.0
  %1411 = vmatprep.subr.mxu0 0.0
  %1412 = vmatpush1.msra.mxu0 0.0
  %1413 = vmatprep.subr.mxu0 0.0
  %1414 = vmatpush1.msra.mxu0 0.0
  %1415 = vmatprep.subr.mxu0 0.0
  %1416 = vmatpush1.msra.mxu0 0.0
  %1417 = vmatprep.subr.mxu0 0.0
  %1418 = vmatpush1.msra.mxu0 0.0
  %1419 = vmatprep.subr.mxu0 0.0
  %1420 = vmatpush1.msra.mxu0 0.0
  %1421 = vmatprep.subr.mxu0 0.0
  %1422 = vmatpush1.msra.mxu0 0.0
  %1423 = vmatprep.subr.mxu0 0.0
  %1424 = vmatpush1.msra.mxu0 0.0
  %1425 = vmatprep.subr.mxu0 0.0
  %1426 = vmatpush1.msra.mxu0 0.0
  %1427 = vmatprep.subr.mxu0 0.0
  %1428 = vmatpush1.msra.mxu0 0.0
  %1429 = vmatprep.subr.mxu0 0.0
  %1430 = vmatpush1.msra.mxu0 0.0
  %1431 = vmatprep.subr.mxu0 0.0
  %1432 = vmatpush1.msra.mxu0 0.0
  %1433 = vmatprep.subr.mxu0 0.0
  %1434 = vmatpush1.msra.mxu0 0.0
  %1435 = vmatprep.mubr.f32.mxu0 0.0
  %1436 = vmatmul.mubr.f32.gmra.mrb[0].mxu0 %v1366
  %v1437 = vpop.f32.mrb[0].mxu0
  %v1438 = vadd.f32 %v1363, %v1437
  %v1439 = vpop.f32.mrb[0].mxu0
  %1440 = vmatprep.mubr.f32.mxu0 0.0
  %1441 = vmatmul.mubr.f32.gmra.mrb[0].mxu0 %v1369
  %v1442 = vpop.f32.mrb[0].mxu0
  %v1443 = vadd.f32 %v1363, %v1442
  %v1444 = vpop.f32.mrb[0].mxu0
  %1445 = vdwg.mxu0
  %v1446 = vmul.f32 %v1257, %v388
  %v1447 = vmul.f32 %v1346, %v388
  %v1448 = vmul.f32 %v1351, %v388
  %v1450 = vsel %vm144, %v1446, 0
  %v1453 = vsel %vm144, %v1447, 0
  %v1456 = vsel %vm144, %v1448, 0
  %1458 = vmatprep.subr.mxu0 0.0
  %1459 = vmatpush1.xpose.msra.mxu0 %v1453
  %1460 = vmatprep.subr.mxu0 0.0
  %1461 = vmatpush1.xpose.msra.mxu0 %v1456
  %1462 = vmatprep.subr.mxu0 0.0
  %1463 = vmatpush1.xpose.msra.mxu0 0.0
  %1464 = vmatprep.subr.mxu0 0.0
  %1465 = vmatpush1.xpose.msra.mxu0 0.0
  %1466 = vmatprep.subr.mxu0 0.0
  %1467 = vmatpush1.xpose.msra.mxu0 0.0
  %1468 = vmatprep.subr.mxu0 0.0
  %1469 = vmatpush1.xpose.msra.mxu0 0.0
  %1470 = vmatprep.subr.mxu0 0.0
  %1471 = vmatpush1.xpose.msra.mxu0 0.0
  %1472 = vmatprep.subr.mxu0 0.0
  %1473 = vmatpush1.xpose.msra.mxu0 0.0
  %1474 = vmatprep.subr.mxu0 0.0
  %1475 = vmatpush1.xpose.msra.mxu0 0.0
  %1476 = vmatprep.subr.mxu0 0.0
  %1477 = vmatpush1.xpose.msra.mxu0 0.0
  %1478 = vmatprep.subr.mxu0 0.0
  %1479 = vmatpush1.xpose.msra.mxu0 0.0
  %1480 = vmatprep.subr.mxu0 0.0
  %1481 = vmatpush1.xpose.msra.mxu0 0.0
  %1482 = vmatprep.subr.mxu0 0.0
  %1483 = vmatpush1.xpose.msra.mxu0 0.0
  %1484 = vmatprep.subr.mxu0 0.0
  %1485 = vmatpush1.xpose.msra.mxu0 0.0
  %1486 = vmatprep.subr.mxu0 0.0
  %1487 = vmatpush1.xpose.msra.mxu0 0.0
  %1488 = vmatprep.subr.mxu0 0.0
  %1489 = vmatpush1.xpose.msra.mxu0 0.0
  %1490 = vmatprep.subr.mxu0 0.0
  %1491 = vmatpush1.xpose.msra.mxu0 0.0
  %1492 = vmatprep.subr.mxu0 0.0
  %1493 = vmatpush1.xpose.msra.mxu0 0.0
  %1494 = vmatprep.subr.mxu0 0.0
  %1495 = vmatpush1.xpose.msra.mxu0 0.0
  %1496 = vmatprep.subr.mxu0 0.0
  %1497 = vmatpush1.xpose.msra.mxu0 0.0
  %1498 = vmatprep.subr.mxu0 0.0
  %1499 = vmatpush1.xpose.msra.mxu0 0.0
  %1500 = vmatprep.subr.mxu0 0.0
  %1501 = vmatpush1.xpose.msra.mxu0 0.0
  %1502 = vmatprep.subr.mxu0 0.0
  %1503 = vmatpush1.xpose.msra.mxu0 0.0
  %1504 = vmatprep.subr.mxu0 0.0
  %1505 = vmatpush1.xpose.msra.mxu0 0.0
  %1506 = vmatprep.subr.mxu0 0.0
  %1507 = vmatpush1.xpose.msra.mxu0 0.0
  %1508 = vmatprep.subr.mxu0 0.0
  %1509 = vmatpush1.xpose.msra.mxu0 0.0
  %1510 = vmatprep.subr.mxu0 0.0
  %1511 = vmatpush1.xpose.msra.mxu0 0.0
  %1512 = vmatprep.subr.mxu0 0.0
  %1513 = vmatpush1.xpose.msra.mxu0 0.0
  %1514 = vmatprep.subr.mxu0 0.0
  %1515 = vmatpush1.xpose.msra.mxu0 0.0
  %1516 = vmatprep.subr.mxu0 0.0
  %1517 = vmatpush1.xpose.msra.mxu0 0.0
  %1518 = vmatprep.subr.mxu0 0.0
  %1519 = vmatpush1.xpose.msra.mxu0 0.0
  %1520 = vmatprep.subr.mxu0 0.0
  %1521 = vmatpush1.xpose.msra.mxu0 0.0
  %1522 = vmatprep.mubr.f32.mxu0 0.0
  %1523 = vmatmul.mubr.f32.gmra.mrb[0].mxu0 %v1450
  %v1524 = vpop.f32.mrb[0].mxu0
  %v1525 = vadd.f32 0.0, %v1524
  %v1526 = vpop.f32.mrb[0].mxu0
  %1527 = vdwg.mxu0
  %v1528 = vmul.f32 %v1525, 0.35355338
  %vm1529 = vcmask 130048
  %v1530 = vsel %vm1529, %v1528, -inf
  %1531 = vmax.xlane.f32.xlu0 %v1530
  %v1532 = vpop.xlane.xlu0 %1531
  %v1533 = vsub.f32 %v1528, %v1532
  %v1534 = vmul.f32 %v1533, 1.442695
  %v1535 = vpow.pop %v1534
  %v1536 = vsel %vm1529, %v1535, 0.0
  %1537 = vadd.xlane.f32.xlu0 %v1536
  %v1538 = vpop.xlane.xlu0 %1537
  %v1539 = vrcp.pop %v1538
  %v1540 = vmul.f32 %v1535, %v1539
  %v1541 = vmul.f32 %v1438, %v388
  %v1542 = vmul.f32 %v1443, %v388
  %v1543 = vmul.f32 %v1257, %v484
  %v1544 = vmul.f32 %v1346, %v484
  %v1545 = vmul.f32 %v1351, %v484
  %v1547 = vsel %vm144, %v1543, 0
  %v1550 = vsel %vm144, %v1544, 0
  %v1553 = vsel %vm144, %v1545, 0
  %1555 = vmatprep.subr.mxu0 0.0
  %1556 = vmatpush1.xpose.msra.mxu0 %v1550
  %1557 = vmatprep.subr.mxu0 0.0
  %1558 = vmatpush1.xpose.msra.mxu0 %v1553
  %1559 = vmatprep.subr.mxu0 0.0
  %1560 = vmatpush1.xpose.msra.mxu0 0.0
  %1561 = vmatprep.subr.mxu0 0.0
  %1562 = vmatpush1.xpose.msra.mxu0 0.0
  %1563 = vmatprep.subr.mxu0 0.0
  %1564 = vmatpush1.xpose.msra.mxu0 0.0
  %1565 = vmatprep.subr.mxu0 0.0
  %1566 = vmatpush1.xpose.msra.mxu0 0.0
  %1567 = vmatprep.subr.mxu0 0.0
  %1568 = vmatpush1.xpose.msra.mxu0 0.0
  %1569 = vmatprep.subr.mxu0 0.0
  %1570 = vmatpush1.xpose.msra.mxu0 0.0
  %1571 = vmatprep.subr.mxu0 0.0
  %1572 = vmatpush1.xpose.msra.mxu0 0.0
  %1573 = vmatprep.subr.mxu0 0.0
  %1574 = vmatpush1.xpose.msra.mxu0 0.0
  %1575 = vmatprep.subr.mxu0 0.0
  %1576 = vmatpush1.xpose.msra.mxu0 0.0
  %1577 = vmatprep.subr.mxu0 0.0
  %1578 = vmatpush1.xpose.msra.mxu0 0.0
  %1579 = vmatprep.subr.mxu0 0.0
  %1580 = vmatpush1.xpose.msra.mxu0 0.0
  %1581 = vmatprep.subr.mxu0 0.0
  %1582 = vmatpush1.xpose.msra.mxu0 0.0
  %1583 = vmatprep.subr.mxu0 0.0
  %1584 = vmatpush1.xpose.msra.mxu0 0.0
  %1585 = vmatprep.subr.mxu0 0.0
  %1586 = vmatpush1.xpose.msra.mxu0 0.0
  %1587 = vmatprep.subr.mxu0 0.0
  %1588 = vmatpush1.xpose.msra.mxu0 0.0
  %1589 = vmatprep.subr.mxu0 0.0
  %1590 = vmatpush1.xpose.msra.mxu0 0.0
  %1591 = vmatprep.subr.mxu0 0.0
  %1592 = vmatpush1.xpose.msra.mxu0 0.0
  %1593 = vmatprep.subr.mxu0 0.0
  %1594 = vmatpush1.xpose.msra.mxu0 0.0
  %1595 = vmatprep.subr.mxu0 0.0
  %1596 = vmatpush1.xpose.msra.mxu0 0.0
  %1597 = vmatprep.subr.mxu0 0.0
  %1598 = vmatpush1.xpose.msra.mxu0 0.0
  %1599 = vmatprep.subr.mxu0 0.0
  %1600 = vmatpush1.xpose.msra.mxu0 0.0
  %1601 = vmatprep.subr.mxu0 0.0
  %1602 = vmatpush1.xpose.msra.mxu0 0.0
  %1603 = vmatprep.subr.mxu0 0.0
  %1604 = vmatpush1.xpose.msra.mxu0 0.0
  %1605 = vmatprep.subr.mxu0 0.0
  %1606 = vmatpush1.xpose.msra.mxu0 0.0
  %1607 = vmatprep.subr.mxu0 0.0
  %1608 = vmatpush1.xpose.msra.mxu0 0.0
  %1609 = vmatprep.subr.mxu0 0.0
  %1610 = vmatpush1.xpose.msra.mxu0 0.0
  %1611 = vmatprep.subr.mxu0 0.0
  %1612 = vmatpush1.xpose.msra.mxu0 0.0
  %1613 = vmatprep.subr.mxu0 0.0
  %1614 = vmatpush1.xpose.msra.mxu0 0.0
  %1615 = vmatprep.subr.mxu0 0.0
  %1616 = vmatpush1.xpose.msra.mxu0 0.0
  %1617 = vmatprep.subr.mxu0 0.0
  %1618 = vmatpush1.xpose.msra.mxu0 0.0
  %1619 = vmatprep.mubr.f32.mxu0 0.0
  %1620 = vmatmul.mubr.f32.gmra.mrb[0].mxu0 %v1547
  %v1621 = vpop.f32.mrb[0].mxu0
  %v1622 = vadd.f32 0.0, %v1621
  %v1623 = vpop.f32.mrb[0].mxu0
  %1624 = vdwg.mxu0
  %v1625 = vmul.f32 %v1622, 0.35355338
  %v1626 = vsel %vm1529, %v1625, -inf
  %1627 = vmax.xlane.f32.xlu0 %v1626
  %v1628 = vpop.xlane.xlu0 %1627
  %v1629 = vsub.f32 %v1625, %v1628
  %v1630 = vmul.f32 %v1629, 1.442695
  %v1631 = vpow.pop %v1630
  %v1632 = vsel %vm1529, %v1631, 0.0
  %1633 = vadd.xlane.f32.xlu0 %v1632
  %v1634 = vpop.xlane.xlu0 %1633
  %v1635 = vrcp.pop %v1634
  %v1636 = vmul.f32 %v1631, %v1635
  %v1637 = vmul.f32 %v1438, %v484
  %v1638 = vmul.f32 %v1443, %v484
  %v1640 = vsel %vm1529, %v1636, 0
  %1642 = vmatprep.subr.mxu0 0.0
  %1643 = vmatpush1.msra.mxu0 %v1637
  %1644 = vmatprep.subr.mxu0 0.0
  %1645 = vmatpush1.msra.mxu0 %v1638
  %1646 = vmatprep.subr.mxu0 0.0
  %1647 = vmatpush1.msra.mxu0 0.0
  %1648 = vmatprep.subr.mxu0 0.0
  %1649 = vmatpush1.msra.mxu0 0.0
  %1650 = vmatprep.subr.mxu0 0.0
  %1651 = vmatpush1.msra.mxu0 0.0
  %1652 = vmatprep.subr.mxu0 0.0
  %1653 = vmatpush1.msra.mxu0 0.0
  %1654 = vmatprep.subr.mxu0 0.0
  %1655 = vmatpush1.msra.mxu0 0.0
  %1656 = vmatprep.subr.mxu0 0.0
  %1657 = vmatpush1.msra.mxu0 0.0
  %1658 = vmatprep.subr.mxu0 0.0
  %1659 = vmatpush1.msra.mxu0 0.0
  %1660 = vmatprep.subr.mxu0 0.0
  %1661 = vmatpush1.msra.mxu0 0.0
  %1662 = vmatprep.subr.mxu0 0.0
  %1663 = vmatpush1.msra.mxu0 0.0
  %1664 = vmatprep.subr.mxu0 0.0
  %1665 = vmatpush1.msra.mxu0 0.0
  %1666 = vmatprep.subr.mxu0 0.0
  %1667 = vmatpush1.msra.mxu0 0.0
  %1668 = vmatprep.subr.mxu0 0.0
  %1669 = vmatpush1.msra.mxu0 0.0
  %1670 = vmatprep.subr.mxu0 0.0
  %1671 = vmatpush1.msra.mxu0 0.0
  %1672 = vmatprep.subr.mxu0 0.0
  %1673 = vmatpush1.msra.mxu0 0.0
  %1674 = vmatprep.subr.mxu0 0.0
  %1675 = vmatpush1.msra.mxu0 0.0
  %1676 = vmatprep.subr.mxu0 0.0
  %1677 = vmatpush1.msra.mxu0 0.0
  %1678 = vmatprep.subr.mxu0 0.0
  %1679 = vmatpush1.msra.mxu0 0.0
  %1680 = vmatprep.subr.mxu0 0.0
  %1681 = vmatpush1.msra.mxu0 0.0
  %1682 = vmatprep.subr.mxu0 0.0
  %1683 = vmatpush1.msra.mxu0 0.0
  %1684 = vmatprep.subr.mxu0 0.0
  %1685 = vmatpush1.msra.mxu0 0.0
  %1686 = vmatprep.subr.mxu0 0.0
  %1687 = vmatpush1.msra.mxu0 0.0
  %1688 = vmatprep.subr.mxu0 0.0
  %1689 = vmatpush1.msra.mxu0 0.0
  %1690 = vmatprep.subr.mxu0 0.0
  %1691 = vmatpush1.msra.mxu0 0.0
  %1692 = vmatprep.subr.mxu0 0.0
  %1693 = vmatpush1.msra.mxu0 0.0
  %1694 = vmatprep.subr.mxu0 0.0
  %1695 = vmatpush1.msra.mxu0 0.0
  %1696 = vmatprep.subr.mxu0 0.0
  %1697 = vmatpush1.msra.mxu0 0.0
  %1698 = vmatprep.subr.mxu0 0.0
  %1699 = vmatpush1.msra.mxu0 0.0
  %1700 = vmatprep.subr.mxu0 0.0
  %1701 = vmatpush1.msra.mxu0 0.0
  %1702 = vmatprep.subr.mxu0 0.0
  %1703 = vmatpush1.msra.mxu0 0.0
  %1704 = vmatprep.subr.mxu0 0.0
  %1705 = vmatpush1.msra.mxu0 0.0
  %1706 = vmatprep.mubr.f32.mxu0 0.0
  %1707 = vmatmul.mubr.f32.gmra.mrb[0].mxu0 %v1640
  %v1708 = vpop.f32.mrb[0].mxu0
  %v1709 = vadd.f32 0.0, %v1708
  %v1710 = vpop.f32.mrb[0].mxu0
  %1711 = vdwg.mxu0
  %v1713 = vsel %vm1529, %v1540, 0
  %1715 = vmatprep.subr.mxu0 0.0
  %1716 = vmatpush1.msra.mxu0 %v1541
  %1717 = vmatprep.subr.mxu0 0.0
  %1718 = vmatpush1.msra.mxu0 %v1542
  %1719 = vmatprep.subr.mxu0 0.0
  %1720 = vmatpush1.msra.mxu0 0.0
  %1721 = vmatprep.subr.mxu0 0.0
  %1722 = vmatpush1.msra.mxu0 0.0
  %1723 = vmatprep.subr.mxu0 0.0
  %1724 = vmatpush1.msra.mxu0 0.0
  %1725 = vmatprep.subr.mxu0 0.0
  %1726 = vmatpush1.msra.mxu0 0.0
  %1727 = vmatprep.subr.mxu0 0.0
  %1728 = vmatpush1.msra.mxu0 0.0
  %1729 = vmatprep.subr.mxu0 0.0
  %1730 = vmatpush1.msra.mxu0 0.0
  %1731 = vmatprep.subr.mxu0 0.0
  %1732 = vmatpush1.msra.mxu0 0.0
  %1733 = vmatprep.subr.mxu0 0.0
  %1734 = vmatpush1.msra.mxu0 0.0
  %1735 = vmatprep.subr.mxu0 0.0
  %1736 = vmatpush1.msra.mxu0 0.0
  %1737 = vmatprep.subr.mxu0 0.0
  %1738 = vmatpush1.msra.mxu0 0.0
  %1739 = vmatprep.subr.mxu0 0.0
  %1740 = vmatpush1.msra.mxu0 0.0
  %1741 = vmatprep.subr.mxu0 0.0
  %1742 = vmatpush1.msra.mxu0 0.0
  %1743 = vmatprep.subr.mxu0 0.0
  %1744 = vmatpush1.msra.mxu0 0.0
  %1745 = vmatprep.subr.mxu0 0.0
  %1746 = vmatpush1.msra.mxu0 0.0
  %1747 = vmatprep.subr.mxu0 0.0
  %1748 = vmatpush1.msra.mxu0 0.0
  %1749 = vmatprep.subr.mxu0 0.0
  %1750 = vmatpush1.msra.mxu0 0.0
  %1751 = vmatprep.subr.mxu0 0.0
  %1752 = vmatpush1.msra.mxu0 0.0
  %1753 = vmatprep.subr.mxu0 0.0
  %1754 = vmatpush1.msra.mxu0 0.0
  %1755 = vmatprep.subr.mxu0 0.0
  %1756 = vmatpush1.msra.mxu0 0.0
  %1757 = vmatprep.subr.mxu0 0.0
  %1758 = vmatpush1.msra.mxu0 0.0
  %1759 = vmatprep.subr.mxu0 0.0
  %1760 = vmatpush1.msra.mxu0 0.0
  %1761 = vmatprep.subr.mxu0 0.0
  %1762 = vmatpush1.msra.mxu0 0.0
  %1763 = vmatprep.subr.mxu0 0.0
  %1764 = vmatpush1.msra.mxu0 0.0
  %1765 = vmatprep.subr.mxu0 0.0
  %1766 = vmatpush1.msra.mxu0 0.0
  %1767 = vmatprep.subr.mxu0 0.0
  %1768 = vmatpush1.msra.mxu0 0.0
  %1769 = vmatprep.subr.mxu0 0.0
  %1770 = vmatpush1.msra.mxu0 0.0
  %1771 = vmatprep.subr.mxu0 0.0
  %1772 = vmatpush1.msra.mxu0 0.0
  %1773 = vmatprep.subr.mxu0 0.0
  %1774 = vmatpush1.msra.mxu0 0.0
  %1775 = vmatprep.subr.mxu0 0.0
  %1776 = vmatpush1.msra.mxu0 0.0
  %1777 = vmatprep.subr.mxu0 0.0
  %1778 = vmatpush1.msra.mxu0 0.0
  %1779 = vmatprep.mubr.f32.mxu0 0.0
  %1780 = vmatmul.mubr.f32.gmra.mrb[0].mxu0 %v1713
  %v1781 = vpop.f32.mrb[0].mxu0
  %v1782 = vadd.f32 %v1709, %v1781
  %v1783 = vpop.f32.mrb[0].mxu0
  %1784 = vdwg.mxu0
  %v1785 = vmul.f32 %v1257, %v725
  %v1786 = vmul.f32 %v1346, %v725
  %v1787 = vmul.f32 %v1351, %v725
  %v1789 = vsel %vm144, %v1785, 0
  %v1792 = vsel %vm144, %v1786, 0
  %v1795 = vsel %vm144, %v1787, 0
  %1797 = vmatprep.subr.mxu0 0.0
  %1798 = vmatpush1.xpose.msra.mxu0 %v1792
  %1799 = vmatprep.subr.mxu0 0.0
  %1800 = vmatpush1.xpose.msra.mxu0 %v1795
  %1801 = vmatprep.subr.mxu0 0.0
  %1802 = vmatpush1.xpose.msra.mxu0 0.0
  %1803 = vmatprep.subr.mxu0 0.0
  %1804 = vmatpush1.xpose.msra.mxu0 0.0
  %1805 = vmatprep.subr.mxu0 0.0
  %1806 = vmatpush1.xpose.msra.mxu0 0.0
  %1807 = vmatprep.subr.mxu0 0.0
  %1808 = vmatpush1.xpose.msra.mxu0 0.0
  %1809 = vmatprep.subr.mxu0 0.0
  %1810 = vmatpush1.xpose.msra.mxu0 0.0
  %1811 = vmatprep.subr.mxu0 0.0
  %1812 = vmatpush1.xpose.msra.mxu0 0.0
  %1813 = vmatprep.subr.mxu0 0.0
  %1814 = vmatpush1.xpose.msra.mxu0 0.0
  %1815 = vmatprep.subr.mxu0 0.0
  %1816 = vmatpush1.xpose.msra.mxu0 0.0
  %1817 = vmatprep.subr.mxu0 0.0
  %1818 = vmatpush1.xpose.msra.mxu0 0.0
  %1819 = vmatprep.subr.mxu0 0.0
  %1820 = vmatpush1.xpose.msra.mxu0 0.0
  %1821 = vmatprep.subr.mxu0 0.0
  %1822 = vmatpush1.xpose.msra.mxu0 0.0
  %1823 = vmatprep.subr.mxu0 0.0
  %1824 = vmatpush1.xpose.msra.mxu0 0.0
  %1825 = vmatprep.subr.mxu0 0.0
  %1826 = vmatpush1.xpose.msra.mxu0 0.0
  %1827 = vmatprep.subr.mxu0 0.0
  %1828 = vmatpush1.xpose.msra.mxu0 0.0
  %1829 = vmatprep.subr.mxu0 0.0
  %1830 = vmatpush1.xpose.msra.mxu0 0.0
  %1831 = vmatprep.subr.mxu0 0.0
  %1832 = vmatpush1.xpose.msra.mxu0 0.0
  %1833 = vmatprep.subr.mxu0 0.0
  %1834 = vmatpush1.xpose.msra.mxu0 0.0
  %1835 = vmatprep.subr.mxu0 0.0
  %1836 = vmatpush1.xpose.msra.mxu0 0.0
  %1837 = vmatprep.subr.mxu0 0.0
  %1838 = vmatpush1.xpose.msra.mxu0 0.0
  %1839 = vmatprep.subr.mxu0 0.0
  %1840 = vmatpush1.xpose.msra.mxu0 0.0
  %1841 = vmatprep.subr.mxu0 0.0
  %1842 = vmatpush1.xpose.msra.mxu0 0.0
  %1843 = vmatprep.subr.mxu0 0.0
  %1844 = vmatpush1.xpose.msra.mxu0 0.0
  %1845 = vmatprep.subr.mxu0 0.0
  %1846 = vmatpush1.xpose.msra.mxu0 0.0
  %1847 = vmatprep.subr.mxu0 0.0
  %1848 = vmatpush1.xpose.msra.mxu0 0.0
  %1849 = vmatprep.subr.mxu0 0.0
  %1850 = vmatpush1.xpose.msra.mxu0 0.0
  %1851 = vmatprep.subr.mxu0 0.0
  %1852 = vmatpush1.xpose.msra.mxu0 0.0
  %1853 = vmatprep.subr.mxu0 0.0
  %1854 = vmatpush1.xpose.msra.mxu0 0.0
  %1855 = vmatprep.subr.mxu0 0.0
  %1856 = vmatpush1.xpose.msra.mxu0 0.0
  %1857 = vmatprep.subr.mxu0 0.0
  %1858 = vmatpush1.xpose.msra.mxu0 0.0
  %1859 = vmatprep.subr.mxu0 0.0
  %1860 = vmatpush1.xpose.msra.mxu0 0.0
  %1861 = vmatprep.mubr.f32.mxu0 0.0
  %1862 = vmatmul.mubr.f32.gmra.mrb[0].mxu0 %v1789
  %v1863 = vpop.f32.mrb[0].mxu0
  %v1864 = vadd.f32 0.0, %v1863
  %v1865 = vpop.f32.mrb[0].mxu0
  %1866 = vdwg.mxu0
  %v1867 = vmul.f32 %v1864, 0.35355338
  %v1868 = vsel %vm1529, %v1867, -inf
  %1869 = vmax.xlane.f32.xlu0 %v1868
  %v1870 = vpop.xlane.xlu0 %1869
  %v1871 = vsub.f32 %v1867, %v1870
  %v1872 = vmul.f32 %v1871, 1.442695
  %v1873 = vpow.pop %v1872
  %v1874 = vsel %vm1529, %v1873, 0.0
  %1875 = vadd.xlane.f32.xlu0 %v1874
  %v1876 = vpop.xlane.xlu0 %1875
  %v1877 = vrcp.pop %v1876
  %v1878 = vmul.f32 %v1873, %v1877
  %v1879 = vmul.f32 %v1438, %v725
  %v1880 = vmul.f32 %v1443, %v725
  %v1882 = vsel %vm1529, %v1878, 0
  %1884 = vmatprep.subr.mxu0 0.0
  %1885 = vmatpush1.msra.mxu0 %v1879
  %1886 = vmatprep.subr.mxu0 0.0
  %1887 = vmatpush1.msra.mxu0 %v1880
  %1888 = vmatprep.subr.mxu0 0.0
  %1889 = vmatpush1.msra.mxu0 0.0
  %1890 = vmatprep.subr.mxu0 0.0
  %1891 = vmatpush1.msra.mxu0 0.0
  %1892 = vmatprep.subr.mxu0 0.0
  %1893 = vmatpush1.msra.mxu0 0.0
  %1894 = vmatprep.subr.mxu0 0.0
  %1895 = vmatpush1.msra.mxu0 0.0
  %1896 = vmatprep.subr.mxu0 0.0
  %1897 = vmatpush1.msra.mxu0 0.0
  %1898 = vmatprep.subr.mxu0 0.0
  %1899 = vmatpush1.msra.mxu0 0.0
  %1900 = vmatprep.subr.mxu0 0.0
  %1901 = vmatpush1.msra.mxu0 0.0
  %1902 = vmatprep.subr.mxu0 0.0
  %1903 = vmatpush1.msra.mxu0 0.0
  %1904 = vmatprep.subr.mxu0 0.0
  %1905 = vmatpush1.msra.mxu0 0.0
  %1906 = vmatprep.subr.mxu0 0.0
  %1907 = vmatpush1.msra.mxu0 0.0
  %1908 = vmatprep.subr.mxu0 0.0
  %1909 = vmatpush1.msra.mxu0 0.0
  %1910 = vmatprep.subr.mxu0 0.0
  %1911 = vmatpush1.msra.mxu0 0.0
  %1912 = vmatprep.subr.mxu0 0.0
  %1913 = vmatpush1.msra.mxu0 0.0
  %1914 = vmatprep.subr.mxu0 0.0
  %1915 = vmatpush1.msra.mxu0 0.0
  %1916 = vmatprep.subr.mxu0 0.0
  %1917 = vmatpush1.msra.mxu0 0.0
  %1918 = vmatprep.subr.mxu0 0.0
  %1919 = vmatpush1.msra.mxu0 0.0
  %1920 = vmatprep.subr.mxu0 0.0
  %1921 = vmatpush1.msra.mxu0 0.0
  %1922 = vmatprep.subr.mxu0 0.0
  %1923 = vmatpush1.msra.mxu0 0.0
  %1924 = vmatprep.subr.mxu0 0.0
  %1925 = vmatpush1.msra.mxu0 0.0
  %1926 = vmatprep.subr.mxu0 0.0
  %1927 = vmatpush1.msra.mxu0 0.0
  %1928 = vmatprep.subr.mxu0 0.0
  %1929 = vmatpush1.msra.mxu0 0.0
  %1930 = vmatprep.subr.mxu0 0.0
  %1931 = vmatpush1.msra.mxu0 0.0
  %1932 = vmatprep.subr.mxu0 0.0
  %1933 = vmatpush1.msra.mxu0 0.0
  %1934 = vmatprep.subr.mxu0 0.0
  %1935 = vmatpush1.msra.mxu0 0.0
  %1936 = vmatprep.subr.mxu0 0.0
  %1937 = vmatpush1.msra.mxu0 0.0
  %1938 = vmatprep.subr.mxu0 0.0
  %1939 = vmatpush1.msra.mxu0 0.0
  %1940 = vmatprep.subr.mxu0 0.0
  %1941 = vmatpush1.msra.mxu0 0.0
  %1942 = vmatprep.subr.mxu0 0.0
  %1943 = vmatpush1.msra.mxu0 0.0
  %1944 = vmatprep.subr.mxu0 0.0
  %1945 = vmatpush1.msra.mxu0 0.0
  %1946 = vmatprep.subr.mxu0 0.0
  %1947 = vmatpush1.msra.mxu0 0.0
  %1948 = vmatprep.mubr.f32.mxu0 0.0
  %1949 = vmatmul.mubr.f32.gmra.mrb[0].mxu0 %v1882
  %v1950 = vpop.f32.mrb[0].mxu0
  %v1951 = vadd.f32 0.0, %v1950
  %v1952 = vpop.f32.mrb[0].mxu0
  %1953 = vdwg.mxu0
  %v1954 = vadd.f32 %v1782, %v1951
  %v1955 = vmul.f32 %v1257, %v894
  %v1956 = vmul.f32 %v1346, %v894
  %v1957 = vmul.f32 %v1351, %v894
  %v1959 = vsel %vm144, %v1955, 0
  %v1962 = vsel %vm144, %v1956, 0
  %v1965 = vsel %vm144, %v1957, 0
  %1967 = vmatprep.subr.mxu0 0.0
  %1968 = vmatpush1.xpose.msra.mxu0 %v1962
  %1969 = vmatprep.subr.mxu0 0.0
  %1970 = vmatpush1.xpose.msra.mxu0 %v1965
  %1971 = vmatprep.subr.mxu0 0.0
  %1972 = vmatpush1.xpose.msra.mxu0 0.0
  %1973 = vmatprep.subr.mxu0 0.0
  %1974 = vmatpush1.xpose.msra.mxu0 0.0
  %1975 = vmatprep.subr.mxu0 0.0
  %1976 = vmatpush1.xpose.msra.mxu0 0.0
  %1977 = vmatprep.subr.mxu0 0.0
  %1978 = vmatpush1.xpose.msra.mxu0 0.0
  %1979 = vmatprep.subr.mxu0 0.0
  %1980 = vmatpush1.xpose.msra.mxu0 0.0
  %1981 = vmatprep.subr.mxu0 0.0
  %1982 = vmatpush1.xpose.msra.mxu0 0.0
  %1983 = vmatprep.subr.mxu0 0.0
  %1984 = vmatpush1.xpose.msra.mxu0 0.0
  %1985 = vmatprep.subr.mxu0 0.0
  %1986 = vmatpush1.xpose.msra.mxu0 0.0
  %1987 = vmatprep.subr.mxu0 0.0
  %1988 = vmatpush1.xpose.msra.mxu0 0.0
  %1989 = vmatprep.subr.mxu0 0.0
  %1990 = vmatpush1.xpose.msra.mxu0 0.0
  %1991 = vmatprep.subr.mxu0 0.0
  %1992 = vmatpush1.xpose.msra.mxu0 0.0
  %1993 = vmatprep.subr.mxu0 0.0
  %1994 = vmatpush1.xpose.msra.mxu0 0.0
  %1995 = vmatprep.subr.mxu0 0.0
  %1996 = vmatpush1.xpose.msra.mxu0 0.0
  %1997 = vmatprep.subr.mxu0 0.0
  %1998 = vmatpush1.xpose.msra.mxu0 0.0
  %1999 = vmatprep.subr.mxu0 0.0
  %2000 = vmatpush1.xpose.msra.mxu0 0.0
  %2001 = vmatprep.subr.mxu0 0.0
  %2002 = vmatpush1.xpose.msra.mxu0 0.0
  %2003 = vmatprep.subr.mxu0 0.0
  %2004 = vmatpush1.xpose.msra.mxu0 0.0
  %2005 = vmatprep.subr.mxu0 0.0
  %2006 = vmatpush1.xpose.msra.mxu0 0.0
  %2007 = vmatprep.subr.mxu0 0.0
  %2008 = vmatpush1.xpose.msra.mxu0 0.0
  %2009 = vmatprep.subr.mxu0 0.0
  %2010 = vmatpush1.xpose.msra.mxu0 0.0
  %2011 = vmatprep.subr.mxu0 0.0
  %2012 = vmatpush1.xpose.msra.mxu0 0.0
  %2013 = vmatprep.subr.mxu0 0.0
  %2014 = vmatpush1.xpose.msra.mxu0 0.0
  %2015 = vmatprep.subr.mxu0 0.0
  %2016 = vmatpush1.xpose.msra.mxu0 0.0
  %2017 = vmatprep.subr.mxu0 0.0
  %2018 = vmatpush1.xpose.msra.mxu0 0.0
  %2019 = vmatprep.subr.mxu0 0.0
  %2020 = vmatpush1.xpose.msra.mxu0 0.0
  %2021 = vmatprep.subr.mxu0 0.0
  %2022 = vmatpush1.xpose.msra.mxu0 0.0
  %2023 = vmatprep.subr.mxu0 0.0
  %2024 = vmatpush1.xpose.msra.mxu0 0.0
  %2025 = vmatprep.subr.mxu0 0.0
  %2026 = vmatpush1.xpose.msra.mxu0 0.0
  %2027 = vmatprep.subr.mxu0 0.0
  %2028 = vmatpush1.xpose.msra.mxu0 0.0
  %2029 = vmatprep.subr.mxu0 0.0
  %2030 = vmatpush1.xpose.msra.mxu0 0.0
  %2031 = vmatprep.mubr.f32.mxu0 0.0
  %2032 = vmatmul.mubr.f32.gmra.mrb[0].mxu0 %v1959
  %v2033 = vpop.f32.mrb[0].mxu0
  %v2034 = vadd.f32 0.0, %v2033
  %v2035 = vpop.f32.mrb[0].mxu0
  %2036 = vdwg.mxu0
  %v2037 = vmul.f32 %v2034, 0.35355338
  %v2038 = vsel %vm1529, %v2037, -inf
  %2039 = vmax.xlane.f32.xlu0 %v2038
  %v2040 = vpop.xlane.xlu0 %2039
  %v2041 = vsub.f32 %v2037, %v2040
  %v2042 = vmul.f32 %v2041, 1.442695
  %v2043 = vpow.pop %v2042
  %v2044 = vsel %vm1529, %v2043, 0.0
  %2045 = vadd.xlane.f32.xlu0 %v2044
  %v2046 = vpop.xlane.xlu0 %2045
  %v2047 = vrcp.pop %v2046
  %v2048 = vmul.f32 %v2043, %v2047
  %v2049 = vmul.f32 %v1438, %v894
  %v2050 = vmul.f32 %v1443, %v894
  %v2052 = vsel %vm1529, %v2048, 0
  %2054 = vmatprep.subr.mxu0 0.0
  %2055 = vmatpush1.msra.mxu0 %v2049
  %2056 = vmatprep.subr.mxu0 0.0
  %2057 = vmatpush1.msra.mxu0 %v2050
  %2058 = vmatprep.subr.mxu0 0.0
  %2059 = vmatpush1.msra.mxu0 0.0
  %2060 = vmatprep.subr.mxu0 0.0
  %2061 = vmatpush1.msra.mxu0 0.0
  %2062 = vmatprep.subr.mxu0 0.0
  %2063 = vmatpush1.msra.mxu0 0.0
  %2064 = vmatprep.subr.mxu0 0.0
  %2065 = vmatpush1.msra.mxu0 0.0
  %2066 = vmatprep.subr.mxu0 0.0
  %2067 = vmatpush1.msra.mxu0 0.0
  %2068 = vmatprep.subr.mxu0 0.0
  %2069 = vmatpush1.msra.mxu0 0.0
  %2070 = vmatprep.subr.mxu0 0.0
  %2071 = vmatpush1.msra.mxu0 0.0
  %2072 = vmatprep.subr.mxu0 0.0
  %2073 = vmatpush1.msra.mxu0 0.0
  %2074 = vmatprep.subr.mxu0 0.0
  %2075 = vmatpush1.msra.mxu0 0.0
  %2076 = vmatprep.subr.mxu0 0.0
  %2077 = vmatpush1.msra.mxu0 0.0
  %2078 = vmatprep.subr.mxu0 0.0
  %2079 = vmatpush1.msra.mxu0 0.0
  %2080 = vmatprep.subr.mxu0 0.0
  %2081 = vmatpush1.msra.mxu0 0.0
  %2082 = vmatprep.subr.mxu0 0.0
  %2083 = vmatpush1.msra.mxu0 0.0
  %2084 = vmatprep.subr.mxu0 0.0
  %2085 = vmatpush1.msra.mxu0 0.0
  %2086 = vmatprep.subr.mxu0 0.0
  %2087 = vmatpush1.msra.mxu0 0.0
  %2088 = vmatprep.subr.mxu0 0.0
  %2089 = vmatpush1.msra.mxu0 0.0
  %2090 = vmatprep.subr.mxu0 0.0
  %2091 = vmatpush1.msra.mxu0 0.0
  %2092 = vmatprep.subr.mxu0 0.0
  %2093 = vmatpush1.msra.mxu0 0.0
  %2094 = vmatprep.subr.mxu0 0.0
  %2095 = vmatpush1.msra.mxu0 0.0
  %2096 = vmatprep.subr.mxu0 0.0
  %2097 = vmatpush1.msra.mxu0 0.0
  %2098 = vmatprep.subr.mxu0 0.0
  %2099 = vmatpush1.msra.mxu0 0.0
  %2100 = vmatprep.subr.mxu0 0.0
  %2101 = vmatpush1.msra.mxu0 0.0
  %2102 = vmatprep.subr.mxu0 0.0
  %2103 = vmatpush1.msra.mxu0 0.0
  %2104 = vmatprep.subr.mxu0 0.0
  %2105 = vmatpush1.msra.mxu0 0.0
  %2106 = vmatprep.subr.mxu0 0.0
  %2107 = vmatpush1.msra.mxu0 0.0
  %2108 = vmatprep.subr.mxu0 0.0
  %2109 = vmatpush1.msra.mxu0 0.0
  %2110 = vmatprep.subr.mxu0 0.0
  %2111 = vmatpush1.msra.mxu0 0.0
  %2112 = vmatprep.subr.mxu0 0.0
  %2113 = vmatpush1.msra.mxu0 0.0
  %2114 = vmatprep.subr.mxu0 0.0
  %2115 = vmatpush1.msra.mxu0 0.0
  %2116 = vmatprep.subr.mxu0 0.0
  %2117 = vmatpush1.msra.mxu0 0.0
  %2118 = vmatprep.mubr.f32.mxu0 0.0
  %2119 = vmatmul.mubr.f32.gmra.mrb[0].mxu0 %v2052
  %v2120 = vpop.f32.mrb[0].mxu0
  %v2121 = vadd.f32 0.0, %v2120
  %v2122 = vpop.f32.mrb[0].mxu0
  %2123 = vdwg.mxu0
  %v2124 = vadd.f32 %v1954, %v2121
  %v2125 = vld [vmem:[%s37] sm:$0xff]
  %v2126 = vld [vmem:[%s37 + $0x8] sm:$0xff]
  %v2127 = vld [vmem:[%s37 + $0x10] sm:$0xff]
  %v2128 = vld [vmem:[%s37 + $0x18] sm:$0xff]
  %v2129 = vld [vmem:[%s39] sm:$0x1]
  %v2131 = vlaneseq
  %v2132 = vshrl.u32 %v2131, 7
  %v2133 = vsub.s32 0, %v2132
  %v2134 = vrot.slane %v2129, %v2133
  %v2137 = vsel %vm144, %v2124, 0
  %2139 = vmatprep.subr.mxu0 0.0
  %2140 = vmatpush1.msra.mxu0 %v2125
  %2141 = vmatprep.subr.mxu0 0.0
  %2142 = vmatpush1.msra.mxu0 %v2126
  %2143 = vmatprep.subr.mxu0 0.0
  %2144 = vmatpush1.msra.mxu0 %v2127
  %2145 = vmatprep.subr.mxu0 0.0
  %2146 = vmatpush1.msra.mxu0 %v2128
  %2147 = vmatprep.subr.mxu0 0.0
  %2148 = vmatpush1.msra.mxu0 0.0
  %2149 = vmatprep.subr.mxu0 0.0
  %2150 = vmatpush1.msra.mxu0 0.0
  %2151 = vmatprep.subr.mxu0 0.0
  %2152 = vmatpush1.msra.mxu0 0.0
  %2153 = vmatprep.subr.mxu0 0.0
  %2154 = vmatpush1.msra.mxu0 0.0
  %2155 = vmatprep.subr.mxu0 0.0
  %2156 = vmatpush1.msra.mxu0 0.0
  %2157 = vmatprep.subr.mxu0 0.0
  %2158 = vmatpush1.msra.mxu0 0.0
  %2159 = vmatprep.subr.mxu0 0.0
  %2160 = vmatpush1.msra.mxu0 0.0
  %2161 = vmatprep.subr.mxu0 0.0
  %2162 = vmatpush1.msra.mxu0 0.0
  %2163 = vmatprep.subr.mxu0 0.0
  %2164 = vmatpush1.msra.mxu0 0.0
  %2165 = vmatprep.subr.mxu0 0.0
  %2166 = vmatpush1.msra.mxu0 0.0
  %2167 = vmatprep.subr.mxu0 0.0
  %2168 = vmatpush1.msra.mxu0 0.0
  %2169 = vmatprep.subr.mxu0 0.0
  %2170 = vmatpush1.msra.mxu0 0.0
  %2171 = vmatprep.subr.mxu0 0.0
  %2172 = vmatpush1.msra.mxu0 0.0
  %2173 = vmatprep.subr.mxu0 0.0
  %2174 = vmatpush1.msra.mxu0 0.0
  %2175 = vmatprep.subr.mxu0 0.0
  %2176 = vmatpush1.msra.mxu0 0.0
  %2177 = vmatprep.subr.mxu0 0.0
  %2178 = vmatpush1.msra.mxu0 0.0
  %2179 = vmatprep.subr.mxu0 0.0
  %2180 = vmatpush1.msra.mxu0 0.0
  %2181 = vmatprep.subr.mxu0 0.0
  %2182 = vmatpush1.msra.mxu0 0.0
  %2183 = vmatprep.subr.mxu0 0.0
  %2184 = vmatpush1.msra.mxu0 0.0
  %2185 = vmatprep.subr.mxu0 0.0
  %2186 = vmatpush1.msra.mxu0 0.0
  %2187 = vmatprep.subr.mxu0 0.0
  %2188 = vmatpush1.msra.mxu0 0.0
  %2189 = vmatprep.subr.mxu0 0.0
  %2190 = vmatpush1.msra.mxu0 0.0
  %2191 = vmatprep.subr.mxu0 0.0
  %2192 = vmatpush1.msra.mxu0 0.0
  %2193 = vmatprep.subr.mxu0 0.0
  %2194 = vmatpush1.msra.mxu0 0.0
  %2195 = vmatprep.subr.mxu0 0.0
  %2196 = vmatpush1.msra.mxu0 0.0
  %2197 = vmatprep.subr.mxu0 0.0
  %2198 = vmatpush1.msra.mxu0 0.0
  %2199 = vmatprep.subr.mxu0 0.0
  %2200 = vmatpush1.msra.mxu0 0.0
  %2201 = vmatprep.subr.mxu0 0.0
  %2202 = vmatpush1.msra.mxu0 0.0
  %2203 = vmatprep.mubr.f32.mxu0 0.0
  %2204 = vmatmul.mubr.f32.gmra.mrb[0].mxu0 %v2137
  %v2205 = vpop.f32.mrb[0].mxu0
  %v2206 = vadd.f32 %v2134, %v2205
  %v2207 = vpop.f32.mrb[0].mxu0
  %2208 = vdwg.mxu0
  %v2209 = vadd.f32 %v1174, %v2206
  %v2210 = vld [vmem:[%s45] sm:$0x1]
  %v2211 = vld [vmem:[%s47] sm:$0x1]
  %v2212 = vsel %vm144, %v2209, 0.0
  %2213 = vadd.xlane.f32.xlu0 %v2212
  %v2214 = vpop.xlane.xlu0 %2213
  %v2215 = vmul.f32 %v2214, %v1150
  %v2216 = vsub.f32 %v2209, %v2215
  %v2217 = vmul.f32 %v2216, %v2216
  %v2218 = vsel %vm144, %v2217, 0.0
  %2219 = vadd.xlane.f32.xlu0 %v2218
  %v2220 = vpop.xlane.xlu0 %2219
  %v2221 = vmul.f32 %v2220, %v1150
  %v2222 = vadd.f32 %v2221, 1e-05
  %v2223 = vrsqrt.pop %v2222
  %v2224 = vmul.f32 %v2216, %v2223
  %v2226 = vlaneseq
  %v2227 = vshrl.u32 %v2226, 7
  %v2228 = vsub.s32 0, %v2227
  %v2229 = vrot.slane %v2210, %v2228
  %v2231 = vmul.f32 %v2224, %v2229
  %v2233 = vlaneseq
  %v2234 = vshrl.u32 %v2233, 7
  %v2235 = vsub.s32 0, %v2234
  %v2236 = vrot.slane %v2211, %v2235
  %v2238 = vadd.f32 %v2231, %v2236
  %v2239 = vld [vmem:[%s53] sm:$0xff]
  %v2240 = vld [vmem:[%s53 + $0x8] sm:$0xff]
  %v2241 = vld [vmem:[%s53 + $0x10] sm:$0xff]
  %v2242 = vld [vmem:[%s53 + $0x18] sm:$0xff]
  %v2243 = vld [vmem:[%s55] sm:$0x1]
  %v2245 = vlaneseq
  %v2246 = vshrl.u32 %v2245, 7
  %v2247 = vsub.s32 0, %v2246
  %v2248 = vrot.slane %v2243, %v2247
  %v2251 = vsel %vm144, %v2238, 0
  %2253 = vmatprep.subr.mxu0 0.0
  %2254 = vmatpush1.msra.mxu0 %v2239
  %2255 = vmatprep.subr.mxu0 0.0
  %2256 = vmatpush1.msra.mxu0 %v2240
  %2257 = vmatprep.subr.mxu0 0.0
  %2258 = vmatpush1.msra.mxu0 %v2241
  %2259 = vmatprep.subr.mxu0 0.0
  %2260 = vmatpush1.msra.mxu0 %v2242
  %2261 = vmatprep.subr.mxu0 0.0
  %2262 = vmatpush1.msra.mxu0 0.0
  %2263 = vmatprep.subr.mxu0 0.0
  %2264 = vmatpush1.msra.mxu0 0.0
  %2265 = vmatprep.subr.mxu0 0.0
  %2266 = vmatpush1.msra.mxu0 0.0
  %2267 = vmatprep.subr.mxu0 0.0
  %2268 = vmatpush1.msra.mxu0 0.0
  %2269 = vmatprep.subr.mxu0 0.0
  %2270 = vmatpush1.msra.mxu0 0.0
  %2271 = vmatprep.subr.mxu0 0.0
  %2272 = vmatpush1.msra.mxu0 0.0
  %2273 = vmatprep.subr.mxu0 0.0
  %2274 = vmatpush1.msra.mxu0 0.0
  %2275 = vmatprep.subr.mxu0 0.0
  %2276 = vmatpush1.msra.mxu0 0.0
  %2277 = vmatprep.subr.mxu0 0.0
  %2278 = vmatpush1.msra.mxu0 0.0
  %2279 = vmatprep.subr.mxu0 0.0
  %2280 = vmatpush1.msra.mxu0 0.0
  %2281 = vmatprep.subr.mxu0 0.0
  %2282 = vmatpush1.msra.mxu0 0.0
  %2283 = vmatprep.subr.mxu0 0.0
  %2284 = vmatpush1.msra.mxu0 0.0
  %2285 = vmatprep.subr.mxu0 0.0
  %2286 = vmatpush1.msra.mxu0 0.0
  %2287 = vmatprep.subr.mxu0 0.0
  %2288 = vmatpush1.msra.mxu0 0.0
  %2289 = vmatprep.subr.mxu0 0.0
  %2290 = vmatpush1.msra.mxu0 0.0
  %2291 = vmatprep.subr.mxu0 0.0
  %2292 = vmatpush1.msra.mxu0 0.0
  %2293 = vmatprep.subr.mxu0 0.0
  %2294 = vmatpush1.msra.mxu0 0.0
  %2295 = vmatprep.subr.mxu0 0.0
  %2296 = vmatpush1.msra.mxu0 0.0
  %2297 = vmatprep.subr.mxu0 0.0
  %2298 = vmatpush1.msra.mxu0 0.0
  %2299 = vmatprep.subr.mxu0 0.0
  %2300 = vmatpush1.msra.mxu0 0.0
  %2301 = vmatprep.subr.mxu0 0.0
  %2302 = vmatpush1.msra.mxu0 0.0
  %2303 = vmatprep.subr.mxu0 0.0
  %2304 = vmatpush1.msra.mxu0 0.0
  %2305 = vmatprep.subr.mxu0 0.0
  %2306 = vmatpush1.msra.mxu0 0.0
  %2307 = vmatprep.subr.mxu0 0.0
  %2308 = vmatpush1.msra.mxu0 0.0
  %2309 = vmatprep.subr.mxu0 0.0
  %2310 = vmatpush1.msra.mxu0 0.0
  %2311 = vmatprep.subr.mxu0 0.0
  %2312 = vmatpush1.msra.mxu0 0.0
  %2313 = vmatprep.subr.mxu0 0.0
  %2314 = vmatpush1.msra.mxu0 0.0
  %2315 = vmatprep.subr.mxu0 0.0
  %2316 = vmatpush1.msra.mxu0 0.0
  %2317 = vmatprep.mubr.f32.mxu0 0.0
  %2318 = vmatmul.mubr.f32.gmra.mrb[0].mxu0 %v2251
  %v2319 = vpop.f32.mrb[0].mxu0
  %v2320 = vadd.f32 %v2248, %v2319
  %v2321 = vpop.f32.mrb[0].mxu0
  %2322 = vdwg.mxu0
  %v2323 = vmax.f32 %v2320, 0.0
  %v2324 = vld [vmem:[%s57] sm:$0xff]
  %v2325 = vld [vmem:[%s57 + $0x8] sm:$0xff]
  %v2326 = vld [vmem:[%s57 + $0x10] sm:$0xff]
  %v2327 = vld [vmem:[%s57 + $0x18] sm:$0xff]
  %v2328 = vld [vmem:[%s57 + $0x20] sm:$0xff]
  %v2329 = vld [vmem:[%s57 + $0x28] sm:$0xff]
  %v2330 = vld [vmem:[%s57 + $0x30] sm:$0xff]
  %v2331 = vld [vmem:[%s57 + $0x38] sm:$0xff]
  %v2332 = vld [vmem:[%s59] sm:$0x1]
  %v2334 = vlaneseq
  %v2335 = vshrl.u32 %v2334, 7
  %v2336 = vsub.s32 0, %v2335
  %v2337 = vrot.slane %v2332, %v2336
  %vm2339 = vcmask 523264
  %v2341 = vsel %vm2339, %v2323, 0
  %2343 = vmatprep.subr.mxu0 0.0
  %2344 = vmatpush1.msra.mxu0 %v2324
  %2345 = vmatprep.subr.mxu0 0.0
  %2346 = vmatpush1.msra.mxu0 %v2325
  %2347 = vmatprep.subr.mxu0 0.0
  %2348 = vmatpush1.msra.mxu0 %v2326
  %2349 = vmatprep.subr.mxu0 0.0
  %2350 = vmatpush1.msra.mxu0 %v2327
  %2351 = vmatprep.subr.mxu0 0.0
  %2352 = vmatpush1.msra.mxu0 %v2328
  %2353 = vmatprep.subr.mxu0 0.0
  %2354 = vmatpush1.msra.mxu0 %v2329
  %2355 = vmatprep.subr.mxu0 0.0
  %2356 = vmatpush1.msra.mxu0 %v2330
  %2357 = vmatprep.subr.mxu0 0.0
  %2358 = vmatpush1.msra.mxu0 %v2331
  %2359 = vmatprep.subr.mxu0 0.0
  %2360 = vmatpush1.msra.mxu0 0.0
  %2361 = vmatprep.subr.mxu0 0.0
  %2362 = vmatpush1.msra.mxu0 0.0
  %2363 = vmatprep.subr.mxu0 0.0
  %2364 = vmatpush1.msra.mxu0 0.0
  %2365 = vmatprep.subr.mxu0 0.0
  %2366 = vmatpush1.msra.mxu0 0.0
  %2367 = vmatprep.subr.mxu0 0.0
  %2368 = vmatpush1.msra.mxu0 0.0
  %2369 = vmatprep.subr.mxu0 0.0
  %2370 = vmatpush1.msra.mxu0 0.0
  %2371 = vmatprep.subr.mxu0 0.0
  %2372 = vmatpush1.msra.mxu0 0.0
  %2373 = vmatprep.subr.mxu0 0.0
  %2374 = vmatpush1.msra.mxu0 0.0
  %2375 = vmatprep.subr.mxu0 0.0
  %2376 = vmatpush1.msra.mxu0 0.0
  %2377 = vmatprep.subr.mxu0 0.0
  %2378 = vmatpush1.msra.mxu0 0.0
  %2379 = vmatprep.subr.mxu0 0.0
  %2380 = vmatpush1.msra.mxu0 0.0
  %2381 = vmatprep.subr.mxu0 0.0
  %2382 = vmatpush1.msra.mxu0 0.0
  %2383 = vmatprep.subr.mxu0 0.0
  %2384 = vmatpush1.msra.mxu0 0.0
  %2385 = vmatprep.subr.mxu0 0.0
  %2386 = vmatpush1.msra.mxu0 0.0
  %2387 = vmatprep.subr.mxu0 0.0
  %2388 = vmatpush1.msra.mxu0 0.0
  %2389 = vmatprep.subr.mxu0 0.0
  %2390 = vmatpush1.msra.mxu0 0.0
  %2391 = vmatprep.subr.mxu0 0.0
  %2392 = vmatpush1.msra.mxu0 0.0
  %2393 = vmatprep.subr.mxu0 0.0
  %2394 = vmatpush1.msra.mxu0 0.0
  %2395 = vmatprep.subr.mxu0 0.0
  %2396 = vmatpush1.msra.mxu0 0.0
  %2397 = vmatprep.subr.mxu0 0.0
  %2398 = vmatpush1.msra.mxu0 0.0
  %2399 = vmatprep.subr.mxu0 0.0
  %2400 = vmatpush1.msra.mxu0 0.0
  %2401 = vmatprep.subr.mxu0 0.0
  %2402 = vmatpush1.msra.mxu0 0.0
  %2403 = vmatprep.subr.mxu0 0.0
  %2404 = vmatpush1.msra.mxu0 0.0
  %2405 = vmatprep.subr.mxu0 0.0
  %2406 = vmatpush1.msra.mxu0 0.0
  %2407 = vmatprep.mubr.f32.mxu0 0.0
  %2408 = vmatmul.mubr.f32.gmra.mrb[0].mxu0 %v2341
  %v2409 = vpop.f32.mrb[0].mxu0
  %v2410 = vadd.f32 %v2337, %v2409
  %v2411 = vpop.f32.mrb[0].mxu0
  %2412 = vdwg.mxu0
  %v2413 = vadd.f32 %v2238, %v2410
  %v2414 = vld [vmem:[%s49] sm:$0x1]
  %v2415 = vld [vmem:[%s51] sm:$0x1]
  %v2416 = vsel %vm144, %v2413, 0.0
  %2417 = vadd.xlane.f32.xlu0 %v2416
  %v2418 = vpop.xlane.xlu0 %2417
  %v2419 = vmul.f32 %v2418, %v1150
  %v2420 = vsub.f32 %v2413, %v2419
  %v2421 = vmul.f32 %v2420, %v2420
  %v2422 = vsel %vm144, %v2421, 0.0
  %2423 = vadd.xlane.f32.xlu0 %v2422
  %v2424 = vpop.xlane.xlu0 %2423
  %v2425 = vmul.f32 %v2424, %v1150
  %v2426 = vadd.f32 %v2425, 1e-05
  %v2427 = vrsqrt.pop %v2426
  %v2428 = vmul.f32 %v2420, %v2427
  %v2430 = vlaneseq
  %v2431 = vshrl.u32 %v2430, 7
  %v2432 = vsub.s32 0, %v2431
  %v2433 = vrot.slane %v2414, %v2432
  %v2435 = vmul.f32 %v2428, %v2433
  %v2437 = vlaneseq
  %v2438 = vshrl.u32 %v2437, 7
  %v2439 = vsub.s32 0, %v2438
  %v2440 = vrot.slane %v2415, %v2439
  %v2442 = vadd.f32 %v2435, %v2440
  %2443 = vst.msk [vmem:[%s61] sm:$0xff] %vm144, %v2442
  // Predicated region
  $region122: #{input_block_forward.4} parent=0 // pred_check
    _
  $region123: #{input_block_forward.4} parent=0 // pred_check_branch
    %2445 = sbr.rel (0) target = $region125
  $region124: #{input_block_forward.4} parent=0 // pred_region
    _
  $region125: #{input_block_forward.4} parent=0 // pred_fallthru
    _
  // Predicated region
  $region126: #{input_block_forward.4} parent=0 // pred_check
    _
  $region127: #{input_block_forward.4} parent=0 // pred_check_branch
    %2447 = sbr.rel (0) target = $region129
  $region128: #{input_block_forward.4} parent=0 // pred_region
    _
  $region129: #{input_block_forward.4} parent=0 // pred_fallthru
    _

</llo_original>
